<compile_context>
chip_gen: v6e
topology: v6e:2x2x1
jax: 0.10.0
libtpu: 0.0.40
codegen_flags: <defaults>
</compile_context>

<pallas_src>
import functools

import jax
import jax.numpy as jnp
from jax import lax
from jax.experimental import pallas as pl
from jax.experimental.pallas import tpu as pltpu

NUM_FEATURES = 1408   # efficientnet_b2 feature dim (as hard-coded in the module)
C_STEM = 32
KSIZE = 3
STRIDE = 2
PAD = 1
KP = 32               # im2col patch depth padded 27 -> 32 (equals full array dim => legal block)
DP = 128              # fused linear-heads output padded to a lane-dense width
ROW_CHUNK = 128       # rows processed per inner-loop step (bounds f32 intermediate size)
MAX_TP = 2048         # cap on the spatial tile size (keeps a few grid steps for pipelining)


def _round_up(a, b):
    return -(-a // b) * b


def _silu(x):
    # x * sigmoid(x) == 0.5 * x * (1 + tanh(x/2)) : a single EUP op per element.
    return 0.5 * x * (1.0 + jnp.tanh(0.5 * x))


# ----------------------------- fused Pallas kernel -----------------------------

def _fused_forward_kernel(p_ref, ws_ref, sb_ref, wh_ref, hb_ref, wo_ref, bo_ref,
                          o_ref, acc_ref, *, inv_p, p_valid, row_chunk):
    # p_ref : (Bt, TP, KP)  bf16   im2col patches for one (batch-block, spatial-tile)
    # ws_ref: (KP, Cs)      bf16   stem conv weight (BN scale folded, zero rows 27..31)
    # sb_ref: (1, Cs)       f32    folded BatchNorm2d bias (stem)
    # wh_ref: (Cs, F)       bf16   1x1 head-conv weight (BN scale folded)
    # hb_ref: (1, F)        f32    folded BatchNorm2d bias (head conv)
    # wo_ref: (F, DP)       bf16   all linear heads, concatenated + zero-padded to DP lanes
    # bo_ref: (1, DP)       f32    fused head biases (zero-padded)
    # o_ref : (Bt, 1, DP)   f32    fused head outputs for this batch block
    # acc_ref: (Bt, F)      f32    VMEM global-average-pool accumulator (per batch block)
    t = pl.program_id(1)

    @pl.when(t == 0)
    def _():
        acc_ref[...] = jnp.zeros_like(acc_ref)

    Bt, TP, Kp = p_ref.shape
    F = wh_ref.shape[1]
    n_chunks = TP // row_chunk          # static
    tile_base = t * TP

    def chunk_body(c, carry):
        start = pl.multiple_of(c * row_chunk, row_chunk)
        pc = p_ref[:, pl.ds(start, row_chunk), :]                         # (Bt, RC, KP) bf16
        pc2 = pc.reshape(Bt * row_chunk, Kp)

        # stem conv (im2col matmul, BN scale pre-folded) + bias + SiLU
        h = jnp.dot(pc2, ws_ref[...], preferred_element_type=jnp.float32)
        h = _silu(h + sb_ref[...])

        # 1x1 head conv (BN scale pre-folded) + bias + SiLU
        y = jnp.dot(h.astype(jnp.bfloat16), wh_ref[...],
                    preferred_element_type=jnp.float32)
        y = _silu(y + hb_ref[...])
        y = y.reshape(Bt, row_chunk, F)

        # mask spatial rows beyond the true spatial extent (padded rows would otherwise
        # contribute SiLU(bias)-shaped garbage to the pool)
        rows = tile_base + start + lax.broadcasted_iota(jnp.int32, (1, row_chunk, 1), 1)
        y = jnp.where(rows < p_valid, y, 0.0)

        # partial global-average-pool: per-batch spatial sum accumulated in VMEM
        acc_ref[...] += jnp.sum(y, axis=1)
        return carry

    lax.fori_loop(0, n_chunks, chunk_body, 0)

    # last spatial tile: finish the pool (sum * 1/P) and run all fused linear heads
    @pl.when(t == pl.num_programs(1) - 1)
    def _():
        feats = acc_ref[...] * inv_p                                      # (Bt, F) f32
        out = jnp.dot(feats.astype(jnp.bfloat16), wo_ref[...],
                      preferred_element_type=jnp.float32) + bo_ref[...]   # (Bt, DP)
        o_ref[...] = out.reshape(o_ref.shape)


# ----------------------------- pallas_call wrapper -----------------------------

def _vmem_budget_bytes():
    """~75% of the chip's physical VMEM: ~48 MiB on v7x, ~96 MiB on v5e/v6e."""
    cap = 64 * 1024 * 1024
    try:
        info = pltpu.get_tpu_info()
        cap = int(getattr(info, "vmem_capacity_bytes", cap))
    except Exception:
        pass
    budget = cap * 3 // 4
    return int(min(max(budget, 32 * 1024 * 1024), 112 * 1024 * 1024))


def _choose_tiling(P, Bt, vmem_budget):
    """Pick the spatial tile TP (multiple of ROW_CHUNK) that fits the VMEM budget."""
    rc = ROW_CHUNK
    # fixed VMEM: double-buffered weight blocks + in-loop f32 intermediates + accumulator + output
    bytes_weights = 2 * (KP * C_STEM * 2 + C_STEM * NUM_FEATURES * 2
                         + NUM_FEATURES * DP * 2
                         + (C_STEM + NUM_FEATURES + DP) * 4)
    bytes_chunk = Bt * rc * NUM_FEATURES * 4 * 4      # y + SiLU temps + bf16 copy headroom
    bytes_fixed = bytes_weights + bytes_chunk + Bt * NUM_FEATURES * 4 + 2 * Bt * DP * 4
    per_row = 2 * Bt * KP * 2                         # double-buffered bf16 patch rows
    tp_cap = max(rc, (vmem_budget - bytes_fixed) // per_row)
    tp = int(min(tp_cap, MAX_TP))
    tp = max(rc, (tp // rc) * rc)
    tp = min(tp, _round_up(P, rc))                    # never a tile larger than padded P
    p_pad = _round_up(P, tp)
    return tp, p_pad


def fused_backbone_and_heads(patches, w_stem, stem_bias, w_head, head_bias, w_all, b_all):
    B, P, Kp = patches.shape
    Cs = w_stem.shape[1]
    F = w_head.shape[1]
    Dp = w_all.shape[1]

    Bt = 1  # one batch element per batch block -> maximal parallel-axis granularity (v7x megacore)
    vmem_budget = _vmem_budget_bytes()
    TP, P_pad = _choose_tiling(P, Bt, vmem_budget)
    if P_pad != P:
        patches = jnp.pad(patches, ((0, 0), (0, P_pad - P), (0, 0)))
    n_tiles = P_pad // TP

    kern = functools.partial(_fused_forward_kernel,
                             inv_p=1.0 / P, p_valid=P, row_chunk=ROW_CHUNK)
    out = pl.pallas_call(
        kern,
        grid=(B // Bt, n_tiles),
        in_specs=[
            pl.BlockSpec((Bt, TP, Kp), lambda b, t: (b, t, 0)),   # batch-/spatial-tiled patches
            pl.BlockSpec((Kp, Cs), lambda b, t: (0, 0)),
            pl.BlockSpec((1, Cs), lambda b, t: (0, 0)),
            pl.BlockSpec((Cs, F), lambda b, t: (0, 0)),
            pl.BlockSpec((1, F), lambda b, t: (0, 0)),
            pl.BlockSpec((F, Dp), lambda b, t: (0, 0)),
            pl.BlockSpec((1, Dp), lambda b, t: (0, 0)),
        ],
        out_specs=pl.BlockSpec((Bt, 1, Dp), lambda b, t: (b, 0, 0)),  # resident across t
        out_shape=jax.ShapeDtypeStruct((B, 1, Dp), jnp.float32),
        scratch_shapes=[pltpu.VMEM((Bt, F), jnp.float32)],            # pooled-feature accumulator
        compiler_params=pltpu.CompilerParams(
            dimension_semantics=("parallel", "arbitrary"),            # batch parallel, spatial reduce
            vmem_limit_bytes=vmem_budget,
        ),
    )(patches, w_stem, stem_bias, w_head, head_bias, w_all, b_all)
    return out.reshape(B, Dp)


# ----------------------------- plain-JAX glue -----------------------------

def _im2col(x_nhwc, ksize, stride, pad):
    B, H, W, C = x_nhwc.shape
    xp = jnp.pad(x_nhwc, ((0, 0), (pad, pad), (pad, pad), (0, 0)))
    Ho = (H + 2 * pad - ksize) // stride + 1
    Wo = (W + 2 * pad - ksize) // stride + 1
    slices = []
    for i in range(ksize):
        for j in range(ksize):
            slices.append(xp[:, i:i + Ho * stride:stride, j:j + Wo * stride:stride, :])
    p = jnp.stack(slices, axis=-2)                     # (B, Ho, Wo, K*K, C)
    return p.reshape(B, Ho * Wo, ksize * ksize * C), Ho, Wo


def init_params(key, num_classes):
    ks = jax.random.split(key, 20)
    w = lambda k, shape, s=0.05: s * jax.random.normal(k, shape, dtype=jnp.float32)
    params = {
        # backbone
        "w_stem": w(ks[0], (KSIZE * KSIZE * 3, C_STEM)),
        "stem_scale": 1.0 + 0.1 * jax.random.normal(ks[1], (1, C_STEM), dtype=jnp.float32),
        "stem_bias": 0.1 * jax.random.normal(ks[2], (1, C_STEM), dtype=jnp.float32),
        "w_head": w(ks[3], (C_STEM, NUM_FEATURES)),
        "head_scale": 1.0 + 0.1 * jax.random.normal(ks[4], (1, NUM_FEATURES), dtype=jnp.float32),
        "head_bias": 0.1 * jax.random.normal(ks[5], (1, NUM_FEATURES), dtype=jnp.float32),
        # heads (match nn.Linear shapes in the module)
        "w_cls": w(ks[6], (NUM_FEATURES, 1)),   "b_cls": w(ks[7], (1,)),
        "w_la": w(ks[8], (NUM_FEATURES, num_classes)),  "b_la": w(ks[9], (num_classes,)),
        "w_ra": w(ks[10], (NUM_FEATURES, num_classes)), "b_ra": w(ks[11], (num_classes,)),
        "w_lv": w(ks[12], (NUM_FEATURES, num_classes)), "b_lv": w(ks[13], (num_classes,)),
        "w_rv": w(ks[14], (NUM_FEATURES, num_classes)), "b_rv": w(ks[15], (num_classes,)),
        "w_lad": w(ks[16], (NUM_FEATURES, 1)),   "b_lad": w(ks[17], (1,)),
        "w_lvidd": w(ks[18], (NUM_FEATURES, 1)), "b_lvidd": w(ks[19], (1,)),
    }
    return params


def ordinal_effnet_multi_forward(x_nchw, params, tasks="lvidd", num_classes=4):
    # NCHW (PyTorch) -> NHWC (kernel layout)
    x = jnp.transpose(x_nchw.astype(jnp.float32), (0, 2, 3, 1))
    patches, _, _ = _im2col(x, KSIZE, STRIDE, PAD)          # (B, P, K=27)
    B, P, K = patches.shape

    # lane-dense padding of the im2col depth (27 -> 32) + bf16 matmul operands
    patches = jnp.pad(patches, ((0, 0), (0, 0), (0, KP - K))).astype(jnp.bfloat16)

    # fold the BatchNorm scales into the conv weights (f32) and only keep the bias in-kernel
    w_stem = params["w_stem"] * params["stem_scale"]                   # (27, Cs)
    w_stem = jnp.pad(w_stem, ((0, KP - K), (0, 0))).astype(jnp.bfloat16)
    w_head = (params["w_head"] * params["head_scale"]).astype(jnp.bfloat16)
    stem_bias = params["stem_bias"]                                    # (1, Cs) f32
    head_bias = params["head_bias"]                                    # (1, F)  f32

    # fuse all linear heads into one lane-dense matmul; slice afterwards
    base_w = [params["w_cls"], params["w_la"], params["w_ra"], params["w_lv"], params["w_rv"]]
    base_b = [params["b_cls"], params["b_la"], params["b_ra"], params["b_lv"], params["b_rv"]]
    base_sizes = [1, num_classes, num_classes, num_classes, num_classes]
    if tasks == "lvidd":
        Ws, bs, sizes = base_w + [params["w_lvidd"]], base_b + [params["b_lvidd"]], base_sizes + [1]
    elif tasks == "lad":
        Ws, bs, sizes = base_w + [params["w_lad"]], base_b + [params["b_lad"]], base_sizes + [1]
    elif tasks == "combo":
        Ws = base_w + [params["w_lad"], params["w_lvidd"]]
        bs = base_b + [params["b_lad"], params["b_lvidd"]]
        sizes = base_sizes + [1, 1]
    else:
        raise ValueError(tasks)

    D = sum(sizes)
    w_all = jnp.concatenate(Ws, axis=1)                               # (F, D)
    b_all = jnp.concatenate(bs)[None, :]                              # (1, D)
    w_all = jnp.pad(w_all, ((0, 0), (0, DP - D))).astype(jnp.bfloat16)
    b_all = jnp.pad(b_all, ((0, 0), (0, DP - D)))                     # f32

    out_padded = fused_backbone_and_heads(
        patches, w_stem, stem_bias, w_head, head_bias, w_all, b_all)
    out = out_padded[:, :D]

    # split to the module's output tuple ordering
    splits, off = [], 0
    for s in sizes:
        splits.append(out[:, off:off + s])
        off += s
    enl, la, ra, lv, rv = splits[0], splits[1], splits[2], splits[3], splits[4]
    if tasks == "lvidd":
        return (enl, la, ra, lv, rv, splits[5])                 # lvidd
    if tasks == "lad":
        return (enl, la, ra, lv, rv, splits[5])                 # lad
    return (enl, la, ra, lv, rv, splits[5], splits[6])          # lad, lvidd


if __name__ == "__main__":
    key = jax.random.PRNGKey(0)
    k_x, k_p = jax.random.split(key)
    num_classes = 4
    x = jax.random.normal(k_x, (2, 3, 16, 16), dtype=jnp.float32)   # NCHW like PyTorch
    params = init_params(k_p, num_classes)

    outs = ordinal_effnet_multi_forward(x, params, tasks="lvidd", num_classes=num_classes)
    outs = jax.block_until_ready(outs)

    enl, la, ra, lv, rv, lvidd = outs
    assert enl.shape == (2, 1) and lvidd.shape == (2, 1)
    assert la.shape == ra.shape == lv.shape == rv.shape == (2, num_classes)
    assert all(bool(jnp.all(jnp.isfinite(o))) for o in outs)
    print("KERNEL_OK")
</pallas_src>

<mosaic_0001>
module attributes {stable_mosaic.version = 11 : i64} {
  func.func @_fused_forward_kernel(%arg0: i32, %arg1: i32, %arg2: memref<1x128x32xbf16, #tpu.memory_space<vmem>>, %arg3: memref<32x32xbf16, #tpu.memory_space<vmem>>, %arg4: memref<1x32xf32, #tpu.memory_space<vmem>>, %arg5: memref<32x1408xbf16, #tpu.memory_space<vmem>>, %arg6: memref<1x1408xf32, #tpu.memory_space<vmem>>, %arg7: memref<1408x128xbf16, #tpu.memory_space<vmem>>, %arg8: memref<1x128xf32, #tpu.memory_space<vmem>>, %arg9: memref<1x1x128xf32, #tpu.memory_space<vmem>>, %arg10: memref<1x1408xf32, #tpu.memory_space<vmem>>) attributes {dimension_semantics = [#tpu.dimension_semantics<parallel>, #tpu.dimension_semantics<arbitrary>], iteration_bounds = array<i64: 2, 1>, scalar_prefetch = 0 : i64, scratch_operands = 1 : i64, tpu.core_type = #tpu.core_type<tc>, window_params = [{transform_indices = @transform_0, window_bounds = array<i64: 1, 128, 32>}, {pipeline_mode = #tpu.pipeline_mode<synchronous>, transform_indices = @transform_1, window_bounds = array<i64: 32, 32>}, {pipeline_mode = #tpu.pipeline_mode<synchronous>, transform_indices = @transform_2, window_bounds = array<i64: 1, 32>}, {pipeline_mode = #tpu.pipeline_mode<synchronous>, transform_indices = @transform_3, window_bounds = array<i64: 32, 1408>}, {pipeline_mode = #tpu.pipeline_mode<synchronous>, transform_indices = @transform_4, window_bounds = array<i64: 1, 1408>}, {pipeline_mode = #tpu.pipeline_mode<synchronous>, transform_indices = @transform_5, window_bounds = array<i64: 1408, 128>}, {pipeline_mode = #tpu.pipeline_mode<synchronous>, transform_indices = @transform_6, window_bounds = array<i64: 1, 128>}, {transform_indices = @transform_7, window_bounds = array<i64: 1, 1, 128>}]} {
    %c0_i32 = arith.constant 0 : i32
    %0 = arith.cmpi eq, %arg1, %c0_i32 : i32
    %1 = arith.extui %0 : i1 to i32
    %c0_i32_0 = arith.constant 0 : i32
    %2 = arith.cmpi ne, %1, %c0_i32_0 : i32
    scf.if %2 {
      %cst_27 = arith.constant 0.000000e+00 : f32
      %54 = vector.broadcast %cst_27 : f32 to vector<1x1408xf32>
      %c0_28 = arith.constant 0 : index
      %c0_29 = arith.constant 0 : index
      %55 = vector.load %arg10[%c0_28, %c0_29] : memref<1x1408xf32, #tpu.memory_space<vmem>>, vector<1x1408xf32>
      tpu.vector_store %arg10[%c0_28, %c0_29], %54 {strides = array<i32>} : memref<1x1408xf32, #tpu.memory_space<vmem>>, vector<1x1408xf32>,
    } else {
    }
    %c128_i32 = arith.constant 128 : i32
    %3 = arith.muli %arg1, %c128_i32 : i32
    %c0_i32_1 = arith.constant 0 : i32
    %c128_i32_2 = arith.constant 128 : i32
    %4 = arith.muli %c0_i32_1, %c128_i32_2 : i32
    %5 = tpu.assume_multiple %4, 128 : i32
    %c0 = arith.constant 0 : index
    %6 = arith.index_cast %5 : i32 to index
    %c0_3 = arith.constant 0 : index
    %7 = vector.load %arg2[%c0, %6, %c0_3] : memref<1x128x32xbf16, #tpu.memory_space<vmem>>, vector<1x128x32xbf16>
    %8 = vector.shape_cast %7 : vector<1x128x32xbf16> to vector<128x32xbf16>
    %c0_4 = arith.constant 0 : index
    %c0_5 = arith.constant 0 : index
    %9 = vector.load %arg3[%c0_4, %c0_5] : memref<32x32xbf16, #tpu.memory_space<vmem>>, vector<32x32xbf16>
    %cst = arith.constant dense<0.000000e+00> : vector<128x32xf32>
    %10 = tpu.matmul %8, %9, %cst {dimension_numbers = #tpu.dot_dimension_numbers<[1], [0], [0], [1], [0, 0, 1, 1], [], []>} : vector<128x32xbf16>, vector<32x32xbf16>, vector<128x32xf32> -> vector<128x32xf32>
    %c0_6 = arith.constant 0 : index
    %c0_7 = arith.constant 0 : index
    %11 = vector.load %arg4[%c0_6, %c0_7] : memref<1x32xf32, #tpu.memory_space<vmem>>, vector<1x32xf32>
    %12 = vector.broadcast %11 : vector<1x32xf32> to vector<128x32xf32>
    %13 = arith.addf %10, %12 : vector<128x32xf32>
    %cst_8 = arith.constant 5.000000e-01 : f32
    %14 = vector.broadcast %cst_8 : f32 to vector<128x32xf32>
    %15 = arith.mulf %14, %13 : vector<128x32xf32>
    %cst_9 = arith.constant 5.000000e-01 : f32
    %16 = vector.broadcast %cst_9 : f32 to vector<128x32xf32>
    %17 = arith.mulf %16, %13 : vector<128x32xf32>
    %18 = math.tanh %17 : vector<128x32xf32>
    %cst_10 = arith.constant 1.000000e+00 : f32
    %19 = vector.broadcast %cst_10 : f32 to vector<128x32xf32>
    %20 = arith.addf %19, %18 : vector<128x32xf32>
    %21 = arith.mulf %15, %20 : vector<128x32xf32>
    %22 = arith.truncf %21 : vector<128x32xf32> to vector<128x32xbf16>
    %c0_11 = arith.constant 0 : index
    %c0_12 = arith.constant 0 : index
    %23 = vector.load %arg5[%c0_11, %c0_12] : memref<32x1408xbf16, #tpu.memory_space<vmem>>, vector<32x1408xbf16>
    %cst_13 = arith.constant dense<0.000000e+00> : vector<128x1408xf32>
    %24 = tpu.matmul %22, %23, %cst_13 {dimension_numbers = #tpu.dot_dimension_numbers<[1], [0], [0], [1], [0, 0, 1, 1], [], []>} : vector<128x32xbf16>, vector<32x1408xbf16>, vector<128x1408xf32> -> vector<128x1408xf32>
    %c0_14 = arith.constant 0 : index
    %c0_15 = arith.constant 0 : index
    %25 = vector.load %arg6[%c0_14, %c0_15] : memref<1x1408xf32, #tpu.memory_space<vmem>>, vector<1x1408xf32>
    %26 = vector.broadcast %25 : vector<1x1408xf32> to vector<128x1408xf32>
    %27 = arith.addf %24, %26 : vector<128x1408xf32>
    %cst_16 = arith.constant 5.000000e-01 : f32
    %28 = vector.broadcast %cst_16 : f32 to vector<128x1408xf32>
    %29 = arith.mulf %28, %27 : vector<128x1408xf32>
    %cst_17 = arith.constant 5.000000e-01 : f32
    %30 = vector.broadcast %cst_17 : f32 to vector<128x1408xf32>
    %31 = arith.mulf %30, %27 : vector<128x1408xf32>
    %32 = math.tanh %31 : vector<128x1408xf32>
    %cst_18 = arith.constant 1.000000e+00 : f32
    %33 = vector.broadcast %cst_18 : f32 to vector<128x1408xf32>
    %34 = arith.addf %33, %32 : vector<128x1408xf32>
    %35 = arith.mulf %29, %34 : vector<128x1408xf32>
    %36 = vector.shape_cast %35 : vector<128x1408xf32> to vector<1x128x1408xf32>
    %37 = arith.addi %3, %5 : i32
    %38 = tpu.iota {dimensions = array<i32: 1>} : vector<1x128x1xi32>
    %39 = vector.broadcast %37 : i32 to vector<1x128x1xi32>
    %40 = arith.addi %39, %38 : vector<1x128x1xi32>
    %c64_i32 = arith.constant 64 : i32
    %41 = vector.broadcast %c64_i32 : i32 to vector<1x128x1xi32>
    %42 = arith.cmpi slt, %40, %41 : vector<1x128x1xi32>
    %cst_19 = arith.constant 0.000000e+00 : f32
    %43 = vector.shape_cast %42 : vector<1x128x1xi1> to vector<1x128x1xi1>
    %44 = vector.broadcast %43 : vector<1x128x1xi1> to vector<1x128x1408xi1>
    %45 = vector.broadcast %cst_19 : f32 to vector<1x128x1408xf32>
    %46 = arith.select %44, %36, %45 : vector<1x128x1408xi1>, vector<1x128x1408xf32>
    %c0_20 = arith.constant 0 : index
    %c0_21 = arith.constant 0 : index
    %47 = vector.load %arg10[%c0_20, %c0_21] : memref<1x1408xf32, #tpu.memory_space<vmem>>, vector<1x1408xf32>
    %cst_22 = arith.constant dense<0.000000e+00> : vector<1x1408xf32>
    %48 = vector.multi_reduction <add>, %46, %cst_22 [1] : vector<1x128x1408xf32> to vector<1x1408xf32>
    %49 = arith.addf %47, %48 : vector<1x1408xf32>
    %c0_23 = arith.constant 0 : index
    %c0_24 = arith.constant 0 : index
    %50 = vector.load %arg10[%c0_23, %c0_24] : memref<1x1408xf32, #tpu.memory_space<vmem>>, vector<1x1408xf32>
    tpu.vector_store %arg10[%c0_23, %c0_24], %49 {strides = array<i32>} : memref<1x1408xf32, #tpu.memory_space<vmem>>, vector<1x1408xf32>,
    %c1_i32 = arith.constant 1 : i32
    %c0_i32_25 = arith.constant 0 : i32
    %51 = arith.cmpi eq, %arg1, %c0_i32_25 : i32
    %52 = arith.extui %51 : i1 to i32
    %c0_i32_26 = arith.constant 0 : i32
    %53 = arith.cmpi ne, %52, %c0_i32_26 : i32
    scf.if %53 {
      %c0_27 = arith.constant 0 : index
      %c0_28 = arith.constant 0 : index
      %54 = vector.load %arg10[%c0_27, %c0_28] : memref<1x1408xf32, #tpu.memory_space<vmem>>, vector<1x1408xf32>
      %cst_29 = arith.constant 1.562500e-02 : f32
      %55 = vector.broadcast %cst_29 : f32 to vector<1x1408xf32>
      %56 = arith.mulf %54, %55 : vector<1x1408xf32>
      %57 = arith.truncf %56 : vector<1x1408xf32> to vector<1x1408xbf16>
      %c0_30 = arith.constant 0 : index
      %c0_31 = arith.constant 0 : index
      %58 = vector.load %arg7[%c0_30, %c0_31] : memref<1408x128xbf16, #tpu.memory_space<vmem>>, vector<1408x128xbf16>
      %cst_32 = arith.constant dense<0.000000e+00> : vector<1x128xf32>
      %59 = tpu.matmul %57, %58, %cst_32 {dimension_numbers = #tpu.dot_dimension_numbers<[1], [0], [0], [1], [0, 0, 1, 1], [], []>} : vector<1x1408xbf16>, vector<1408x128xbf16>, vector<1x128xf32> -> vector<1x128xf32>
      %c0_33 = arith.constant 0 : index
      %c0_34 = arith.constant 0 : index
      %60 = vector.load %arg8[%c0_33, %c0_34] : memref<1x128xf32, #tpu.memory_space<vmem>>, vector<1x128xf32>
      %61 = arith.addf %59, %60 : vector<1x128xf32>
      %62 = vector.shape_cast %61 : vector<1x128xf32> to vector<1x1x128xf32>
      %c0_35 = arith.constant 0 : index
      %c0_36 = arith.constant 0 : index
      %c0_37 = arith.constant 0 : index
      %63 = vector.load %arg9[%c0_35, %c0_36, %c0_37] : memref<1x1x128xf32, #tpu.memory_space<vmem>>, vector<1x1x128xf32>
      tpu.vector_store %arg9[%c0_35, %c0_36, %c0_37], %62 {strides = array<i32>} : memref<1x1x128xf32, #tpu.memory_space<vmem>>, vector<1x1x128xf32>,
    } else {
    }
    return
  }
  func.func @transform_0(%arg0: i32, %arg1: i32) -> (i32, i32, i32) {
    %c0_i32 = arith.constant 0 : i32
    %c0_i32_0 = arith.constant 0 : i32
    return %arg0, %arg1, %c0_i32 : i32, i32, i32
  }
  func.func @transform_1(%arg0: i32, %arg1: i32) -> (i32, i32) {
    %c0_i32 = arith.constant 0 : i32
    %c0_i32_0 = arith.constant 0 : i32
    %c0_i32_1 = arith.constant 0 : i32
    return %c0_i32, %c0_i32_0 : i32, i32
  }
  func.func @transform_2(%arg0: i32, %arg1: i32) -> (i32, i32) {
    %c0_i32 = arith.constant 0 : i32
    %c0_i32_0 = arith.constant 0 : i32
    %c0_i32_1 = arith.constant 0 : i32
    return %c0_i32, %c0_i32_0 : i32, i32
  }
  func.func @transform_3(%arg0: i32, %arg1: i32) -> (i32, i32) {
    %c0_i32 = arith.constant 0 : i32
    %c0_i32_0 = arith.constant 0 : i32
    %c0_i32_1 = arith.constant 0 : i32
    return %c0_i32, %c0_i32_0 : i32, i32
  }
  func.func @transform_4(%arg0: i32, %arg1: i32) -> (i32, i32) {
    %c0_i32 = arith.constant 0 : i32
    %c0_i32_0 = arith.constant 0 : i32
    %c0_i32_1 = arith.constant 0 : i32
    return %c0_i32, %c0_i32_0 : i32, i32
  }
  func.func @transform_5(%arg0: i32, %arg1: i32) -> (i32, i32) {
    %c0_i32 = arith.constant 0 : i32
    %c0_i32_0 = arith.constant 0 : i32
    %c0_i32_1 = arith.constant 0 : i32
    return %c0_i32, %c0_i32_0 : i32, i32
  }
  func.func @transform_6(%arg0: i32, %arg1: i32) -> (i32, i32) {
    %c0_i32 = arith.constant 0 : i32
    %c0_i32_0 = arith.constant 0 : i32
    %c0_i32_1 = arith.constant 0 : i32
    return %c0_i32, %c0_i32_0 : i32, i32
  }
  func.func @transform_7(%arg0: i32, %arg1: i32) -> (i32, i32, i32) {
    %c0_i32 = arith.constant 0 : i32
    %c0_i32_0 = arith.constant 0 : i32
    %c0_i32_1 = arith.constant 0 : i32
    return %arg0, %c0_i32, %c0_i32_0 : i32, i32, i32
  }
}

</mosaic_0001>

<llo_original>
// kernel: tpu_custom_call.1
$region0: #{tpu_custom_call.1}
  #allocation0 [shape = 'u32[]', space=smem, size = 0x4, offset = 0x4, fixed_abs, tag = 'smem constant byte address 0x4 - core index']
  #allocation1 [shape = 'u32[144,128]{1,0:T(1,128)}', space=vmem, size = 0x12000, scoped, tag = 'internal scratch']
  #allocation2 [shape = 'f32[1,1408]{1,0:T(1,128)}', space=vmem, size = 0x1600, scoped, tag = 'scratch operand']
  %s0 = inlined_call_operand.vmem [shape: bf16[2,128,32], index: 0, kind: input, shape index: {}]
  %s1 = inlined_call_operand.vmem [shape: bf16[32,32], index: 1, kind: input, shape index: {}]
  %s2 = inlined_call_operand.vmem [shape: f32[1,32], index: 2, kind: input, shape index: {}]
  %s3 = inlined_call_operand.hbm [shape: bf16[32,1408], index: 3, kind: input, shape index: {}]
  %s4 = inlined_call_operand.vmem [shape: f32[1,1408], index: 4, kind: input, shape index: {}]
  %s5 = inlined_call_operand.hbm [shape: bf16[1408,128], index: 5, kind: input, shape index: {}]
  %s6 = inlined_call_operand.vmem [shape: f32[1,128], index: 6, kind: input, shape index: {}]
  %s7 = inlined_call_operand.hbm [shape: f32[2,1,128], index: 7, kind: output, shape index: {}]
  %s8 = sld [smem:[#allocation0]]
  $region77: #{tpu_custom_call.1} parent=0
    _
  %s10 = ssub.s32 1, %s8
  %s11 = scalar_select 0, %s10, %s8
  $region1: #{tpu_custom_call.1} parent=0
    #allocation3 [shape = 'u8[90112]{0}', space=vmem, size = 0x16000, scoped, tag = 'input window, operand 3, single buffered']
    #allocation4 [shape = 's32[2]{0}', space=sflag, size = 0x8, scoped, tag = 'scoped memory for tpu_custom_call.1']
    #allocation5 [shape = 's32[2]{0}', space=sflag, size = 0x8, scoped, tag = 'scoped memory for tpu_custom_call.1']
    #allocation6 [shape = 'u8[360448]{0}', space=vmem, size = 0x58000, scoped, tag = 'input window, operand 5, single buffered']
    #allocation7 [shape = 's32[1]{0}', space=sflag, size = 0x4, scoped, tag = 'scoped memory for tpu_custom_call.1']
    #allocation8 [shape = 'u8[1024]{0}', space=vmem, size = 0x400, scoped, tag = 'output window, operand 0']
    %12 = vsyncpa [#allocation4], 0
    %13 = vsyncpa [#allocation7], 0
    %14 = vsyncpa [#allocation5], 0
    %s15 = scalar_lea.sflag [#allocation5], 1
    %16 = vsyncpa %s15, 0
    loop: start=0, step=1, limit=4
    $region2: #{tpu_custom_call.1} parent=1 // loop_pre_header
      _
    $region3: #{tpu_custom_call.1} parent=1 // loop_header
      %s18 = sphi 0, %s22
      %p19 = scmp.ge.s32.totalorder %s18, 4
      %s25 = sphi 0, %s37
      %s26 = sphi 0, %s33
      %s27 = sphi 0, %s25
      %s28 = sphi 0, %s26
      %s29 = sphi 0, %s27
      %s30 = sphi 0, %s28
      %s42 = sphi 0, %s44
      %s45 = sphi 0, %s42
      %s46 = sphi 0, %s45
      %s62 = sphi 0, %s46
      %s66 = sphi 0, %s66
      %s68 = sphi 0, %s66
      %s69 = sphi 0, %s68
      %s83 = sphi 0, %s69
      %s87 = sphi 0, %s87
      %s89 = sphi 0, %s87
      %s90 = sphi 0, %s89
      %s104 = sphi 0, %s90
      %s108 = sphi 0, %s108
      %s110 = sphi 0, %s108
      %s111 = sphi 0, %s110
      %s125 = sphi 0, %s111
      %s129 = sphi 0, %s129
      %s131 = sphi 0, %s129
      %s132 = sphi 0, %s131
      %s146 = sphi 0, %s132
      %s150 = sphi 0, %s150
      %s152 = sphi 0, %s150
      %s153 = sphi 0, %s152
      %s167 = sphi 0, %s153
      %s171 = sphi 0, %s171
      %s173 = sphi 0, %s171
      %s174 = sphi 0, %s173
      %s188 = sphi 0, %s174
      %s194 = sphi 0, %s196
      %s197 = sphi 0, %s194
      %s198 = sphi 0, %s197
      %s214 = sphi 0, %s198
    $region4: #{tpu_custom_call.1} parent=1 // loop_header_branch
      %21 = sbr.rel (%p19) target = $region8
    $region5: #{tpu_custom_call.1} parent=1 // loop_body
      %s23 = ssub.s32 %s18, 1
      %s24 = ssub.s32 %s18, 2
      %s31 = sadd.s32 1, %s26
      %p32 = scmp.ge.s32.totalorder %s31, 1
      %s33 = scalar_select %p32, 0, %s31
      %s34 = sadd.s32 1, %s25
      %s35 = scalar_select %p32, %s34, %s25
      %p36 = scmp.ge.s32.totalorder %s35, 2
      %s37 = scalar_select %p36, 0, %s35
      %s38 = ssub.s32 %s25, %s37
      %s39 = ssub.s32 %s26, %s33
      %s40 = sor.u32 %s38, %s39
      %p41 = scmp.eq.s32.totalorder %s40, 0
      %s43 = sadd.s32 %s42, 1
      %s44 = scalar_select %p41, %s42, %s43
      %p47 = pneg %p41
      %p48 = scmp.eq.s32.totalorder %s18, 1
      %p49 = por %p47, %p48
      %p50 = scmp.ne.s32.totalorder %s42, %s45
      %p51 = scmp.eq.s32.totalorder %s18, 0
      %p52 = por %p50, %p51
      %p53 = scmp.ne.s32.totalorder %s42, %s45
      %p54 = scmp.eq.s32.totalorder %s23, 1
      %p55 = por %p53, %p54
      %p56 = scmp.ne.s32.totalorder %s45, %s46
      %p57 = scmp.eq.s32.totalorder %s23, 0
      %p58 = por %p56, %p57
      %p59 = scmp.ne.s32.totalorder %s45, %s46
      %p60 = scmp.eq.s32.totalorder %s24, 1
      %p61 = por %p59, %p60
      %p63 = scmp.ne.s32.totalorder %s46, %s62
      %p64 = scmp.eq.s32.totalorder %s24, 0
      %p65 = por %p63, %p64
      %s67 = sadd.s32 %s66, 1
      %p70 = scmp.eq.s32.totalorder %s18, 1
      %p71 = scmp.ne.s32.totalorder %s66, %s68
      %p72 = scmp.eq.s32.totalorder %s18, 0
      %p73 = por %p71, %p72
      %p74 = scmp.ne.s32.totalorder %s66, %s68
      %p75 = scmp.eq.s32.totalorder %s23, 1
      %p76 = por %p74, %p75
      %p77 = scmp.ne.s32.totalorder %s68, %s69
      %p78 = scmp.eq.s32.totalorder %s23, 0
      %p79 = por %p77, %p78
      %p80 = scmp.ne.s32.totalorder %s68, %s69
      %p81 = scmp.eq.s32.totalorder %s24, 1
      %p82 = por %p80, %p81
      %p84 = scmp.ne.s32.totalorder %s69, %s83
      %p85 = scmp.eq.s32.totalorder %s24, 0
      %p86 = por %p84, %p85
      %s88 = sadd.s32 %s87, 1
      %p91 = scmp.eq.s32.totalorder %s18, 1
      %p92 = scmp.ne.s32.totalorder %s87, %s89
      %p93 = scmp.eq.s32.totalorder %s18, 0
      %p94 = por %p92, %p93
      %p95 = scmp.ne.s32.totalorder %s87, %s89
      %p96 = scmp.eq.s32.totalorder %s23, 1
      %p97 = por %p95, %p96
      %p98 = scmp.ne.s32.totalorder %s89, %s90
      %p99 = scmp.eq.s32.totalorder %s23, 0
      %p100 = por %p98, %p99
      %p101 = scmp.ne.s32.totalorder %s89, %s90
      %p102 = scmp.eq.s32.totalorder %s24, 1
      %p103 = por %p101, %p102
      %p105 = scmp.ne.s32.totalorder %s90, %s104
      %p106 = scmp.eq.s32.totalorder %s24, 0
      %p107 = por %p105, %p106
      %s109 = sadd.s32 %s108, 1
      %p112 = scmp.eq.s32.totalorder %s18, 1
      %p113 = scmp.ne.s32.totalorder %s108, %s110
      %p114 = scmp.eq.s32.totalorder %s18, 0
      %p115 = por %p113, %p114
      %p116 = scmp.ne.s32.totalorder %s108, %s110
      %p117 = scmp.eq.s32.totalorder %s23, 1
      %p118 = por %p116, %p117
      %p119 = scmp.ne.s32.totalorder %s110, %s111
      %p120 = scmp.eq.s32.totalorder %s23, 0
      %p121 = por %p119, %p120
      %p122 = scmp.ne.s32.totalorder %s110, %s111
      %p123 = scmp.eq.s32.totalorder %s24, 1
      %p124 = por %p122, %p123
      %p126 = scmp.ne.s32.totalorder %s111, %s125
      %p127 = scmp.eq.s32.totalorder %s24, 0
      %p128 = por %p126, %p127
      %s130 = sadd.s32 %s129, 1
      %p133 = scmp.eq.s32.totalorder %s18, 1
      %p134 = scmp.ne.s32.totalorder %s129, %s131
      %p135 = scmp.eq.s32.totalorder %s18, 0
      %p136 = por %p134, %p135
      %p137 = scmp.ne.s32.totalorder %s129, %s131
      %p138 = scmp.eq.s32.totalorder %s23, 1
      %p139 = por %p137, %p138
      %p140 = scmp.ne.s32.totalorder %s131, %s132
      %p141 = scmp.eq.s32.totalorder %s23, 0
      %p142 = por %p140, %p141
      %p143 = scmp.ne.s32.totalorder %s131, %s132
      %p144 = scmp.eq.s32.totalorder %s24, 1
      %p145 = por %p143, %p144
      %p147 = scmp.ne.s32.totalorder %s132, %s146
      %p148 = scmp.eq.s32.totalorder %s24, 0
      %p149 = por %p147, %p148
      %s151 = sadd.s32 %s150, 1
      %p154 = scmp.eq.s32.totalorder %s18, 1
      %p155 = scmp.ne.s32.totalorder %s150, %s152
      %p156 = scmp.eq.s32.totalorder %s18, 0
      %p157 = por %p155, %p156
      %p158 = scmp.ne.s32.totalorder %s150, %s152
      %p159 = scmp.eq.s32.totalorder %s23, 1
      %p160 = por %p158, %p159
      %p161 = scmp.ne.s32.totalorder %s152, %s153
      %p162 = scmp.eq.s32.totalorder %s23, 0
      %p163 = por %p161, %p162
      %p164 = scmp.ne.s32.totalorder %s152, %s153
      %p165 = scmp.eq.s32.totalorder %s24, 1
      %p166 = por %p164, %p165
      %p168 = scmp.ne.s32.totalorder %s153, %s167
      %p169 = scmp.eq.s32.totalorder %s24, 0
      %p170 = por %p168, %p169
      %s172 = sadd.s32 %s171, 1
      %p175 = scmp.eq.s32.totalorder %s18, 1
      %p176 = scmp.ne.s32.totalorder %s171, %s173
      %p177 = scmp.eq.s32.totalorder %s18, 0
      %p178 = por %p176, %p177
      %p179 = scmp.ne.s32.totalorder %s171, %s173
      %p180 = scmp.eq.s32.totalorder %s23, 1
      %p181 = por %p179, %p180
      %p182 = scmp.ne.s32.totalorder %s173, %s174
      %p183 = scmp.eq.s32.totalorder %s23, 0
      %p184 = por %p182, %p183
      %p185 = scmp.ne.s32.totalorder %s173, %s174
      %p186 = scmp.eq.s32.totalorder %s24, 1
      %p187 = por %p185, %p186
      %p189 = scmp.ne.s32.totalorder %s174, %s188
      %p190 = scmp.eq.s32.totalorder %s24, 0
      %p191 = por %p189, %p190
      %s192 = ssub.s32 %s25, %s37
      %p193 = scmp.eq.s32.totalorder %s192, 0
      %s195 = sadd.s32 %s194, 1
      %s196 = scalar_select %p193, %s194, %s195
      %p199 = pneg %p193
      %p200 = scmp.eq.s32.totalorder %s18, 1
      %p201 = por %p199, %p200
      %p202 = scmp.ne.s32.totalorder %s194, %s197
      %p203 = scmp.eq.s32.totalorder %s18, 0
      %p204 = por %p202, %p203
      %p205 = scmp.ne.s32.totalorder %s194, %s197
      %p206 = scmp.eq.s32.totalorder %s23, 1
      %p207 = por %p205, %p206
      %p208 = scmp.ne.s32.totalorder %s197, %s198
      %p209 = scmp.eq.s32.totalorder %s23, 0
      %p210 = por %p208, %p209
      %p211 = scmp.ne.s32.totalorder %s197, %s198
      %p212 = scmp.eq.s32.totalorder %s24, 1
      %p213 = por %p211, %p212
      %p215 = scmp.ne.s32.totalorder %s198, %s214
      %p216 = scmp.eq.s32.totalorder %s24, 0
      %p217 = por %p215, %p216
      %p218 = scmp.le.s32.totalorder 1, %s18
      %p219 = scmp.lt.s32.totalorder %s18, 3
      %p220 = pnand %p218, %p219
      %p221 = pneg %p220
      // Predicated region
      $region9: #{tpu_custom_call.1} parent=5 // pred_check
        _
      $region10: #{tpu_custom_call.1} parent=5 // pred_check_branch
        %223 = sbr.rel (%p220) target = $region12
      $region11: #{tpu_custom_call.1} parent=5 // pred_region
        %s224 = ssub.s32 %s18, 1
        // Predicated region
        $region13: #{tpu_custom_call.1} parent=11 // pred_check
          %p225 = pneg %p79
        $region14: #{tpu_custom_call.1} parent=11 // pred_check_branch
          %227 = sbr.rel (%p225) target = $region16
        $region15: #{tpu_custom_call.1} parent=11 // pred_region
          _
        $region16: #{tpu_custom_call.1} parent=11 // pred_fallthru
          _
        // Predicated region
        $region17: #{tpu_custom_call.1} parent=11 // pred_check
          %p228 = pneg %p100
        $region18: #{tpu_custom_call.1} parent=11 // pred_check_branch
          %230 = sbr.rel (%p228) target = $region20
        $region19: #{tpu_custom_call.1} parent=11 // pred_region
          _
        $region20: #{tpu_custom_call.1} parent=11 // pred_fallthru
          _
        // Predicated region
        $region21: #{tpu_custom_call.1} parent=11 // pred_check
          %p231 = pneg %p121
        $region22: #{tpu_custom_call.1} parent=11 // pred_check_branch
          %233 = sbr.rel (%p231) target = $region24
        $region23: #{tpu_custom_call.1} parent=11 // pred_region
          %s235 = ssub.s32 2816, 2816
          %236 = vsyncadd [#allocation4], %s235
          %s237 = sshll.u32 [#allocation3], 4
          %s238 = int_to_ptr.vmem [resolvable:$true] %s237
          %243 = dma.hbm_to_vmem [thread:$0]  %s3, 2816, %s238, [#allocation4], 704, 704, 44
        $region24: #{tpu_custom_call.1} parent=11 // pred_fallthru
          _
        // Predicated region
        $region25: #{tpu_custom_call.1} parent=11 // pred_check
          %p244 = pneg %p142
        $region26: #{tpu_custom_call.1} parent=11 // pred_check_branch
          %246 = sbr.rel (%p244) target = $region28
        $region27: #{tpu_custom_call.1} parent=11 // pred_region
          _
        $region28: #{tpu_custom_call.1} parent=11 // pred_fallthru
          _
        // Predicated region
        $region29: #{tpu_custom_call.1} parent=11 // pred_check
          %p247 = pneg %p163
        $region30: #{tpu_custom_call.1} parent=11 // pred_check_branch
          %249 = sbr.rel (%p247) target = $region32
        $region31: #{tpu_custom_call.1} parent=11 // pred_region
          %s251 = ssub.s32 11264, 11264
          %252 = vsyncadd [#allocation7], %s251
          %s253 = sshll.u32 [#allocation6], 4
          %s254 = int_to_ptr.vmem [resolvable:$true] %s253
          %259 = dma.hbm_to_vmem [thread:$0]  %s5, 11264, %s254, [#allocation7], 64, 64, 4
        $region32: #{tpu_custom_call.1} parent=11 // pred_fallthru
          _
        // Predicated region
        $region33: #{tpu_custom_call.1} parent=11 // pred_check
          %p260 = pneg %p184
        $region34: #{tpu_custom_call.1} parent=11 // pred_check_branch
          %262 = sbr.rel (%p260) target = $region36
        $region35: #{tpu_custom_call.1} parent=11 // pred_region
          _
        $region36: #{tpu_custom_call.1} parent=11 // pred_fallthru
          _
      $region12: #{tpu_custom_call.1} parent=5 // pred_fallthru
        _
      %p263 = scmp.lt.s32.totalorder %s18, 2
      // Predicated region
      $region37: #{tpu_custom_call.1} parent=5 // pred_check
        %p264 = pneg %p263
      $region38: #{tpu_custom_call.1} parent=5 // pred_check_branch
        %266 = sbr.rel (%p264) target = $region40
      $region39: #{tpu_custom_call.1} parent=5 // pred_region
        // Predicated region
        $region41: #{tpu_custom_call.1} parent=39 // pred_check
          %p267 = pneg %p52
        $region42: #{tpu_custom_call.1} parent=39 // pred_check_branch
          %269 = sbr.rel (%p267) target = $region44
        $region43: #{tpu_custom_call.1} parent=39 // pred_region
          %s270 = smul.u32 16, %s26
          %p271 = scmp.lt.s32.totalorder %s25, 1
          %s272 = scalar_select %p271, %s25, 1
          %p273 = scmp.lt.s32.totalorder %s270, 15
          %s274 = scalar_select %p273, %s270, 15
          %s275 = smul.addr %s272, 16
          %s276 = sadd.s32 %s274, %s275
          %s277 = smul.addr %s276, 4
          %s278 = scalar_lea.vmem %s0, %s277
          %s279 = smul.u32 16, %s26
        $region44: #{tpu_custom_call.1} parent=39 // pred_fallthru
          _
      $region40: #{tpu_custom_call.1} parent=5 // pred_fallthru
        _
      %p280 = scmp.le.s32.totalorder 1, %s18
      %p281 = scmp.lt.s32.totalorder %s18, 3
      %p282 = pnand %p280, %p281
      %p283 = pneg %p282
      // Predicated region
      $region45: #{tpu_custom_call.1} parent=5 // pred_check
        _
      $region46: #{tpu_custom_call.1} parent=5 // pred_check_branch
        %285 = sbr.rel (%p282) target = $region48
      $region47: #{tpu_custom_call.1} parent=5 // pred_region
        %s286 = ssub.s32 %s18, 1
        // Predicated region
        $region49: #{tpu_custom_call.1} parent=47 // pred_check
          %p287 = pneg %p121
        $region50: #{tpu_custom_call.1} parent=47 // pred_check_branch
          %289 = sbr.rel (%p287) target = $region52
        $region51: #{tpu_custom_call.1} parent=47 // pred_region
          %290 = dma.done [#allocation4], 2816
        $region52: #{tpu_custom_call.1} parent=47 // pred_fallthru
          _
        // Predicated region
        $region53: #{tpu_custom_call.1} parent=47 // pred_check
          %p291 = pneg %p163
        $region54: #{tpu_custom_call.1} parent=47 // pred_check_branch
          %293 = sbr.rel (%p291) target = $region56
        $region55: #{tpu_custom_call.1} parent=47 // pred_region
          %294 = dma.done [#allocation7], 11264
        $region56: #{tpu_custom_call.1} parent=47 // pred_fallthru
          _
        %s295 = smul.u32 16, %s28
        %p296 = scmp.lt.s32.totalorder %s27, 1
        %s297 = scalar_select %p296, %s27, 1
        %p298 = scmp.lt.s32.totalorder %s295, 15
        %s299 = scalar_select %p298, %s295, 15
        %s300 = smul.addr %s297, 16
        %s301 = sadd.s32 %s299, %s300
        %s302 = smul.addr %s301, 4
        %s303 = scalar_lea.vmem %s0, %s302
        %p304 = pneg %p58
        %p305 = pneg %p55
        %p306 = pneg %p79
        %p307 = pneg %p76
        %p308 = pneg %p100
        %p309 = pneg %p97
        %p310 = pneg %p121
        %p311 = pneg %p118
        %p312 = pneg %p142
        %p313 = pneg %p139
        %p314 = pneg %p163
        %p315 = pneg %p160
        %p316 = pneg %p184
        %p317 = pneg %p181
        %p318 = pneg %p210
        %p319 = pneg %p207
        %s320 = sand.u32 %s197, 1
        %s321 = scalar_lea.sflag [#allocation5], %s320
        %s322 = sand.u32 %s197, 1
        %s323 = scalar_lea.vmem [#allocation8], %s322
        %s324 = smul.u32 16, %s28
        %p325 = scmp.lt.s32.totalorder %s27, 1
        %s326 = scalar_select %p325, %s27, 1
        %p327 = scmp.lt.s32.totalorder %s324, 15
        %s328 = scalar_select %p327, %s324, 15
        %s329 = smul.addr %s326, 16
        %s330 = sadd.s32 %s328, %s329
        %s331 = smul.addr %s330, 4
        %s332 = scalar_lea.vmem %s0, %s331
        %s333 = smul.u32 16, %s28
        %p335 = scmp.eq.s32.totalorder %s28, 0
        // Predicated region
        $region57: #{tpu_custom_call.1} parent=47 // pred_check
          %p336 = pneg %p335
        $region58: #{tpu_custom_call.1} parent=47 // pred_check_branch
          %338 = sbr.rel (%p336) target = $region60
        $region59: #{tpu_custom_call.1} parent=47 // pred_region
          %339 = vst [vmem:[#allocation2] sm:$0xff] 0.0
          %v340 = vlaneseq
          %vm341 = vcmp.ge.s32.totalorder %v340, 0
          %vm342 = vcmp.lt.s32.totalorder %v340, 384
          %vm343 = vmand %vm341, %vm342
          %344 = vst.msk [vmem:[#allocation2 + $0x8] sm:$0x7] %vm343, 0.0
        $region60: #{tpu_custom_call.1} parent=47 // pred_fallthru
          _
        %s345 = smul.u32 %s28, 128
        %v346 = vld [vmem:[%s332] sm:$0xf]
        %v347 = vld [vmem:[%s332 + $0x4] sm:$0xf]
        %v348 = vld [vmem:[%s332 + $0x8] sm:$0xf]
        %v349 = vld [vmem:[%s332 + $0xc] sm:$0xf]
        %v350 = vld [vmem:[%s332 + $0x10] sm:$0xf]
        %v351 = vld [vmem:[%s332 + $0x14] sm:$0xf]
        %v352 = vld [vmem:[%s332 + $0x18] sm:$0xf]
        %v353 = vld [vmem:[%s332 + $0x1c] sm:$0xf]
        %v354 = vld [vmem:[%s332 + $0x20] sm:$0xf]
        %v355 = vld [vmem:[%s332 + $0x24] sm:$0xf]
        %v356 = vld [vmem:[%s332 + $0x28] sm:$0xf]
        %v357 = vld [vmem:[%s332 + $0x2c] sm:$0xf]
        %v358 = vld [vmem:[%s332 + $0x30] sm:$0xf]
        %v359 = vld [vmem:[%s332 + $0x34] sm:$0xf]
        %v360 = vld [vmem:[%s332 + $0x38] sm:$0xf]
        %v361 = vld [vmem:[%s332 + $0x3c] sm:$0xf]
        %v362 = vld [vmem:[%s1] sm:$0xf]
        %v363 = vld [vmem:[%s1 + $0x4] sm:$0xf]
        %v364 = vld [vmem:[%s1 + $0x8] sm:$0xf]
        %v365 = vld [vmem:[%s1 + $0xc] sm:$0xf]
        %v366 = vld [vmem:[%s2] sm:$0x1]
        %v368 = vlaneseq
        %v369 = vshrl.u32 %v368, 7
        %v370 = vsub.s32 0, %v369
        %v371 = vrot.slane %v366, %v370
        %v389 = vunpack.c.l.b16 %v346
        %v390 = vunpack.c.l.b16 %v347
        %v391 = vunpack.c.l.b16 %v348
        %v392 = vunpack.c.l.b16 %v349
        %v393 = vunpack.c.l.b16 %v350
        %v394 = vunpack.c.l.b16 %v351
        %v395 = vunpack.c.l.b16 %v352
        %v396 = vunpack.c.l.b16 %v353
        %v397 = vunpack.c.l.b16 %v354
        %v398 = vunpack.c.l.b16 %v355
        %v399 = vunpack.c.l.b16 %v356
        %v400 = vunpack.c.l.b16 %v357
        %v401 = vunpack.c.l.b16 %v358
        %v402 = vunpack.c.l.b16 %v359
        %v403 = vunpack.c.l.b16 %v360
        %v404 = vunpack.c.l.b16 %v361
        %v405 = vpack.c.b16 %v390, %v389
        %v406 = vpack.c.b16 %v392, %v391
        %v407 = vpack.c.b16 %v394, %v393
        %v408 = vpack.c.b16 %v396, %v395
        %v409 = vpack.c.b16 %v398, %v397
        %v410 = vpack.c.b16 %v400, %v399
        %v411 = vpack.c.b16 %v402, %v401
        %v412 = vpack.c.b16 %v404, %v403
        %v417 = vunpack.c.l.b16 %v362
        %v418 = vunpack.c.l.b16 %v363
        %v419 = vunpack.c.l.b16 %v364
        %v420 = vunpack.c.l.b16 %v365
        %v421 = vpack.c.b16 %v418, %v417
        %v422 = vpack.c.b16 %v420, %v419
        %vm425 = vcmask 261120
        %v427 = vsel %vm425, %v405, 0
        %v430 = vsel %vm425, %v406, 0
        %v433 = vsel %vm425, %v407, 0
        %v436 = vsel %vm425, %v408, 0
        %v439 = vsel %vm425, %v409, 0
        %v442 = vsel %vm425, %v410, 0
        %v445 = vsel %vm425, %v411, 0
        %v448 = vsel %vm425, %v412, 0
        %450 = vmatprep.subr.bf16.mxu0 0
        %451 = vmatpush1.bf16.msra.mxu0 0
        %452 = vmatprep.subr.bf16.mxu0 0
        %453 = vmatpush1.bf16.msra.mxu0 0
        %454 = vmatprep.subr.bf16.mxu0 0
        %455 = vmatpush1.bf16.msra.mxu0 0
        %456 = vmatprep.subr.bf16.mxu0 0
        %457 = vmatpush1.bf16.msra.mxu0 0
        %458 = vmatprep.subr.bf16.mxu0 0
        %459 = vmatpush1.bf16.msra.mxu0 0
        %460 = vmatprep.subr.bf16.mxu0 0
        %461 = vmatpush1.bf16.msra.mxu0 0
        %462 = vmatprep.subr.bf16.mxu0 0
        %463 = vmatpush1.bf16.msra.mxu0 %v422
        %464 = vmatprep.subr.bf16.mxu0 0
        %465 = vmatpush1.bf16.msra.mxu0 %v421
        %466 = vmatprep.subr.bf16.mxu0 0
        %467 = vmatpush2.bf16.msra.mxu0 0
        %468 = vmatprep.subr.bf16.mxu0 0
        %469 = vmatpush2.bf16.msra.mxu0 0
        %470 = vmatprep.subr.bf16.mxu0 0
        %471 = vmatpush2.bf16.msra.mxu0 0
        %472 = vmatprep.subr.bf16.mxu0 0
        %473 = vmatpush2.bf16.msra.mxu0 0
        %474 = vmatprep.subr.bf16.mxu0 0
        %475 = vmatpush2.bf16.msra.mxu0 0
        %476 = vmatprep.subr.bf16.mxu0 0
        %477 = vmatpush2.bf16.msra.mxu0 0
        %478 = vmatprep.subr.bf16.mxu0 0
        %479 = vmatpush2.bf16.msra.mxu0 0
        %480 = vmatprep.subr.bf16.mxu0 0
        %481 = vmatpush2.bf16.msra.mxu0 0
        %482 = vmatprep.mubr.bf16.mxu0 0
        %483 = vmatmul.mubr.bf16.gmra.mxu0 %v427
        %v484 = vpop.f32.mrf.mxu0
        %v485 = vadd.f32 %v371, %v484
        %v486 = vpop.f32.mrf.mxu0
        %v487 = vpop.f32.mrf.mxu0
        %v488 = vadd.f32 %v371, %v487
        %v489 = vpop.f32.mrf.mxu0
        %490 = vmatprep.mubr.bf16.mxu0 0
        %491 = vmatmul.mubr.bf16.gmra.mxu0 %v430
        %v492 = vpop.f32.mrf.mxu0
        %v493 = vadd.f32 %v371, %v492
        %v494 = vpop.f32.mrf.mxu0
        %v495 = vpop.f32.mrf.mxu0
        %v496 = vadd.f32 %v371, %v495
        %v497 = vpop.f32.mrf.mxu0
        %498 = vmatprep.mubr.bf16.mxu0 0
        %499 = vmatmul.mubr.bf16.gmra.mxu0 %v433
        %v500 = vpop.f32.mrf.mxu0
        %v501 = vadd.f32 %v371, %v500
        %v502 = vpop.f32.mrf.mxu0
        %v503 = vpop.f32.mrf.mxu0
        %v504 = vadd.f32 %v371, %v503
        %v505 = vpop.f32.mrf.mxu0
        %506 = vmatprep.mubr.bf16.mxu0 0
        %507 = vmatmul.mubr.bf16.gmra.mxu0 %v436
        %v508 = vpop.f32.mrf.mxu0
        %v509 = vadd.f32 %v371, %v508
        %v510 = vpop.f32.mrf.mxu0
        %v511 = vpop.f32.mrf.mxu0
        %v512 = vadd.f32 %v371, %v511
        %v513 = vpop.f32.mrf.mxu0
        %514 = vmatprep.mubr.bf16.mxu0 0
        %515 = vmatmul.mubr.bf16.gmra.mxu0 %v439
        %v516 = vpop.f32.mrf.mxu0
        %v517 = vadd.f32 %v371, %v516
        %v518 = vpop.f32.mrf.mxu0
        %v519 = vpop.f32.mrf.mxu0
        %v520 = vadd.f32 %v371, %v519
        %v521 = vpop.f32.mrf.mxu0
        %522 = vmatprep.mubr.bf16.mxu0 0
        %523 = vmatmul.mubr.bf16.gmra.mxu0 %v442
        %v524 = vpop.f32.mrf.mxu0
        %v525 = vadd.f32 %v371, %v524
        %v526 = vpop.f32.mrf.mxu0
        %v527 = vpop.f32.mrf.mxu0
        %v528 = vadd.f32 %v371, %v527
        %v529 = vpop.f32.mrf.mxu0
        %530 = vmatprep.mubr.bf16.mxu0 0
        %531 = vmatmul.mubr.bf16.gmra.mxu0 %v445
        %v532 = vpop.f32.mrf.mxu0
        %v533 = vadd.f32 %v371, %v532
        %v534 = vpop.f32.mrf.mxu0
        %v535 = vpop.f32.mrf.mxu0
        %v536 = vadd.f32 %v371, %v535
        %v537 = vpop.f32.mrf.mxu0
        %538 = vmatprep.mubr.bf16.mxu0 0
        %539 = vmatmul.mubr.bf16.gmra.mxu0 %v448
        %v540 = vpop.f32.mrf.mxu0
        %v541 = vadd.f32 %v371, %v540
        %v542 = vpop.f32.mrf.mxu0
        %v543 = vpop.f32.mrf.mxu0
        %v544 = vadd.f32 %v371, %v543
        %v545 = vpop.f32.mrf.mxu0
        %546 = vdwg.mxu0
        %v547 = vmul.f32 %v485, 0.5
        %v548 = vmul.f32 %v488, 0.5
        %v549 = vmul.f32 %v493, 0.5
        %v550 = vmul.f32 %v496, 0.5
        %v551 = vmul.f32 %v501, 0.5
        %v552 = vmul.f32 %v504, 0.5
        %v553 = vmul.f32 %v509, 0.5
        %v554 = vmul.f32 %v512, 0.5
        %v555 = vmul.f32 %v517, 0.5
        %v556 = vmul.f32 %v520, 0.5
        %v557 = vmul.f32 %v525, 0.5
        %v558 = vmul.f32 %v528, 0.5
        %v559 = vmul.f32 %v533, 0.5
        %v560 = vmul.f32 %v536, 0.5
        %v561 = vmul.f32 %v541, 0.5
        %v562 = vmul.f32 %v544, 0.5
        %v563 = vtanh.pop %v547
        %v564 = vtanh.pop %v548
        %v565 = vtanh.pop %v549
        %v566 = vtanh.pop %v550
        %v567 = vtanh.pop %v551
        %v568 = vtanh.pop %v552
        %v569 = vtanh.pop %v553
        %v570 = vtanh.pop %v554
        %v571 = vtanh.pop %v555
        %v572 = vtanh.pop %v556
        %v573 = vtanh.pop %v557
        %v574 = vtanh.pop %v558
        %v575 = vtanh.pop %v559
        %v576 = vtanh.pop %v560
        %v577 = vtanh.pop %v561
        %v578 = vtanh.pop %v562
        %v579 = vadd.f32 %v563, 1.0
        %v580 = vadd.f32 %v564, 1.0
        %v581 = vadd.f32 %v565, 1.0
        %v582 = vadd.f32 %v566, 1.0
        %v583 = vadd.f32 %v567, 1.0
        %v584 = vadd.f32 %v568, 1.0
        %v585 = vadd.f32 %v569, 1.0
        %v586 = vadd.f32 %v570, 1.0
        %v587 = vadd.f32 %v571, 1.0
        %v588 = vadd.f32 %v572, 1.0
        %v589 = vadd.f32 %v573, 1.0
        %v590 = vadd.f32 %v574, 1.0
        %v591 = vadd.f32 %v575, 1.0
        %v592 = vadd.f32 %v576, 1.0
        %v593 = vadd.f32 %v577, 1.0
        %v594 = vadd.f32 %v578, 1.0
        %v595 = vmul.f32 %v547, %v579
        %v596 = vmul.f32 %v548, %v580
        %v597 = vmul.f32 %v549, %v581
        %v598 = vmul.f32 %v550, %v582
        %v599 = vmul.f32 %v551, %v583
        %v600 = vmul.f32 %v552, %v584
        %v601 = vmul.f32 %v553, %v585
        %v602 = vmul.f32 %v554, %v586
        %v603 = vmul.f32 %v555, %v587
        %v604 = vmul.f32 %v556, %v588
        %v605 = vmul.f32 %v557, %v589
        %v606 = vmul.f32 %v558, %v590
        %v607 = vmul.f32 %v559, %v591
        %v608 = vmul.f32 %v560, %v592
        %v609 = vmul.f32 %v561, %v593
        %v610 = vmul.f32 %v562, %v594
        %v611 = vpack.c.bf16 %v596, %v595
        %v612 = vpack.c.bf16 %v598, %v597
        %v613 = vpack.c.bf16 %v600, %v599
        %v614 = vpack.c.bf16 %v602, %v601
        %v615 = vpack.c.bf16 %v604, %v603
        %v616 = vpack.c.bf16 %v606, %v605
        %v617 = vpack.c.bf16 %v608, %v607
        %v618 = vpack.c.bf16 %v610, %v609
        %v619 = vld [vmem:[#allocation3] sm:$0xff]
        %v620 = vld [vmem:[#allocation3 + $0x8] sm:$0xff]
        %v621 = vld [vmem:[#allocation3 + $0x10] sm:$0xff]
        %v622 = vld [vmem:[#allocation3 + $0x18] sm:$0xff]
        %v623 = vld [vmem:[#allocation3 + $0x20] sm:$0xff]
        %v624 = vld [vmem:[#allocation3 + $0x28] sm:$0xf]
        %v625 = vld [vmem:[#allocation3 + $0x2c] sm:$0xff]
        %v626 = vld [vmem:[#allocation3 + $0x34] sm:$0xff]
        %v627 = vld [vmem:[#allocation3 + $0x3c] sm:$0xff]
        %v628 = vld [vmem:[#allocation3 + $0x44] sm:$0xff]
        %v629 = vld [vmem:[#allocation3 + $0x4c] sm:$0xff]
        %v630 = vld [vmem:[#allocation3 + $0x54] sm:$0xf]
        %v631 = vld [vmem:[#allocation3 + $0x58] sm:$0xff]
        %v632 = vld [vmem:[#allocation3 + $0x60] sm:$0xff]
        %v633 = vld [vmem:[#allocation3 + $0x68] sm:$0xff]
        %v634 = vld [vmem:[#allocation3 + $0x70] sm:$0xff]
        %v635 = vld [vmem:[#allocation3 + $0x78] sm:$0xff]
        %v636 = vld [vmem:[#allocation3 + $0x80] sm:$0xf]
        %v637 = vld [vmem:[#allocation3 + $0x84] sm:$0xff]
        %v638 = vld [vmem:[#allocation3 + $0x8c] sm:$0xff]
        %v639 = vld [vmem:[#allocation3 + $0x94] sm:$0xff]
        %v640 = vld [vmem:[#allocation3 + $0x9c] sm:$0xff]
        %v641 = vld [vmem:[#allocation3 + $0xa4] sm:$0xff]
        %v642 = vld [vmem:[#allocation3 + $0xac] sm:$0xf]
        %v643 = vld [vmem:[%s4] sm:$0xff]
        %v644 = vld [vmem:[%s4 + $0x8] sm:$0x7]
        %v647 = vlaneseq
        %v648 = vshrl.u32 %v647, 7
        %v649 = vsub.s32 0, %v648
        %v650 = vrot.slane %v643, %v649
        %v651 = vlaneseq
        %v652 = vshrl.u32 %v651, 7
        %v653 = vsub.s32 1, %v652
        %v654 = vrot.slane %v643, %v653
        %v655 = vlaneseq
        %v656 = vshrl.u32 %v655, 7
        %v657 = vsub.s32 2, %v656
        %v658 = vrot.slane %v643, %v657
        %v659 = vlaneseq
        %v660 = vshrl.u32 %v659, 7
        %v661 = vsub.s32 3, %v660
        %v662 = vrot.slane %v643, %v661
        %v663 = vlaneseq
        %v664 = vshrl.u32 %v663, 7
        %v665 = vsub.s32 4, %v664
        %v666 = vrot.slane %v643, %v665
        %v667 = vlaneseq
        %v668 = vshrl.u32 %v667, 7
        %v669 = vsub.s32 5, %v668
        %v670 = vrot.slane %v643, %v669
        %v671 = vlaneseq
        %v672 = vshrl.u32 %v671, 7
        %v673 = vsub.s32 6, %v672
        %v674 = vrot.slane %v643, %v673
        %v675 = vlaneseq
        %v676 = vshrl.u32 %v675, 7
        %v677 = vsub.s32 7, %v676
        %v678 = vrot.slane %v643, %v677
        %v679 = vlaneseq
        %v680 = vshrl.u32 %v679, 7
        %v681 = vsub.s32 0, %v680
        %v682 = vrot.slane %v644, %v681
        %v683 = vlaneseq
        %v684 = vshrl.u32 %v683, 7
        %v685 = vsub.s32 1, %v684
        %v686 = vrot.slane %v644, %v685
        %v687 = vlaneseq
        %v688 = vshrl.u32 %v687, 7
        %v689 = vsub.s32 2, %v688
        %v690 = vrot.slane %v644, %v689
        %v726 = vunpack.c.l.b16 %v619
        %v727 = vunpack.c.h.b16 %v619
        %v728 = vunpack.c.l.b16 %v620
        %v729 = vunpack.c.h.b16 %v620
        %v730 = vunpack.c.l.b16 %v621
        %v731 = vunpack.c.h.b16 %v621
        %v732 = vunpack.c.l.b16 %v622
        %v733 = vunpack.c.h.b16 %v622
        %v734 = vunpack.c.l.b16 %v623
        %v735 = vunpack.c.h.b16 %v623
        %v736 = vunpack.c.l.b16 %v624
        %v737 = vunpack.c.l.b16 %v625
        %v738 = vunpack.c.h.b16 %v625
        %v739 = vunpack.c.l.b16 %v626
        %v740 = vunpack.c.h.b16 %v626
        %v741 = vunpack.c.l.b16 %v627
        %v742 = vunpack.c.h.b16 %v627
        %v743 = vunpack.c.l.b16 %v628
        %v744 = vunpack.c.h.b16 %v628
        %v745 = vunpack.c.l.b16 %v629
        %v746 = vunpack.c.h.b16 %v629
        %v747 = vunpack.c.l.b16 %v630
        %v748 = vunpack.c.l.b16 %v631
        %v749 = vunpack.c.h.b16 %v631
        %v750 = vunpack.c.l.b16 %v632
        %v751 = vunpack.c.h.b16 %v632
        %v752 = vunpack.c.l.b16 %v633
        %v753 = vunpack.c.h.b16 %v633
        %v754 = vunpack.c.l.b16 %v634
        %v755 = vunpack.c.h.b16 %v634
        %v756 = vunpack.c.l.b16 %v635
        %v757 = vunpack.c.h.b16 %v635
        %v758 = vunpack.c.l.b16 %v636
        %v759 = vunpack.c.l.b16 %v637
        %v760 = vunpack.c.h.b16 %v637
        %v761 = vunpack.c.l.b16 %v638
        %v762 = vunpack.c.h.b16 %v638
        %v763 = vunpack.c.l.b16 %v639
        %v764 = vunpack.c.h.b16 %v639
        %v765 = vunpack.c.l.b16 %v640
        %v766 = vunpack.c.h.b16 %v640
        %v767 = vunpack.c.l.b16 %v641
        %v768 = vunpack.c.h.b16 %v641
        %v769 = vunpack.c.l.b16 %v642
        %v770 = vpack.c.b16 %v737, %v726
        %v771 = vpack.c.b16 %v738, %v727
        %v772 = vpack.c.b16 %v739, %v728
        %v773 = vpack.c.b16 %v740, %v729
        %v774 = vpack.c.b16 %v741, %v730
        %v775 = vpack.c.b16 %v742, %v731
        %v776 = vpack.c.b16 %v743, %v732
        %v777 = vpack.c.b16 %v744, %v733
        %v778 = vpack.c.b16 %v745, %v734
        %v779 = vpack.c.b16 %v746, %v735
        %v780 = vpack.c.b16 %v747, %v736
        %v781 = vpack.c.b16 %v759, %v748
        %v782 = vpack.c.b16 %v760, %v749
        %v783 = vpack.c.b16 %v761, %v750
        %v784 = vpack.c.b16 %v762, %v751
        %v785 = vpack.c.b16 %v763, %v752
        %v786 = vpack.c.b16 %v764, %v753
        %v787 = vpack.c.b16 %v765, %v754
        %v788 = vpack.c.b16 %v766, %v755
        %v789 = vpack.c.b16 %v767, %v756
        %v790 = vpack.c.b16 %v768, %v757
        %v791 = vpack.c.b16 %v769, %v758
        %v815 = vsel %vm425, %v611, 0
        %v818 = vsel %vm425, %v612, 0
        %v821 = vsel %vm425, %v613, 0
        %v824 = vsel %vm425, %v614, 0
        %v827 = vsel %vm425, %v615, 0
        %v830 = vsel %vm425, %v616, 0
        %v833 = vsel %vm425, %v617, 0
        %v836 = vsel %vm425, %v618, 0
        %838 = vmatprep.subr.bf16.mxu0 0
        %839 = vmatpush1.bf16.msra.mxu0 0
        %840 = vmatprep.subr.bf16.mxu0 0
        %841 = vmatpush1.bf16.msra.mxu0 0
        %842 = vmatprep.subr.bf16.mxu0 0
        %843 = vmatpush1.bf16.msra.mxu0 0
        %844 = vmatprep.subr.bf16.mxu0 0
        %845 = vmatpush1.bf16.msra.mxu0 0
        %846 = vmatprep.subr.bf16.mxu0 0
        %847 = vmatpush1.bf16.msra.mxu0 0
        %848 = vmatprep.subr.bf16.mxu0 0
        %849 = vmatpush1.bf16.msra.mxu0 0
        %850 = vmatprep.subr.bf16.mxu0 %v782
        %851 = vmatpush1.bf16.msra.mxu0 %v781
        %852 = vmatprep.subr.bf16.mxu0 %v771
        %853 = vmatpush1.bf16.msra.mxu0 %v770
        %854 = vmatprep.subr.bf16.mxu0 0
        %855 = vmatpush2.bf16.msra.mxu0 0
        %856 = vmatprep.subr.bf16.mxu0 0
        %857 = vmatpush2.bf16.msra.mxu0 0
        %858 = vmatprep.subr.bf16.mxu0 0
        %859 = vmatpush2.bf16.msra.mxu0 0
        %860 = vmatprep.subr.bf16.mxu0 0
        %861 = vmatpush2.bf16.msra.mxu0 0
        %862 = vmatprep.subr.bf16.mxu0 0
        %863 = vmatpush2.bf16.msra.mxu0 0
        %864 = vmatprep.subr.bf16.mxu0 0
        %865 = vmatpush2.bf16.msra.mxu0 0
        %866 = vmatprep.subr.bf16.mxu0 0
        %867 = vmatpush2.bf16.msra.mxu0 0
        %868 = vmatprep.subr.bf16.mxu0 0
        %869 = vmatpush2.bf16.msra.mxu0 0
        %870 = vmatprep.mubr.bf16.mxu0 0
        %871 = vmatmul.mubr.bf16.gmra.mxu0 %v815
        %v872 = vpop.f32.mrf.mxu0
        %v873 = vadd.f32 %v650, %v872
        %v874 = vpop.f32.mrf.mxu0
        %v875 = vadd.f32 %v654, %v874
        %v876 = vpop.f32.mrf.mxu0
        %v877 = vadd.f32 %v650, %v876
        %v878 = vpop.f32.mrf.mxu0
        %v879 = vadd.f32 %v654, %v878
        %880 = vmatprep.mubr.bf16.mxu0 0
        %881 = vmatmul.mubr.bf16.gmra.mxu0 %v818
        %v882 = vpop.f32.mrf.mxu0
        %v883 = vadd.f32 %v650, %v882
        %v884 = vpop.f32.mrf.mxu0
        %v885 = vadd.f32 %v654, %v884
        %v886 = vpop.f32.mrf.mxu0
        %v887 = vadd.f32 %v650, %v886
        %v888 = vpop.f32.mrf.mxu0
        %v889 = vadd.f32 %v654, %v888
        %890 = vmatprep.mubr.bf16.mxu0 0
        %891 = vmatmul.mubr.bf16.gmra.mxu0 %v821
        %v892 = vpop.f32.mrf.mxu0
        %v893 = vadd.f32 %v650, %v892
        %v894 = vpop.f32.mrf.mxu0
        %v895 = vadd.f32 %v654, %v894
        %v896 = vpop.f32.mrf.mxu0
        %v897 = vadd.f32 %v650, %v896
        %v898 = vpop.f32.mrf.mxu0
        %v899 = vadd.f32 %v654, %v898
        %900 = vmatprep.mubr.bf16.mxu0 0
        %901 = vmatmul.mubr.bf16.gmra.mxu0 %v824
        %v902 = vpop.f32.mrf.mxu0
        %v903 = vadd.f32 %v650, %v902
        %v904 = vpop.f32.mrf.mxu0
        %v905 = vadd.f32 %v654, %v904
        %v906 = vpop.f32.mrf.mxu0
        %v907 = vadd.f32 %v650, %v906
        %v908 = vpop.f32.mrf.mxu0
        %v909 = vadd.f32 %v654, %v908
        %910 = vmatprep.mubr.bf16.mxu0 0
        %911 = vmatmul.mubr.bf16.gmra.mxu0 %v827
        %v912 = vpop.f32.mrf.mxu0
        %v913 = vadd.f32 %v650, %v912
        %v914 = vpop.f32.mrf.mxu0
        %v915 = vadd.f32 %v654, %v914
        %v916 = vpop.f32.mrf.mxu0
        %v917 = vadd.f32 %v650, %v916
        %v918 = vpop.f32.mrf.mxu0
        %v919 = vadd.f32 %v654, %v918
        %920 = vmatprep.mubr.bf16.mxu0 0
        %921 = vmatmul.mubr.bf16.gmra.mxu0 %v830
        %v922 = vpop.f32.mrf.mxu0
        %v923 = vadd.f32 %v650, %v922
        %v924 = vpop.f32.mrf.mxu0
        %v925 = vadd.f32 %v654, %v924
        %v926 = vpop.f32.mrf.mxu0
        %v927 = vadd.f32 %v650, %v926
        %v928 = vpop.f32.mrf.mxu0
        %v929 = vadd.f32 %v654, %v928
        %930 = vmatprep.mubr.bf16.mxu0 0
        %931 = vmatmul.mubr.bf16.gmra.mxu0 %v833
        %v932 = vpop.f32.mrf.mxu0
        %v933 = vadd.f32 %v650, %v932
        %v934 = vpop.f32.mrf.mxu0
        %v935 = vadd.f32 %v654, %v934
        %v936 = vpop.f32.mrf.mxu0
        %v937 = vadd.f32 %v650, %v936
        %v938 = vpop.f32.mrf.mxu0
        %v939 = vadd.f32 %v654, %v938
        %940 = vmatprep.mubr.bf16.mxu0 0
        %941 = vmatmul.mubr.bf16.gmra.mxu0 %v836
        %v942 = vpop.f32.mrf.mxu0
        %v943 = vadd.f32 %v650, %v942
        %v944 = vpop.f32.mrf.mxu0
        %v945 = vadd.f32 %v654, %v944
        %v946 = vpop.f32.mrf.mxu0
        %v947 = vadd.f32 %v650, %v946
        %v948 = vpop.f32.mrf.mxu0
        %v949 = vadd.f32 %v654, %v948
        %950 = vdwg.mxu0
        %951 = vmatprep.subr.bf16.mxu0 0
        %952 = vmatpush1.bf16.msra.mxu0 0
        %953 = vmatprep.subr.bf16.mxu0 0
        %954 = vmatpush1.bf16.msra.mxu0 0
        %955 = vmatprep.subr.bf16.mxu0 0
        %956 = vmatpush1.bf16.msra.mxu0 0
        %957 = vmatprep.subr.bf16.mxu0 0
        %958 = vmatpush1.bf16.msra.mxu0 0
        %959 = vmatprep.subr.bf16.mxu0 0
        %960 = vmatpush1.bf16.msra.mxu0 0
        %961 = vmatprep.subr.bf16.mxu0 0
        %962 = vmatpush1.bf16.msra.mxu0 0
        %963 = vmatprep.subr.bf16.mxu0 %v784
        %964 = vmatpush1.bf16.msra.mxu0 %v783
        %965 = vmatprep.subr.bf16.mxu0 %v773
        %966 = vmatpush1.bf16.msra.mxu0 %v772
        %967 = vmatprep.subr.bf16.mxu0 0
        %968 = vmatpush2.bf16.msra.mxu0 0
        %969 = vmatprep.subr.bf16.mxu0 0
        %970 = vmatpush2.bf16.msra.mxu0 0
        %971 = vmatprep.subr.bf16.mxu0 0
        %972 = vmatpush2.bf16.msra.mxu0 0
        %973 = vmatprep.subr.bf16.mxu0 0
        %974 = vmatpush2.bf16.msra.mxu0 0
        %975 = vmatprep.subr.bf16.mxu0 0
        %976 = vmatpush2.bf16.msra.mxu0 0
        %977 = vmatprep.subr.bf16.mxu0 0
        %978 = vmatpush2.bf16.msra.mxu0 0
        %979 = vmatprep.subr.bf16.mxu0 0
        %980 = vmatpush2.bf16.msra.mxu0 0
        %981 = vmatprep.subr.bf16.mxu0 0
        %982 = vmatpush2.bf16.msra.mxu0 0
        %983 = vmatprep.mubr.bf16.mxu0 0
        %984 = vmatmul.mubr.bf16.gmra.mxu0 %v815
        %v985 = vpop.f32.mrf.mxu0
        %v986 = vadd.f32 %v658, %v985
        %v987 = vpop.f32.mrf.mxu0
        %v988 = vadd.f32 %v662, %v987
        %v989 = vpop.f32.mrf.mxu0
        %v990 = vadd.f32 %v658, %v989
        %v991 = vpop.f32.mrf.mxu0
        %v992 = vadd.f32 %v662, %v991
        %993 = vmatprep.mubr.bf16.mxu0 0
        %994 = vmatmul.mubr.bf16.gmra.mxu0 %v818
        %v995 = vpop.f32.mrf.mxu0
        %v996 = vadd.f32 %v658, %v995
        %v997 = vpop.f32.mrf.mxu0
        %v998 = vadd.f32 %v662, %v997
        %v999 = vpop.f32.mrf.mxu0
        %v1000 = vadd.f32 %v658, %v999
        %v1001 = vpop.f32.mrf.mxu0
        %v1002 = vadd.f32 %v662, %v1001
        %1003 = vmatprep.mubr.bf16.mxu0 0
        %1004 = vmatmul.mubr.bf16.gmra.mxu0 %v821
        %v1005 = vpop.f32.mrf.mxu0
        %v1006 = vadd.f32 %v658, %v1005
        %v1007 = vpop.f32.mrf.mxu0
        %v1008 = vadd.f32 %v662, %v1007
        %v1009 = vpop.f32.mrf.mxu0
        %v1010 = vadd.f32 %v658, %v1009
        %v1011 = vpop.f32.mrf.mxu0
        %v1012 = vadd.f32 %v662, %v1011
        %1013 = vmatprep.mubr.bf16.mxu0 0
        %1014 = vmatmul.mubr.bf16.gmra.mxu0 %v824
        %v1015 = vpop.f32.mrf.mxu0
        %v1016 = vadd.f32 %v658, %v1015
        %v1017 = vpop.f32.mrf.mxu0
        %v1018 = vadd.f32 %v662, %v1017
        %v1019 = vpop.f32.mrf.mxu0
        %v1020 = vadd.f32 %v658, %v1019
        %v1021 = vpop.f32.mrf.mxu0
        %v1022 = vadd.f32 %v662, %v1021
        %1023 = vmatprep.mubr.bf16.mxu0 0
        %1024 = vmatmul.mubr.bf16.gmra.mxu0 %v827
        %v1025 = vpop.f32.mrf.mxu0
        %v1026 = vadd.f32 %v658, %v1025
        %v1027 = vpop.f32.mrf.mxu0
        %v1028 = vadd.f32 %v662, %v1027
        %v1029 = vpop.f32.mrf.mxu0
        %v1030 = vadd.f32 %v658, %v1029
        %v1031 = vpop.f32.mrf.mxu0
        %v1032 = vadd.f32 %v662, %v1031
        %1033 = vmatprep.mubr.bf16.mxu0 0
        %1034 = vmatmul.mubr.bf16.gmra.mxu0 %v830
        %v1035 = vpop.f32.mrf.mxu0
        %v1036 = vadd.f32 %v658, %v1035
        %v1037 = vpop.f32.mrf.mxu0
        %v1038 = vadd.f32 %v662, %v1037
        %v1039 = vpop.f32.mrf.mxu0
        %v1040 = vadd.f32 %v658, %v1039
        %v1041 = vpop.f32.mrf.mxu0
        %v1042 = vadd.f32 %v662, %v1041
        %1043 = vmatprep.mubr.bf16.mxu0 0
        %1044 = vmatmul.mubr.bf16.gmra.mxu0 %v833
        %v1045 = vpop.f32.mrf.mxu0
        %v1046 = vadd.f32 %v658, %v1045
        %v1047 = vpop.f32.mrf.mxu0
        %v1048 = vadd.f32 %v662, %v1047
        %v1049 = vpop.f32.mrf.mxu0
        %v1050 = vadd.f32 %v658, %v1049
        %v1051 = vpop.f32.mrf.mxu0
        %v1052 = vadd.f32 %v662, %v1051
        %1053 = vmatprep.mubr.bf16.mxu0 0
        %1054 = vmatmul.mubr.bf16.gmra.mxu0 %v836
        %v1055 = vpop.f32.mrf.mxu0
        %v1056 = vadd.f32 %v658, %v1055
        %v1057 = vpop.f32.mrf.mxu0
        %v1058 = vadd.f32 %v662, %v1057
        %v1059 = vpop.f32.mrf.mxu0
        %v1060 = vadd.f32 %v658, %v1059
        %v1061 = vpop.f32.mrf.mxu0
        %v1062 = vadd.f32 %v662, %v1061
        %1063 = vdwg.mxu0
        %1064 = vmatprep.subr.bf16.mxu0 0
        %1065 = vmatpush1.bf16.msra.mxu0 0
        %1066 = vmatprep.subr.bf16.mxu0 0
        %1067 = vmatpush1.bf16.msra.mxu0 0
        %1068 = vmatprep.subr.bf16.mxu0 0
        %1069 = vmatpush1.bf16.msra.mxu0 0
        %1070 = vmatprep.subr.bf16.mxu0 0
        %1071 = vmatpush1.bf16.msra.mxu0 0
        %1072 = vmatprep.subr.bf16.mxu0 0
        %1073 = vmatpush1.bf16.msra.mxu0 0
        %1074 = vmatprep.subr.bf16.mxu0 0
        %1075 = vmatpush1.bf16.msra.mxu0 0
        %1076 = vmatprep.subr.bf16.mxu0 %v786
        %1077 = vmatpush1.bf16.msra.mxu0 %v785
        %1078 = vmatprep.subr.bf16.mxu0 %v775
        %1079 = vmatpush1.bf16.msra.mxu0 %v774
        %1080 = vmatprep.subr.bf16.mxu0 0
        %1081 = vmatpush2.bf16.msra.mxu0 0
        %1082 = vmatprep.subr.bf16.mxu0 0
        %1083 = vmatpush2.bf16.msra.mxu0 0
        %1084 = vmatprep.subr.bf16.mxu0 0
        %1085 = vmatpush2.bf16.msra.mxu0 0
        %1086 = vmatprep.subr.bf16.mxu0 0
        %1087 = vmatpush2.bf16.msra.mxu0 0
        %1088 = vmatprep.subr.bf16.mxu0 0
        %1089 = vmatpush2.bf16.msra.mxu0 0
        %1090 = vmatprep.subr.bf16.mxu0 0
        %1091 = vmatpush2.bf16.msra.mxu0 0
        %1092 = vmatprep.subr.bf16.mxu0 0
        %1093 = vmatpush2.bf16.msra.mxu0 0
        %1094 = vmatprep.subr.bf16.mxu0 0
        %1095 = vmatpush2.bf16.msra.mxu0 0
        %1096 = vmatprep.mubr.bf16.mxu0 0
        %1097 = vmatmul.mubr.bf16.gmra.mxu0 %v815
        %v1098 = vpop.f32.mrf.mxu0
        %v1099 = vadd.f32 %v666, %v1098
        %v1100 = vpop.f32.mrf.mxu0
        %v1101 = vadd.f32 %v670, %v1100
        %v1102 = vpop.f32.mrf.mxu0
        %v1103 = vadd.f32 %v666, %v1102
        %v1104 = vpop.f32.mrf.mxu0
        %v1105 = vadd.f32 %v670, %v1104
        %1106 = vmatprep.mubr.bf16.mxu0 0
        %1107 = vmatmul.mubr.bf16.gmra.mxu0 %v818
        %v1108 = vpop.f32.mrf.mxu0
        %v1109 = vadd.f32 %v666, %v1108
        %v1110 = vpop.f32.mrf.mxu0
        %v1111 = vadd.f32 %v670, %v1110
        %v1112 = vpop.f32.mrf.mxu0
        %v1113 = vadd.f32 %v666, %v1112
        %v1114 = vpop.f32.mrf.mxu0
        %v1115 = vadd.f32 %v670, %v1114
        %1116 = vmatprep.mubr.bf16.mxu0 0
        %1117 = vmatmul.mubr.bf16.gmra.mxu0 %v821
        %v1118 = vpop.f32.mrf.mxu0
        %v1119 = vadd.f32 %v666, %v1118
        %v1120 = vpop.f32.mrf.mxu0
        %v1121 = vadd.f32 %v670, %v1120
        %v1122 = vpop.f32.mrf.mxu0
        %v1123 = vadd.f32 %v666, %v1122
        %v1124 = vpop.f32.mrf.mxu0
        %v1125 = vadd.f32 %v670, %v1124
        %1126 = vmatprep.mubr.bf16.mxu0 0
        %1127 = vmatmul.mubr.bf16.gmra.mxu0 %v824
        %v1128 = vpop.f32.mrf.mxu0
        %v1129 = vadd.f32 %v666, %v1128
        %v1130 = vpop.f32.mrf.mxu0
        %v1131 = vadd.f32 %v670, %v1130
        %v1132 = vpop.f32.mrf.mxu0
        %v1133 = vadd.f32 %v666, %v1132
        %v1134 = vpop.f32.mrf.mxu0
        %v1135 = vadd.f32 %v670, %v1134
        %1136 = vmatprep.mubr.bf16.mxu0 0
        %1137 = vmatmul.mubr.bf16.gmra.mxu0 %v827
        %v1138 = vpop.f32.mrf.mxu0
        %v1139 = vadd.f32 %v666, %v1138
        %v1140 = vpop.f32.mrf.mxu0
        %v1141 = vadd.f32 %v670, %v1140
        %v1142 = vpop.f32.mrf.mxu0
        %v1143 = vadd.f32 %v666, %v1142
        %v1144 = vpop.f32.mrf.mxu0
        %v1145 = vadd.f32 %v670, %v1144
        %1146 = vmatprep.mubr.bf16.mxu0 0
        %1147 = vmatmul.mubr.bf16.gmra.mxu0 %v830
        %v1148 = vpop.f32.mrf.mxu0
        %v1149 = vadd.f32 %v666, %v1148
        %v1150 = vpop.f32.mrf.mxu0
        %v1151 = vadd.f32 %v670, %v1150
        %v1152 = vpop.f32.mrf.mxu0
        %v1153 = vadd.f32 %v666, %v1152
        %v1154 = vpop.f32.mrf.mxu0
        %v1155 = vadd.f32 %v670, %v1154
        %1156 = vmatprep.mubr.bf16.mxu0 0
        %1157 = vmatmul.mubr.bf16.gmra.mxu0 %v833
        %v1158 = vpop.f32.mrf.mxu0
        %v1159 = vadd.f32 %v666, %v1158
        %v1160 = vpop.f32.mrf.mxu0
        %v1161 = vadd.f32 %v670, %v1160
        %v1162 = vpop.f32.mrf.mxu0
        %v1163 = vadd.f32 %v666, %v1162
        %v1164 = vpop.f32.mrf.mxu0
        %v1165 = vadd.f32 %v670, %v1164
        %1166 = vmatprep.mubr.bf16.mxu0 0
        %1167 = vmatmul.mubr.bf16.gmra.mxu0 %v836
        %v1168 = vpop.f32.mrf.mxu0
        %v1169 = vadd.f32 %v666, %v1168
        %v1170 = vpop.f32.mrf.mxu0
        %v1171 = vadd.f32 %v670, %v1170
        %v1172 = vpop.f32.mrf.mxu0
        %v1173 = vadd.f32 %v666, %v1172
        %v1174 = vpop.f32.mrf.mxu0
        %v1175 = vadd.f32 %v670, %v1174
        %1176 = vdwg.mxu0
        %1177 = vmatprep.subr.bf16.mxu0 0
        %1178 = vmatpush1.bf16.msra.mxu0 0
        %1179 = vmatprep.subr.bf16.mxu0 0
        %1180 = vmatpush1.bf16.msra.mxu0 0
        %1181 = vmatprep.subr.bf16.mxu0 0
        %1182 = vmatpush1.bf16.msra.mxu0 0
        %1183 = vmatprep.subr.bf16.mxu0 0
        %1184 = vmatpush1.bf16.msra.mxu0 0
        %1185 = vmatprep.subr.bf16.mxu0 0
        %1186 = vmatpush1.bf16.msra.mxu0 0
        %1187 = vmatprep.subr.bf16.mxu0 0
        %1188 = vmatpush1.bf16.msra.mxu0 0
        %1189 = vmatprep.subr.bf16.mxu0 %v788
        %1190 = vmatpush1.bf16.msra.mxu0 %v787
        %1191 = vmatprep.subr.bf16.mxu0 %v777
        %1192 = vmatpush1.bf16.msra.mxu0 %v776
        %1193 = vmatprep.subr.bf16.mxu0 0
        %1194 = vmatpush2.bf16.msra.mxu0 0
        %1195 = vmatprep.subr.bf16.mxu0 0
        %1196 = vmatpush2.bf16.msra.mxu0 0
        %1197 = vmatprep.subr.bf16.mxu0 0
        %1198 = vmatpush2.bf16.msra.mxu0 0
        %1199 = vmatprep.subr.bf16.mxu0 0
        %1200 = vmatpush2.bf16.msra.mxu0 0
        %1201 = vmatprep.subr.bf16.mxu0 0
        %1202 = vmatpush2.bf16.msra.mxu0 0
        %1203 = vmatprep.subr.bf16.mxu0 0
        %1204 = vmatpush2.bf16.msra.mxu0 0
        %1205 = vmatprep.subr.bf16.mxu0 0
        %1206 = vmatpush2.bf16.msra.mxu0 0
        %1207 = vmatprep.subr.bf16.mxu0 0
        %1208 = vmatpush2.bf16.msra.mxu0 0
        %1209 = vmatprep.mubr.bf16.mxu0 0
        %1210 = vmatmul.mubr.bf16.gmra.mxu0 %v815
        %v1211 = vpop.f32.mrf.mxu0
        %v1212 = vadd.f32 %v674, %v1211
        %v1213 = vpop.f32.mrf.mxu0
        %v1214 = vadd.f32 %v678, %v1213
        %v1215 = vpop.f32.mrf.mxu0
        %v1216 = vadd.f32 %v674, %v1215
        %v1217 = vpop.f32.mrf.mxu0
        %v1218 = vadd.f32 %v678, %v1217
        %1219 = vmatprep.mubr.bf16.mxu0 0
        %1220 = vmatmul.mubr.bf16.gmra.mxu0 %v818
        %v1221 = vpop.f32.mrf.mxu0
        %v1222 = vadd.f32 %v674, %v1221
        %v1223 = vpop.f32.mrf.mxu0
        %v1224 = vadd.f32 %v678, %v1223
        %v1225 = vpop.f32.mrf.mxu0
        %v1226 = vadd.f32 %v674, %v1225
        %v1227 = vpop.f32.mrf.mxu0
        %v1228 = vadd.f32 %v678, %v1227
        %1229 = vmatprep.mubr.bf16.mxu0 0
        %1230 = vmatmul.mubr.bf16.gmra.mxu0 %v821
        %v1231 = vpop.f32.mrf.mxu0
        %v1232 = vadd.f32 %v674, %v1231
        %v1233 = vpop.f32.mrf.mxu0
        %v1234 = vadd.f32 %v678, %v1233
        %v1235 = vpop.f32.mrf.mxu0
        %v1236 = vadd.f32 %v674, %v1235
        %v1237 = vpop.f32.mrf.mxu0
        %v1238 = vadd.f32 %v678, %v1237
        %1239 = vmatprep.mubr.bf16.mxu0 0
        %1240 = vmatmul.mubr.bf16.gmra.mxu0 %v824
        %v1241 = vpop.f32.mrf.mxu0
        %v1242 = vadd.f32 %v674, %v1241
        %v1243 = vpop.f32.mrf.mxu0
        %v1244 = vadd.f32 %v678, %v1243
        %v1245 = vpop.f32.mrf.mxu0
        %v1246 = vadd.f32 %v674, %v1245
        %v1247 = vpop.f32.mrf.mxu0
        %v1248 = vadd.f32 %v678, %v1247
        %1249 = vmatprep.mubr.bf16.mxu0 0
        %1250 = vmatmul.mubr.bf16.gmra.mxu0 %v827
        %v1251 = vpop.f32.mrf.mxu0
        %v1252 = vadd.f32 %v674, %v1251
        %v1253 = vpop.f32.mrf.mxu0
        %v1254 = vadd.f32 %v678, %v1253
        %v1255 = vpop.f32.mrf.mxu0
        %v1256 = vadd.f32 %v674, %v1255
        %v1257 = vpop.f32.mrf.mxu0
        %v1258 = vadd.f32 %v678, %v1257
        %1259 = vmatprep.mubr.bf16.mxu0 0
        %1260 = vmatmul.mubr.bf16.gmra.mxu0 %v830
        %v1261 = vpop.f32.mrf.mxu0
        %v1262 = vadd.f32 %v674, %v1261
        %v1263 = vpop.f32.mrf.mxu0
        %v1264 = vadd.f32 %v678, %v1263
        %v1265 = vpop.f32.mrf.mxu0
        %v1266 = vadd.f32 %v674, %v1265
        %v1267 = vpop.f32.mrf.mxu0
        %v1268 = vadd.f32 %v678, %v1267
        %1269 = vmatprep.mubr.bf16.mxu0 0
        %1270 = vmatmul.mubr.bf16.gmra.mxu0 %v833
        %v1271 = vpop.f32.mrf.mxu0
        %v1272 = vadd.f32 %v674, %v1271
        %v1273 = vpop.f32.mrf.mxu0
        %v1274 = vadd.f32 %v678, %v1273
        %v1275 = vpop.f32.mrf.mxu0
        %v1276 = vadd.f32 %v674, %v1275
        %v1277 = vpop.f32.mrf.mxu0
        %v1278 = vadd.f32 %v678, %v1277
        %1279 = vmatprep.mubr.bf16.mxu0 0
        %1280 = vmatmul.mubr.bf16.gmra.mxu0 %v836
        %v1281 = vpop.f32.mrf.mxu0
        %v1282 = vadd.f32 %v674, %v1281
        %v1283 = vpop.f32.mrf.mxu0
        %v1284 = vadd.f32 %v678, %v1283
        %v1285 = vpop.f32.mrf.mxu0
        %v1286 = vadd.f32 %v674, %v1285
        %v1287 = vpop.f32.mrf.mxu0
        %v1288 = vadd.f32 %v678, %v1287
        %1289 = vdwg.mxu0
        %1290 = vmatprep.subr.bf16.mxu0 0
        %1291 = vmatpush1.bf16.msra.mxu0 0
        %1292 = vmatprep.subr.bf16.mxu0 0
        %1293 = vmatpush1.bf16.msra.mxu0 0
        %1294 = vmatprep.subr.bf16.mxu0 0
        %1295 = vmatpush1.bf16.msra.mxu0 0
        %1296 = vmatprep.subr.bf16.mxu0 0
        %1297 = vmatpush1.bf16.msra.mxu0 0
        %1298 = vmatprep.subr.bf16.mxu0 0
        %1299 = vmatpush1.bf16.msra.mxu0 0
        %1300 = vmatprep.subr.bf16.mxu0 0
        %1301 = vmatpush1.bf16.msra.mxu0 0
        %1302 = vmatprep.subr.bf16.mxu0 %v790
        %1303 = vmatpush1.bf16.msra.mxu0 %v789
        %1304 = vmatprep.subr.bf16.mxu0 %v779
        %1305 = vmatpush1.bf16.msra.mxu0 %v778
        %1306 = vmatprep.subr.bf16.mxu0 0
        %1307 = vmatpush2.bf16.msra.mxu0 0
        %1308 = vmatprep.subr.bf16.mxu0 0
        %1309 = vmatpush2.bf16.msra.mxu0 0
        %1310 = vmatprep.subr.bf16.mxu0 0
        %1311 = vmatpush2.bf16.msra.mxu0 0
        %1312 = vmatprep.subr.bf16.mxu0 0
        %1313 = vmatpush2.bf16.msra.mxu0 0
        %1314 = vmatprep.subr.bf16.mxu0 0
        %1315 = vmatpush2.bf16.msra.mxu0 0
        %1316 = vmatprep.subr.bf16.mxu0 0
        %1317 = vmatpush2.bf16.msra.mxu0 0
        %1318 = vmatprep.subr.bf16.mxu0 0
        %1319 = vmatpush2.bf16.msra.mxu0 0
        %1320 = vmatprep.subr.bf16.mxu0 0
        %1321 = vmatpush2.bf16.msra.mxu0 0
        %1322 = vmatprep.mubr.bf16.mxu0 0
        %1323 = vmatmul.mubr.bf16.gmra.mxu0 %v815
        %v1324 = vpop.f32.mrf.mxu0
        %v1325 = vadd.f32 %v682, %v1324
        %v1326 = vpop.f32.mrf.mxu0
        %v1327 = vadd.f32 %v686, %v1326
        %v1328 = vpop.f32.mrf.mxu0
        %v1329 = vadd.f32 %v682, %v1328
        %v1330 = vpop.f32.mrf.mxu0
        %v1331 = vadd.f32 %v686, %v1330
        %1332 = vmatprep.mubr.bf16.mxu0 0
        %1333 = vmatmul.mubr.bf16.gmra.mxu0 %v818
        %v1334 = vpop.f32.mrf.mxu0
        %v1335 = vadd.f32 %v682, %v1334
        %v1336 = vpop.f32.mrf.mxu0
        %v1337 = vadd.f32 %v686, %v1336
        %v1338 = vpop.f32.mrf.mxu0
        %v1339 = vadd.f32 %v682, %v1338
        %v1340 = vpop.f32.mrf.mxu0
        %v1341 = vadd.f32 %v686, %v1340
        %1342 = vmatprep.mubr.bf16.mxu0 0
        %1343 = vmatmul.mubr.bf16.gmra.mxu0 %v821
        %v1344 = vpop.f32.mrf.mxu0
        %v1345 = vadd.f32 %v682, %v1344
        %v1346 = vpop.f32.mrf.mxu0
        %v1347 = vadd.f32 %v686, %v1346
        %v1348 = vpop.f32.mrf.mxu0
        %v1349 = vadd.f32 %v682, %v1348
        %v1350 = vpop.f32.mrf.mxu0
        %v1351 = vadd.f32 %v686, %v1350
        %1352 = vmatprep.mubr.bf16.mxu0 0
        %1353 = vmatmul.mubr.bf16.gmra.mxu0 %v824
        %v1354 = vpop.f32.mrf.mxu0
        %v1355 = vadd.f32 %v682, %v1354
        %v1356 = vpop.f32.mrf.mxu0
        %v1357 = vadd.f32 %v686, %v1356
        %v1358 = vpop.f32.mrf.mxu0
        %v1359 = vadd.f32 %v682, %v1358
        %v1360 = vpop.f32.mrf.mxu0
        %v1361 = vadd.f32 %v686, %v1360
        %1362 = vmatprep.mubr.bf16.mxu0 0
        %1363 = vmatmul.mubr.bf16.gmra.mxu0 %v827
        %v1364 = vpop.f32.mrf.mxu0
        %v1365 = vadd.f32 %v682, %v1364
        %v1366 = vpop.f32.mrf.mxu0
        %v1367 = vadd.f32 %v686, %v1366
        %v1368 = vpop.f32.mrf.mxu0
        %v1369 = vadd.f32 %v682, %v1368
        %v1370 = vpop.f32.mrf.mxu0
        %v1371 = vadd.f32 %v686, %v1370
        %1372 = vmatprep.mubr.bf16.mxu0 0
        %1373 = vmatmul.mubr.bf16.gmra.mxu0 %v830
        %v1374 = vpop.f32.mrf.mxu0
        %v1375 = vadd.f32 %v682, %v1374
        %v1376 = vpop.f32.mrf.mxu0
        %v1377 = vadd.f32 %v686, %v1376
        %v1378 = vpop.f32.mrf.mxu0
        %v1379 = vadd.f32 %v682, %v1378
        %v1380 = vpop.f32.mrf.mxu0
        %v1381 = vadd.f32 %v686, %v1380
        %1382 = vmatprep.mubr.bf16.mxu0 0
        %1383 = vmatmul.mubr.bf16.gmra.mxu0 %v833
        %v1384 = vpop.f32.mrf.mxu0
        %v1385 = vadd.f32 %v682, %v1384
        %v1386 = vpop.f32.mrf.mxu0
        %v1387 = vadd.f32 %v686, %v1386
        %v1388 = vpop.f32.mrf.mxu0
        %v1389 = vadd.f32 %v682, %v1388
        %v1390 = vpop.f32.mrf.mxu0
        %v1391 = vadd.f32 %v686, %v1390
        %1392 = vmatprep.mubr.bf16.mxu0 0
        %1393 = vmatmul.mubr.bf16.gmra.mxu0 %v836
        %v1394 = vpop.f32.mrf.mxu0
        %v1395 = vadd.f32 %v682, %v1394
        %v1396 = vpop.f32.mrf.mxu0
        %v1397 = vadd.f32 %v686, %v1396
        %v1398 = vpop.f32.mrf.mxu0
        %v1399 = vadd.f32 %v682, %v1398
        %v1400 = vpop.f32.mrf.mxu0
        %v1401 = vadd.f32 %v686, %v1400
        %1402 = vdwg.mxu0
        %1403 = vmatprep.subr.bf16.mxu0 0
        %1404 = vmatpush1.bf16.msra.mxu0 0
        %1405 = vmatprep.subr.bf16.mxu0 0
        %1406 = vmatpush1.bf16.msra.mxu0 0
        %1407 = vmatprep.subr.bf16.mxu0 0
        %1408 = vmatpush1.bf16.msra.mxu0 0
        %1409 = vmatprep.subr.bf16.mxu0 0
        %1410 = vmatpush1.bf16.msra.mxu0 0
        %1411 = vmatprep.subr.bf16.mxu0 0
        %1412 = vmatpush1.bf16.msra.mxu0 0
        %1413 = vmatprep.subr.bf16.mxu0 0
        %1414 = vmatpush1.bf16.msra.mxu0 0
        %1415 = vmatprep.subr.bf16.mxu0 0
        %1416 = vmatpush1.bf16.msra.mxu0 %v791
        %1417 = vmatprep.subr.bf16.mxu0 0
        %1418 = vmatpush1.bf16.msra.mxu0 %v780
        %1419 = vmatprep.subr.bf16.mxu0 0
        %1420 = vmatpush2.bf16.msra.mxu0 0
        %1421 = vmatprep.subr.bf16.mxu0 0
        %1422 = vmatpush2.bf16.msra.mxu0 0
        %1423 = vmatprep.subr.bf16.mxu0 0
        %1424 = vmatpush2.bf16.msra.mxu0 0
        %1425 = vmatprep.subr.bf16.mxu0 0
        %1426 = vmatpush2.bf16.msra.mxu0 0
        %1427 = vmatprep.subr.bf16.mxu0 0
        %1428 = vmatpush2.bf16.msra.mxu0 0
        %1429 = vmatprep.subr.bf16.mxu0 0
        %1430 = vmatpush2.bf16.msra.mxu0 0
        %1431 = vmatprep.subr.bf16.mxu0 0
        %1432 = vmatpush2.bf16.msra.mxu0 0
        %1433 = vmatprep.subr.bf16.mxu0 0
        %1434 = vmatpush2.bf16.msra.mxu0 0
        %1435 = vmatprep.mubr.bf16.mxu0 0
        %1436 = vmatmul.mubr.bf16.gmra.mxu0 %v815
        %v1437 = vpop.f32.mrf.mxu0
        %v1438 = vadd.f32 %v690, %v1437
        %v1439 = vpop.f32.mrf.mxu0
        %v1440 = vpop.f32.mrf.mxu0
        %v1441 = vadd.f32 %v690, %v1440
        %v1442 = vpop.f32.mrf.mxu0
        %1443 = vmatprep.mubr.bf16.mxu0 0
        %1444 = vmatmul.mubr.bf16.gmra.mxu0 %v818
        %v1445 = vpop.f32.mrf.mxu0
        %v1446 = vadd.f32 %v690, %v1445
        %v1447 = vpop.f32.mrf.mxu0
        %v1448 = vpop.f32.mrf.mxu0
        %v1449 = vadd.f32 %v690, %v1448
        %v1450 = vpop.f32.mrf.mxu0
        %1451 = vmatprep.mubr.bf16.mxu0 0
        %1452 = vmatmul.mubr.bf16.gmra.mxu0 %v821
        %v1453 = vpop.f32.mrf.mxu0
        %v1454 = vadd.f32 %v690, %v1453
        %v1455 = vpop.f32.mrf.mxu0
        %v1456 = vpop.f32.mrf.mxu0
        %v1457 = vadd.f32 %v690, %v1456
        %v1458 = vpop.f32.mrf.mxu0
        %1459 = vmatprep.mubr.bf16.mxu0 0
        %1460 = vmatmul.mubr.bf16.gmra.mxu0 %v824
        %v1461 = vpop.f32.mrf.mxu0
        %v1462 = vadd.f32 %v690, %v1461
        %v1463 = vpop.f32.mrf.mxu0
        %v1464 = vpop.f32.mrf.mxu0
        %v1465 = vadd.f32 %v690, %v1464
        %v1466 = vpop.f32.mrf.mxu0
        %1467 = vmatprep.mubr.bf16.mxu0 0
        %1468 = vmatmul.mubr.bf16.gmra.mxu0 %v827
        %v1469 = vpop.f32.mrf.mxu0
        %v1470 = vadd.f32 %v690, %v1469
        %v1471 = vpop.f32.mrf.mxu0
        %v1472 = vpop.f32.mrf.mxu0
        %v1473 = vadd.f32 %v690, %v1472
        %v1474 = vpop.f32.mrf.mxu0
        %1475 = vmatprep.mubr.bf16.mxu0 0
        %1476 = vmatmul.mubr.bf16.gmra.mxu0 %v830
        %v1477 = vpop.f32.mrf.mxu0
        %v1478 = vadd.f32 %v690, %v1477
        %v1479 = vpop.f32.mrf.mxu0
        %v1480 = vpop.f32.mrf.mxu0
        %v1481 = vadd.f32 %v690, %v1480
        %v1482 = vpop.f32.mrf.mxu0
        %1483 = vmatprep.mubr.bf16.mxu0 0
        %1484 = vmatmul.mubr.bf16.gmra.mxu0 %v833
        %v1485 = vpop.f32.mrf.mxu0
        %v1486 = vadd.f32 %v690, %v1485
        %v1487 = vpop.f32.mrf.mxu0
        %v1488 = vpop.f32.mrf.mxu0
        %v1489 = vadd.f32 %v690, %v1488
        %v1490 = vpop.f32.mrf.mxu0
        %1491 = vmatprep.mubr.bf16.mxu0 0
        %1492 = vmatmul.mubr.bf16.gmra.mxu0 %v836
        %v1493 = vpop.f32.mrf.mxu0
        %v1494 = vadd.f32 %v690, %v1493
        %v1495 = vpop.f32.mrf.mxu0
        %v1496 = vpop.f32.mrf.mxu0
        %v1497 = vadd.f32 %v690, %v1496
        %v1498 = vpop.f32.mrf.mxu0
        %1499 = vdwg.mxu0
        %v1500 = vmul.f32 %v873, 0.5
        %v1501 = vmul.f32 %v875, 0.5
        %v1502 = vmul.f32 %v986, 0.5
        %v1503 = vmul.f32 %v988, 0.5
        %v1504 = vmul.f32 %v1099, 0.5
        %v1505 = vmul.f32 %v1101, 0.5
        %v1506 = vmul.f32 %v1212, 0.5
        %v1507 = vmul.f32 %v1214, 0.5
        %v1508 = vmul.f32 %v1325, 0.5
        %v1509 = vmul.f32 %v1327, 0.5
        %v1510 = vmul.f32 %v1438, 0.5
        %v1511 = vmul.f32 %v877, 0.5
        %v1512 = vmul.f32 %v879, 0.5
        %v1513 = vmul.f32 %v990, 0.5
        %v1514 = vmul.f32 %v992, 0.5
        %v1515 = vmul.f32 %v1103, 0.5
        %v1516 = vmul.f32 %v1105, 0.5
        %v1517 = vmul.f32 %v1216, 0.5
        %v1518 = vmul.f32 %v1218, 0.5
        %v1519 = vmul.f32 %v1329, 0.5
        %v1520 = vmul.f32 %v1331, 0.5
        %v1521 = vmul.f32 %v1441, 0.5
        %v1522 = vmul.f32 %v883, 0.5
        %v1523 = vmul.f32 %v885, 0.5
        %v1524 = vmul.f32 %v996, 0.5
        %v1525 = vmul.f32 %v998, 0.5
        %v1526 = vmul.f32 %v1109, 0.5
        %v1527 = vmul.f32 %v1111, 0.5
        %v1528 = vmul.f32 %v1222, 0.5
        %v1529 = vmul.f32 %v1224, 0.5
        %v1530 = vmul.f32 %v1335, 0.5
        %v1531 = vmul.f32 %v1337, 0.5
        %v1532 = vmul.f32 %v1446, 0.5
        %v1533 = vmul.f32 %v887, 0.5
        %v1534 = vmul.f32 %v889, 0.5
        %v1535 = vmul.f32 %v1000, 0.5
        %v1536 = vmul.f32 %v1002, 0.5
        %v1537 = vmul.f32 %v1113, 0.5
        %v1538 = vmul.f32 %v1115, 0.5
        %v1539 = vmul.f32 %v1226, 0.5
        %v1540 = vmul.f32 %v1228, 0.5
        %v1541 = vmul.f32 %v1339, 0.5
        %v1542 = vmul.f32 %v1341, 0.5
        %v1543 = vmul.f32 %v1449, 0.5
        %v1544 = vmul.f32 %v893, 0.5
        %v1545 = vmul.f32 %v895, 0.5
        %v1546 = vmul.f32 %v1006, 0.5
        %v1547 = vmul.f32 %v1008, 0.5
        %v1548 = vmul.f32 %v1119, 0.5
        %v1549 = vmul.f32 %v1121, 0.5
        %v1550 = vmul.f32 %v1232, 0.5
        %v1551 = vmul.f32 %v1234, 0.5
        %v1552 = vmul.f32 %v1345, 0.5
        %v1553 = vmul.f32 %v1347, 0.5
        %v1554 = vmul.f32 %v1454, 0.5
        %v1555 = vmul.f32 %v897, 0.5
        %v1556 = vmul.f32 %v899, 0.5
        %v1557 = vmul.f32 %v1010, 0.5
        %v1558 = vmul.f32 %v1012, 0.5
        %v1559 = vmul.f32 %v1123, 0.5
        %v1560 = vmul.f32 %v1125, 0.5
        %v1561 = vmul.f32 %v1236, 0.5
        %v1562 = vmul.f32 %v1238, 0.5
        %v1563 = vmul.f32 %v1349, 0.5
        %v1564 = vmul.f32 %v1351, 0.5
        %v1565 = vmul.f32 %v1457, 0.5
        %v1566 = vmul.f32 %v903, 0.5
        %v1567 = vmul.f32 %v905, 0.5
        %v1568 = vmul.f32 %v1016, 0.5
        %v1569 = vmul.f32 %v1018, 0.5
        %v1570 = vmul.f32 %v1129, 0.5
        %v1571 = vmul.f32 %v1131, 0.5
        %v1572 = vmul.f32 %v1242, 0.5
        %v1573 = vmul.f32 %v1244, 0.5
        %v1574 = vmul.f32 %v1355, 0.5
        %v1575 = vmul.f32 %v1357, 0.5
        %v1576 = vmul.f32 %v1462, 0.5
        %v1577 = vmul.f32 %v907, 0.5
        %v1578 = vmul.f32 %v909, 0.5
        %v1579 = vmul.f32 %v1020, 0.5
        %v1580 = vmul.f32 %v1022, 0.5
        %v1581 = vmul.f32 %v1133, 0.5
        %v1582 = vmul.f32 %v1135, 0.5
        %v1583 = vmul.f32 %v1246, 0.5
        %v1584 = vmul.f32 %v1248, 0.5
        %v1585 = vmul.f32 %v1359, 0.5
        %v1586 = vmul.f32 %v1361, 0.5
        %v1587 = vmul.f32 %v1465, 0.5
        %v1588 = vmul.f32 %v913, 0.5
        %v1589 = vmul.f32 %v915, 0.5
        %v1590 = vmul.f32 %v1026, 0.5
        %v1591 = vmul.f32 %v1028, 0.5
        %v1592 = vmul.f32 %v1139, 0.5
        %v1593 = vmul.f32 %v1141, 0.5
        %v1594 = vmul.f32 %v1252, 0.5
        %v1595 = vmul.f32 %v1254, 0.5
        %v1596 = vmul.f32 %v1365, 0.5
        %v1597 = vmul.f32 %v1367, 0.5
        %v1598 = vmul.f32 %v1470, 0.5
        %v1599 = vmul.f32 %v917, 0.5
        %v1600 = vmul.f32 %v919, 0.5
        %v1601 = vmul.f32 %v1030, 0.5
        %v1602 = vmul.f32 %v1032, 0.5
        %v1603 = vmul.f32 %v1143, 0.5
        %v1604 = vmul.f32 %v1145, 0.5
        %v1605 = vmul.f32 %v1256, 0.5
        %v1606 = vmul.f32 %v1258, 0.5
        %v1607 = vmul.f32 %v1369, 0.5
        %v1608 = vmul.f32 %v1371, 0.5
        %v1609 = vmul.f32 %v1473, 0.5
        %v1610 = vmul.f32 %v923, 0.5
        %v1611 = vmul.f32 %v925, 0.5
        %v1612 = vmul.f32 %v1036, 0.5
        %v1613 = vmul.f32 %v1038, 0.5
        %v1614 = vmul.f32 %v1149, 0.5
        %v1615 = vmul.f32 %v1151, 0.5
        %v1616 = vmul.f32 %v1262, 0.5
        %v1617 = vmul.f32 %v1264, 0.5
        %v1618 = vmul.f32 %v1375, 0.5
        %v1619 = vmul.f32 %v1377, 0.5
        %v1620 = vmul.f32 %v1478, 0.5
        %v1621 = vmul.f32 %v927, 0.5
        %v1622 = vmul.f32 %v929, 0.5
        %v1623 = vmul.f32 %v1040, 0.5
        %v1624 = vmul.f32 %v1042, 0.5
        %v1625 = vmul.f32 %v1153, 0.5
        %v1626 = vmul.f32 %v1155, 0.5
        %v1627 = vmul.f32 %v1266, 0.5
        %v1628 = vmul.f32 %v1268, 0.5
        %v1629 = vmul.f32 %v1379, 0.5
        %v1630 = vmul.f32 %v1381, 0.5
        %v1631 = vmul.f32 %v1481, 0.5
        %v1632 = vmul.f32 %v933, 0.5
        %v1633 = vmul.f32 %v935, 0.5
        %v1634 = vmul.f32 %v1046, 0.5
        %v1635 = vmul.f32 %v1048, 0.5
        %v1636 = vmul.f32 %v1159, 0.5
        %v1637 = vmul.f32 %v1161, 0.5
        %v1638 = vmul.f32 %v1272, 0.5
        %v1639 = vmul.f32 %v1274, 0.5
        %v1640 = vmul.f32 %v1385, 0.5
        %v1641 = vmul.f32 %v1387, 0.5
        %v1642 = vmul.f32 %v1486, 0.5
        %v1643 = vmul.f32 %v937, 0.5
        %v1644 = vmul.f32 %v939, 0.5
        %v1645 = vmul.f32 %v1050, 0.5
        %v1646 = vmul.f32 %v1052, 0.5
        %v1647 = vmul.f32 %v1163, 0.5
        %v1648 = vmul.f32 %v1165, 0.5
        %v1649 = vmul.f32 %v1276, 0.5
        %v1650 = vmul.f32 %v1278, 0.5
        %v1651 = vmul.f32 %v1389, 0.5
        %v1652 = vmul.f32 %v1391, 0.5
        %v1653 = vmul.f32 %v1489, 0.5
        %v1654 = vmul.f32 %v943, 0.5
        %v1655 = vmul.f32 %v945, 0.5
        %v1656 = vmul.f32 %v1056, 0.5
        %v1657 = vmul.f32 %v1058, 0.5
        %v1658 = vmul.f32 %v1169, 0.5
        %v1659 = vmul.f32 %v1171, 0.5
        %v1660 = vmul.f32 %v1282, 0.5
        %v1661 = vmul.f32 %v1284, 0.5
        %v1662 = vmul.f32 %v1395, 0.5
        %v1663 = vmul.f32 %v1397, 0.5
        %v1664 = vmul.f32 %v1494, 0.5
        %v1665 = vmul.f32 %v947, 0.5
        %v1666 = vmul.f32 %v949, 0.5
        %v1667 = vmul.f32 %v1060, 0.5
        %v1668 = vmul.f32 %v1062, 0.5
        %v1669 = vmul.f32 %v1173, 0.5
        %v1670 = vmul.f32 %v1175, 0.5
        %v1671 = vmul.f32 %v1286, 0.5
        %v1672 = vmul.f32 %v1288, 0.5
        %v1673 = vmul.f32 %v1399, 0.5
        %v1674 = vmul.f32 %v1401, 0.5
        %v1675 = vmul.f32 %v1497, 0.5
        %v1676 = vtanh.pop %v1500
        %v1677 = vtanh.pop %v1501
        %v1678 = vtanh.pop %v1502
        %v1679 = vtanh.pop %v1503
        %v1680 = vtanh.pop %v1504
        %v1681 = vtanh.pop %v1505
        %v1682 = vtanh.pop %v1506
        %v1683 = vtanh.pop %v1507
        %v1684 = vtanh.pop %v1508
        %v1685 = vtanh.pop %v1509
        %v1686 = vtanh.pop %v1510
        %v1687 = vtanh.pop %v1511
        %v1688 = vtanh.pop %v1512
        %v1689 = vtanh.pop %v1513
        %v1690 = vtanh.pop %v1514
        %v1691 = vtanh.pop %v1515
        %v1692 = vtanh.pop %v1516
        %v1693 = vtanh.pop %v1517
        %v1694 = vtanh.pop %v1518
        %v1695 = vtanh.pop %v1519
        %v1696 = vtanh.pop %v1520
        %v1697 = vtanh.pop %v1521
        %v1698 = vtanh.pop %v1522
        %v1699 = vtanh.pop %v1523
        %v1700 = vtanh.pop %v1524
        %v1701 = vtanh.pop %v1525
        %v1702 = vtanh.pop %v1526
        %v1703 = vtanh.pop %v1527
        %v1704 = vtanh.pop %v1528
        %v1705 = vtanh.pop %v1529
        %v1706 = vtanh.pop %v1530
        %v1707 = vtanh.pop %v1531
        %v1708 = vtanh.pop %v1532
        %v1709 = vtanh.pop %v1533
        %v1710 = vtanh.pop %v1534
        %v1711 = vtanh.pop %v1535
        %v1712 = vtanh.pop %v1536
        %v1713 = vtanh.pop %v1537
        %v1714 = vtanh.pop %v1538
        %v1715 = vtanh.pop %v1539
        %v1716 = vtanh.pop %v1540
        %v1717 = vtanh.pop %v1541
        %v1718 = vtanh.pop %v1542
        %v1719 = vtanh.pop %v1543
        %v1720 = vtanh.pop %v1544
        %v1721 = vtanh.pop %v1545
        %v1722 = vtanh.pop %v1546
        %v1723 = vtanh.pop %v1547
        %v1724 = vtanh.pop %v1548
        %v1725 = vtanh.pop %v1549
        %v1726 = vtanh.pop %v1550
        %v1727 = vtanh.pop %v1551
        %v1728 = vtanh.pop %v1552
        %v1729 = vtanh.pop %v1553
        %v1730 = vtanh.pop %v1554
        %v1731 = vtanh.pop %v1555
        %v1732 = vtanh.pop %v1556
        %v1733 = vtanh.pop %v1557
        %v1734 = vtanh.pop %v1558
        %v1735 = vtanh.pop %v1559
        %v1736 = vtanh.pop %v1560
        %v1737 = vtanh.pop %v1561
        %v1738 = vtanh.pop %v1562
        %v1739 = vtanh.pop %v1563
        %v1740 = vtanh.pop %v1564
        %v1741 = vtanh.pop %v1565
        %v1742 = vtanh.pop %v1566
        %v1743 = vtanh.pop %v1567
        %v1744 = vtanh.pop %v1568
        %v1745 = vtanh.pop %v1569
        %v1746 = vtanh.pop %v1570
        %v1747 = vtanh.pop %v1571
        %v1748 = vtanh.pop %v1572
        %v1749 = vtanh.pop %v1573
        %v1750 = vtanh.pop %v1574
        %v1751 = vtanh.pop %v1575
        %v1752 = vtanh.pop %v1576
        %v1753 = vtanh.pop %v1577
        %v1754 = vtanh.pop %v1578
        %v1755 = vtanh.pop %v1579
        %v1756 = vtanh.pop %v1580
        %v1757 = vtanh.pop %v1581
        %v1758 = vtanh.pop %v1582
        %v1759 = vtanh.pop %v1583
        %v1760 = vtanh.pop %v1584
        %v1761 = vtanh.pop %v1585
        %v1762 = vtanh.pop %v1586
        %v1763 = vtanh.pop %v1587
        %v1764 = vtanh.pop %v1588
        %v1765 = vtanh.pop %v1589
        %v1766 = vtanh.pop %v1590
        %v1767 = vtanh.pop %v1591
        %v1768 = vtanh.pop %v1592
        %v1769 = vtanh.pop %v1593
        %v1770 = vtanh.pop %v1594
        %v1771 = vtanh.pop %v1595
        %v1772 = vtanh.pop %v1596
        %v1773 = vtanh.pop %v1597
        %v1774 = vtanh.pop %v1598
        %v1775 = vtanh.pop %v1599
        %v1776 = vtanh.pop %v1600
        %v1777 = vtanh.pop %v1601
        %v1778 = vtanh.pop %v1602
        %v1779 = vtanh.pop %v1603
        %v1780 = vtanh.pop %v1604
        %v1781 = vtanh.pop %v1605
        %v1782 = vtanh.pop %v1606
        %v1783 = vtanh.pop %v1607
        %v1784 = vtanh.pop %v1608
        %v1785 = vtanh.pop %v1609
        %v1786 = vtanh.pop %v1610
        %v1787 = vtanh.pop %v1611
        %v1788 = vtanh.pop %v1612
        %v1789 = vtanh.pop %v1613
        %v1790 = vtanh.pop %v1614
        %v1791 = vtanh.pop %v1615
        %v1792 = vtanh.pop %v1616
        %v1793 = vtanh.pop %v1617
        %v1794 = vtanh.pop %v1618
        %v1795 = vtanh.pop %v1619
        %v1796 = vtanh.pop %v1620
        %v1797 = vtanh.pop %v1621
        %v1798 = vtanh.pop %v1622
        %v1799 = vtanh.pop %v1623
        %v1800 = vtanh.pop %v1624
        %v1801 = vtanh.pop %v1625
        %v1802 = vtanh.pop %v1626
        %v1803 = vtanh.pop %v1627
        %v1804 = vtanh.pop %v1628
        %v1805 = vtanh.pop %v1629
        %v1806 = vtanh.pop %v1630
        %v1807 = vtanh.pop %v1631
        %v1808 = vtanh.pop %v1632
        %v1809 = vtanh.pop %v1633
        %v1810 = vtanh.pop %v1634
        %v1811 = vtanh.pop %v1635
        %v1812 = vtanh.pop %v1636
        %v1813 = vtanh.pop %v1637
        %v1814 = vtanh.pop %v1638
        %v1815 = vtanh.pop %v1639
        %v1816 = vtanh.pop %v1640
        %v1817 = vtanh.pop %v1641
        %v1818 = vtanh.pop %v1642
        %v1819 = vtanh.pop %v1643
        %v1820 = vtanh.pop %v1644
        %v1821 = vtanh.pop %v1645
        %v1822 = vtanh.pop %v1646
        %v1823 = vtanh.pop %v1647
        %v1824 = vtanh.pop %v1648
        %v1825 = vtanh.pop %v1649
        %v1826 = vtanh.pop %v1650
        %v1827 = vtanh.pop %v1651
        %v1828 = vtanh.pop %v1652
        %v1829 = vtanh.pop %v1653
        %v1830 = vtanh.pop %v1654
        %v1831 = vtanh.pop %v1655
        %v1832 = vtanh.pop %v1656
        %v1833 = vtanh.pop %v1657
        %v1834 = vtanh.pop %v1658
        %v1835 = vtanh.pop %v1659
        %v1836 = vtanh.pop %v1660
        %v1837 = vtanh.pop %v1661
        %v1838 = vtanh.pop %v1662
        %v1839 = vtanh.pop %v1663
        %v1840 = vtanh.pop %v1664
        %v1841 = vtanh.pop %v1665
        %v1842 = vtanh.pop %v1666
        %v1843 = vtanh.pop %v1667
        %v1844 = vtanh.pop %v1668
        %v1845 = vtanh.pop %v1669
        %v1846 = vtanh.pop %v1670
        %v1847 = vtanh.pop %v1671
        %v1848 = vtanh.pop %v1672
        %v1849 = vtanh.pop %v1673
        %v1850 = vtanh.pop %v1674
        %v1851 = vtanh.pop %v1675
        %v1852 = vadd.f32 %v1676, 1.0
        %v1853 = vadd.f32 %v1677, 1.0
        %v1854 = vadd.f32 %v1678, 1.0
        %v1855 = vadd.f32 %v1679, 1.0
        %v1856 = vadd.f32 %v1680, 1.0
        %v1857 = vadd.f32 %v1681, 1.0
        %v1858 = vadd.f32 %v1682, 1.0
        %v1859 = vadd.f32 %v1683, 1.0
        %v1860 = vadd.f32 %v1684, 1.0
        %v1861 = vadd.f32 %v1685, 1.0
        %v1862 = vadd.f32 %v1686, 1.0
        %v1863 = vadd.f32 %v1687, 1.0
        %v1864 = vadd.f32 %v1688, 1.0
        %v1865 = vadd.f32 %v1689, 1.0
        %v1866 = vadd.f32 %v1690, 1.0
        %v1867 = vadd.f32 %v1691, 1.0
        %v1868 = vadd.f32 %v1692, 1.0
        %v1869 = vadd.f32 %v1693, 1.0
        %v1870 = vadd.f32 %v1694, 1.0
        %v1871 = vadd.f32 %v1695, 1.0
        %v1872 = vadd.f32 %v1696, 1.0
        %v1873 = vadd.f32 %v1697, 1.0
        %v1874 = vadd.f32 %v1698, 1.0
        %v1875 = vadd.f32 %v1699, 1.0
        %v1876 = vadd.f32 %v1700, 1.0
        %v1877 = vadd.f32 %v1701, 1.0
        %v1878 = vadd.f32 %v1702, 1.0
        %v1879 = vadd.f32 %v1703, 1.0
        %v1880 = vadd.f32 %v1704, 1.0
        %v1881 = vadd.f32 %v1705, 1.0
        %v1882 = vadd.f32 %v1706, 1.0
        %v1883 = vadd.f32 %v1707, 1.0
        %v1884 = vadd.f32 %v1708, 1.0
        %v1885 = vadd.f32 %v1709, 1.0
        %v1886 = vadd.f32 %v1710, 1.0
        %v1887 = vadd.f32 %v1711, 1.0
        %v1888 = vadd.f32 %v1712, 1.0
        %v1889 = vadd.f32 %v1713, 1.0
        %v1890 = vadd.f32 %v1714, 1.0
        %v1891 = vadd.f32 %v1715, 1.0
        %v1892 = vadd.f32 %v1716, 1.0
        %v1893 = vadd.f32 %v1717, 1.0
        %v1894 = vadd.f32 %v1718, 1.0
        %v1895 = vadd.f32 %v1719, 1.0
        %v1896 = vadd.f32 %v1720, 1.0
        %v1897 = vadd.f32 %v1721, 1.0
        %v1898 = vadd.f32 %v1722, 1.0
        %v1899 = vadd.f32 %v1723, 1.0
        %v1900 = vadd.f32 %v1724, 1.0
        %v1901 = vadd.f32 %v1725, 1.0
        %v1902 = vadd.f32 %v1726, 1.0
        %v1903 = vadd.f32 %v1727, 1.0
        %v1904 = vadd.f32 %v1728, 1.0
        %v1905 = vadd.f32 %v1729, 1.0
        %v1906 = vadd.f32 %v1730, 1.0
        %v1907 = vadd.f32 %v1731, 1.0
        %v1908 = vadd.f32 %v1732, 1.0
        %v1909 = vadd.f32 %v1733, 1.0
        %v1910 = vadd.f32 %v1734, 1.0
        %v1911 = vadd.f32 %v1735, 1.0
        %v1912 = vadd.f32 %v1736, 1.0
        %v1913 = vadd.f32 %v1737, 1.0
        %v1914 = vadd.f32 %v1738, 1.0
        %v1915 = vadd.f32 %v1739, 1.0
        %v1916 = vadd.f32 %v1740, 1.0
        %v1917 = vadd.f32 %v1741, 1.0
        %v1918 = vadd.f32 %v1742, 1.0
        %v1919 = vadd.f32 %v1743, 1.0
        %v1920 = vadd.f32 %v1744, 1.0
        %v1921 = vadd.f32 %v1745, 1.0
        %v1922 = vadd.f32 %v1746, 1.0
        %v1923 = vadd.f32 %v1747, 1.0
        %v1924 = vadd.f32 %v1748, 1.0
        %v1925 = vadd.f32 %v1749, 1.0
        %v1926 = vadd.f32 %v1750, 1.0
        %v1927 = vadd.f32 %v1751, 1.0
        %v1928 = vadd.f32 %v1752, 1.0
        %v1929 = vadd.f32 %v1753, 1.0
        %v1930 = vadd.f32 %v1754, 1.0
        %v1931 = vadd.f32 %v1755, 1.0
        %v1932 = vadd.f32 %v1756, 1.0
        %v1933 = vadd.f32 %v1757, 1.0
        %v1934 = vadd.f32 %v1758, 1.0
        %v1935 = vadd.f32 %v1759, 1.0
        %v1936 = vadd.f32 %v1760, 1.0
        %v1937 = vadd.f32 %v1761, 1.0
        %v1938 = vadd.f32 %v1762, 1.0
        %v1939 = vadd.f32 %v1763, 1.0
        %v1940 = vadd.f32 %v1764, 1.0
        %v1941 = vadd.f32 %v1765, 1.0
        %v1942 = vadd.f32 %v1766, 1.0
        %v1943 = vadd.f32 %v1767, 1.0
        %v1944 = vadd.f32 %v1768, 1.0
        %v1945 = vadd.f32 %v1769, 1.0
        %v1946 = vadd.f32 %v1770, 1.0
        %v1947 = vadd.f32 %v1771, 1.0
        %v1948 = vadd.f32 %v1772, 1.0
        %v1949 = vadd.f32 %v1773, 1.0
        %v1950 = vadd.f32 %v1774, 1.0
        %v1951 = vadd.f32 %v1775, 1.0
        %v1952 = vadd.f32 %v1776, 1.0
        %v1953 = vadd.f32 %v1777, 1.0
        %v1954 = vadd.f32 %v1778, 1.0
        %v1955 = vadd.f32 %v1779, 1.0
        %v1956 = vadd.f32 %v1780, 1.0
        %v1957 = vadd.f32 %v1781, 1.0
        %v1958 = vadd.f32 %v1782, 1.0
        %v1959 = vadd.f32 %v1783, 1.0
        %v1960 = vadd.f32 %v1784, 1.0
        %v1961 = vadd.f32 %v1785, 1.0
        %v1962 = vadd.f32 %v1786, 1.0
        %v1963 = vadd.f32 %v1787, 1.0
        %v1964 = vadd.f32 %v1788, 1.0
        %v1965 = vadd.f32 %v1789, 1.0
        %v1966 = vadd.f32 %v1790, 1.0
        %v1967 = vadd.f32 %v1791, 1.0
        %v1968 = vadd.f32 %v1792, 1.0
        %v1969 = vadd.f32 %v1793, 1.0
        %v1970 = vadd.f32 %v1794, 1.0
        %v1971 = vadd.f32 %v1795, 1.0
        %v1972 = vadd.f32 %v1796, 1.0
        %v1973 = vadd.f32 %v1797, 1.0
        %v1974 = vadd.f32 %v1798, 1.0
        %v1975 = vadd.f32 %v1799, 1.0
        %v1976 = vadd.f32 %v1800, 1.0
        %v1977 = vadd.f32 %v1801, 1.0
        %v1978 = vadd.f32 %v1802, 1.0
        %v1979 = vadd.f32 %v1803, 1.0
        %v1980 = vadd.f32 %v1804, 1.0
        %v1981 = vadd.f32 %v1805, 1.0
        %v1982 = vadd.f32 %v1806, 1.0
        %v1983 = vadd.f32 %v1807, 1.0
        %v1984 = vadd.f32 %v1808, 1.0
        %v1985 = vadd.f32 %v1809, 1.0
        %v1986 = vadd.f32 %v1810, 1.0
        %v1987 = vadd.f32 %v1811, 1.0
        %v1988 = vadd.f32 %v1812, 1.0
        %v1989 = vadd.f32 %v1813, 1.0
        %v1990 = vadd.f32 %v1814, 1.0
        %v1991 = vadd.f32 %v1815, 1.0
        %v1992 = vadd.f32 %v1816, 1.0
        %v1993 = vadd.f32 %v1817, 1.0
        %v1994 = vadd.f32 %v1818, 1.0
        %v1995 = vadd.f32 %v1819, 1.0
        %v1996 = vadd.f32 %v1820, 1.0
        %v1997 = vadd.f32 %v1821, 1.0
        %v1998 = vadd.f32 %v1822, 1.0
        %v1999 = vadd.f32 %v1823, 1.0
        %v2000 = vadd.f32 %v1824, 1.0
        %v2001 = vadd.f32 %v1825, 1.0
        %v2002 = vadd.f32 %v1826, 1.0
        %v2003 = vadd.f32 %v1827, 1.0
        %v2004 = vadd.f32 %v1828, 1.0
        %v2005 = vadd.f32 %v1829, 1.0
        %v2006 = vadd.f32 %v1830, 1.0
        %v2007 = vadd.f32 %v1831, 1.0
        %v2008 = vadd.f32 %v1832, 1.0
        %v2009 = vadd.f32 %v1833, 1.0
        %v2010 = vadd.f32 %v1834, 1.0
        %v2011 = vadd.f32 %v1835, 1.0
        %v2012 = vadd.f32 %v1836, 1.0
        %v2013 = vadd.f32 %v1837, 1.0
        %v2014 = vadd.f32 %v1838, 1.0
        %v2015 = vadd.f32 %v1839, 1.0
        %v2016 = vadd.f32 %v1840, 1.0
        %v2017 = vadd.f32 %v1841, 1.0
        %v2018 = vadd.f32 %v1842, 1.0
        %v2019 = vadd.f32 %v1843, 1.0
        %v2020 = vadd.f32 %v1844, 1.0
        %v2021 = vadd.f32 %v1845, 1.0
        %v2022 = vadd.f32 %v1846, 1.0
        %v2023 = vadd.f32 %v1847, 1.0
        %v2024 = vadd.f32 %v1848, 1.0
        %v2025 = vadd.f32 %v1849, 1.0
        %v2026 = vadd.f32 %v1850, 1.0
        %v2027 = vadd.f32 %v1851, 1.0
        %v2028 = vmul.f32 %v1500, %v1852
        %v2029 = vmul.f32 %v1501, %v1853
        %v2030 = vmul.f32 %v1502, %v1854
        %v2031 = vmul.f32 %v1503, %v1855
        %v2032 = vmul.f32 %v1504, %v1856
        %v2033 = vmul.f32 %v1505, %v1857
        %v2034 = vmul.f32 %v1506, %v1858
        %v2035 = vmul.f32 %v1507, %v1859
        %v2036 = vmul.f32 %v1508, %v1860
        %v2037 = vmul.f32 %v1509, %v1861
        %v2038 = vmul.f32 %v1510, %v1862
        %v2039 = vmul.f32 %v1511, %v1863
        %v2040 = vmul.f32 %v1512, %v1864
        %v2041 = vmul.f32 %v1513, %v1865
        %v2042 = vmul.f32 %v1514, %v1866
        %v2043 = vmul.f32 %v1515, %v1867
        %v2044 = vmul.f32 %v1516, %v1868
        %v2045 = vmul.f32 %v1517, %v1869
        %v2046 = vmul.f32 %v1518, %v1870
        %v2047 = vmul.f32 %v1519, %v1871
        %v2048 = vmul.f32 %v1520, %v1872
        %v2049 = vmul.f32 %v1521, %v1873
        %v2050 = vmul.f32 %v1522, %v1874
        %v2051 = vmul.f32 %v1523, %v1875
        %v2052 = vmul.f32 %v1524, %v1876
        %v2053 = vmul.f32 %v1525, %v1877
        %v2054 = vmul.f32 %v1526, %v1878
        %v2055 = vmul.f32 %v1527, %v1879
        %v2056 = vmul.f32 %v1528, %v1880
        %v2057 = vmul.f32 %v1529, %v1881
        %v2058 = vmul.f32 %v1530, %v1882
        %v2059 = vmul.f32 %v1531, %v1883
        %v2060 = vmul.f32 %v1532, %v1884
        %v2061 = vmul.f32 %v1533, %v1885
        %v2062 = vmul.f32 %v1534, %v1886
        %v2063 = vmul.f32 %v1535, %v1887
        %v2064 = vmul.f32 %v1536, %v1888
        %v2065 = vmul.f32 %v1537, %v1889
        %v2066 = vmul.f32 %v1538, %v1890
        %v2067 = vmul.f32 %v1539, %v1891
        %v2068 = vmul.f32 %v1540, %v1892
        %v2069 = vmul.f32 %v1541, %v1893
        %v2070 = vmul.f32 %v1542, %v1894
        %v2071 = vmul.f32 %v1543, %v1895
        %v2072 = vmul.f32 %v1544, %v1896
        %v2073 = vmul.f32 %v1545, %v1897
        %v2074 = vmul.f32 %v1546, %v1898
        %v2075 = vmul.f32 %v1547, %v1899
        %v2076 = vmul.f32 %v1548, %v1900
        %v2077 = vmul.f32 %v1549, %v1901
        %v2078 = vmul.f32 %v1550, %v1902
        %v2079 = vmul.f32 %v1551, %v1903
        %v2080 = vmul.f32 %v1552, %v1904
        %v2081 = vmul.f32 %v1553, %v1905
        %v2082 = vmul.f32 %v1554, %v1906
        %v2083 = vmul.f32 %v1555, %v1907
        %v2084 = vmul.f32 %v1556, %v1908
        %v2085 = vmul.f32 %v1557, %v1909
        %v2086 = vmul.f32 %v1558, %v1910
        %v2087 = vmul.f32 %v1559, %v1911
        %v2088 = vmul.f32 %v1560, %v1912
        %v2089 = vmul.f32 %v1561, %v1913
        %v2090 = vmul.f32 %v1562, %v1914
        %v2091 = vmul.f32 %v1563, %v1915
        %v2092 = vmul.f32 %v1564, %v1916
        %v2093 = vmul.f32 %v1565, %v1917
        %v2094 = vmul.f32 %v1566, %v1918
        %v2095 = vmul.f32 %v1567, %v1919
        %v2096 = vmul.f32 %v1568, %v1920
        %v2097 = vmul.f32 %v1569, %v1921
        %v2098 = vmul.f32 %v1570, %v1922
        %v2099 = vmul.f32 %v1571, %v1923
        %v2100 = vmul.f32 %v1572, %v1924
        %v2101 = vmul.f32 %v1573, %v1925
        %v2102 = vmul.f32 %v1574, %v1926
        %v2103 = vmul.f32 %v1575, %v1927
        %v2104 = vmul.f32 %v1576, %v1928
        %v2105 = vmul.f32 %v1577, %v1929
        %v2106 = vmul.f32 %v1578, %v1930
        %v2107 = vmul.f32 %v1579, %v1931
        %v2108 = vmul.f32 %v1580, %v1932
        %v2109 = vmul.f32 %v1581, %v1933
        %v2110 = vmul.f32 %v1582, %v1934
        %v2111 = vmul.f32 %v1583, %v1935
        %v2112 = vmul.f32 %v1584, %v1936
        %v2113 = vmul.f32 %v1585, %v1937
        %v2114 = vmul.f32 %v1586, %v1938
        %v2115 = vmul.f32 %v1587, %v1939
        %v2116 = vmul.f32 %v1588, %v1940
        %v2117 = vmul.f32 %v1589, %v1941
        %v2118 = vmul.f32 %v1590, %v1942
        %v2119 = vmul.f32 %v1591, %v1943
        %v2120 = vmul.f32 %v1592, %v1944
        %v2121 = vmul.f32 %v1593, %v1945
        %v2122 = vmul.f32 %v1594, %v1946
        %v2123 = vmul.f32 %v1595, %v1947
        %v2124 = vmul.f32 %v1596, %v1948
        %v2125 = vmul.f32 %v1597, %v1949
        %v2126 = vmul.f32 %v1598, %v1950
        %v2127 = vmul.f32 %v1599, %v1951
        %v2128 = vmul.f32 %v1600, %v1952
        %v2129 = vmul.f32 %v1601, %v1953
        %v2130 = vmul.f32 %v1602, %v1954
        %v2131 = vmul.f32 %v1603, %v1955
        %v2132 = vmul.f32 %v1604, %v1956
        %v2133 = vmul.f32 %v1605, %v1957
        %v2134 = vmul.f32 %v1606, %v1958
        %v2135 = vmul.f32 %v1607, %v1959
        %v2136 = vmul.f32 %v1608, %v1960
        %v2137 = vmul.f32 %v1609, %v1961
        %v2138 = vmul.f32 %v1610, %v1962
        %v2139 = vmul.f32 %v1611, %v1963
        %v2140 = vmul.f32 %v1612, %v1964
        %v2141 = vmul.f32 %v1613, %v1965
        %v2142 = vmul.f32 %v1614, %v1966
        %v2143 = vmul.f32 %v1615, %v1967
        %v2144 = vmul.f32 %v1616, %v1968
        %v2145 = vmul.f32 %v1617, %v1969
        %v2146 = vmul.f32 %v1618, %v1970
        %v2147 = vmul.f32 %v1619, %v1971
        %v2148 = vmul.f32 %v1620, %v1972
        %v2149 = vmul.f32 %v1621, %v1973
        %v2150 = vmul.f32 %v1622, %v1974
        %v2151 = vmul.f32 %v1623, %v1975
        %v2152 = vmul.f32 %v1624, %v1976
        %v2153 = vmul.f32 %v1625, %v1977
        %v2154 = vmul.f32 %v1626, %v1978
        %v2155 = vmul.f32 %v1627, %v1979
        %v2156 = vmul.f32 %v1628, %v1980
        %v2157 = vmul.f32 %v1629, %v1981
        %v2158 = vmul.f32 %v1630, %v1982
        %v2159 = vmul.f32 %v1631, %v1983
        %v2160 = vmul.f32 %v1632, %v1984
        %v2161 = vmul.f32 %v1633, %v1985
        %v2162 = vmul.f32 %v1634, %v1986
        %v2163 = vmul.f32 %v1635, %v1987
        %v2164 = vmul.f32 %v1636, %v1988
        %v2165 = vmul.f32 %v1637, %v1989
        %v2166 = vmul.f32 %v1638, %v1990
        %v2167 = vmul.f32 %v1639, %v1991
        %v2168 = vmul.f32 %v1640, %v1992
        %v2169 = vmul.f32 %v1641, %v1993
        %v2170 = vmul.f32 %v1642, %v1994
        %v2171 = vmul.f32 %v1643, %v1995
        %v2172 = vmul.f32 %v1644, %v1996
        %v2173 = vmul.f32 %v1645, %v1997
        %v2174 = vmul.f32 %v1646, %v1998
        %v2175 = vmul.f32 %v1647, %v1999
        %v2176 = vmul.f32 %v1648, %v2000
        %v2177 = vmul.f32 %v1649, %v2001
        %v2178 = vmul.f32 %v1650, %v2002
        %v2179 = vmul.f32 %v1651, %v2003
        %v2180 = vmul.f32 %v1652, %v2004
        %v2181 = vmul.f32 %v1653, %v2005
        %v2182 = vmul.f32 %v1654, %v2006
        %v2183 = vmul.f32 %v1655, %v2007
        %v2184 = vmul.f32 %v1656, %v2008
        %v2185 = vmul.f32 %v1657, %v2009
        %v2186 = vmul.f32 %v1658, %v2010
        %v2187 = vmul.f32 %v1659, %v2011
        %v2188 = vmul.f32 %v1660, %v2012
        %v2189 = vmul.f32 %v1661, %v2013
        %v2190 = vmul.f32 %v1662, %v2014
        %v2191 = vmul.f32 %v1663, %v2015
        %v2192 = vmul.f32 %v1664, %v2016
        %v2193 = vmul.f32 %v1665, %v2017
        %v2194 = vmul.f32 %v1666, %v2018
        %v2195 = vmul.f32 %v1667, %v2019
        %v2196 = vmul.f32 %v1668, %v2020
        %v2197 = vmul.f32 %v1669, %v2021
        %v2198 = vmul.f32 %v1670, %v2022
        %v2199 = vmul.f32 %v1671, %v2023
        %v2200 = vmul.f32 %v1672, %v2024
        %v2201 = vmul.f32 %v1673, %v2025
        %v2202 = vmul.f32 %v1674, %v2026
        %v2203 = vmul.f32 %v1675, %v2027
        %s2204 = sadd.s32 %s345, 0
        %v2205 = vlaneseq
        %v2206 = vshrl.u32 %v2205, 7
        %v2207 = vadd.s32 %v2206, 8
        %v2208 = vadd.s32 %v2206, 16
        %v2209 = vadd.s32 %v2206, 24
        %v2210 = vadd.s32 %v2206, 32
        %v2211 = vadd.s32 %v2206, 40
        %v2212 = vadd.s32 %v2206, 48
        %v2213 = vadd.s32 %v2206, 56
        %v2214 = vadd.s32 %v2206, 64
        %v2215 = vadd.s32 %v2206, 72
        %v2216 = vadd.s32 %v2206, 80
        %v2217 = vadd.s32 %v2206, 88
        %v2218 = vadd.s32 %v2206, 96
        %v2219 = vadd.s32 %v2206, 104
        %v2220 = vadd.s32 %v2206, 112
        %v2221 = vadd.s32 %v2206, 120
        %v2222 = vstv %s2204
        %v2223 = vadd.s32 %v2222, %v2206
        %v2224 = vadd.s32 %v2222, %v2207
        %v2225 = vadd.s32 %v2222, %v2208
        %v2226 = vadd.s32 %v2222, %v2209
        %v2227 = vadd.s32 %v2222, %v2210
        %v2228 = vadd.s32 %v2222, %v2211
        %v2229 = vadd.s32 %v2222, %v2212
        %v2230 = vadd.s32 %v2222, %v2213
        %v2231 = vadd.s32 %v2222, %v2214
        %v2232 = vadd.s32 %v2222, %v2215
        %v2233 = vadd.s32 %v2222, %v2216
        %v2234 = vadd.s32 %v2222, %v2217
        %v2235 = vadd.s32 %v2222, %v2218
        %v2236 = vadd.s32 %v2222, %v2219
        %v2237 = vadd.s32 %v2222, %v2220
        %v2238 = vadd.s32 %v2222, %v2221
        %vm2239 = vcmp.lt.s32.totalorder %v2223, 64
        %vm2240 = vcmp.lt.s32.totalorder %v2224, 64
        %vm2241 = vcmp.lt.s32.totalorder %v2225, 64
        %vm2242 = vcmp.lt.s32.totalorder %v2226, 64
        %vm2243 = vcmp.lt.s32.totalorder %v2227, 64
        %vm2244 = vcmp.lt.s32.totalorder %v2228, 64
        %vm2245 = vcmp.lt.s32.totalorder %v2229, 64
        %vm2246 = vcmp.lt.s32.totalorder %v2230, 64
        %vm2247 = vcmp.lt.s32.totalorder %v2231, 64
        %vm2248 = vcmp.lt.s32.totalorder %v2232, 64
        %vm2249 = vcmp.lt.s32.totalorder %v2233, 64
        %vm2250 = vcmp.lt.s32.totalorder %v2234, 64
        %vm2251 = vcmp.lt.s32.totalorder %v2235, 64
        %vm2252 = vcmp.lt.s32.totalorder %v2236, 64
        %vm2253 = vcmp.lt.s32.totalorder %v2237, 64
        %vm2254 = vcmp.lt.s32.totalorder %v2238, 64
        %v2255 = vsel %vm2239, 1, 0
        %v2256 = vsel %vm2240, 1, 0
        %v2257 = vsel %vm2241, 1, 0
        %v2258 = vsel %vm2242, 1, 0
        %v2259 = vsel %vm2243, 1, 0
        %v2260 = vsel %vm2244, 1, 0
        %v2261 = vsel %vm2245, 1, 0
        %v2262 = vsel %vm2246, 1, 0
        %v2263 = vsel %vm2247, 1, 0
        %v2264 = vsel %vm2248, 1, 0
        %v2265 = vsel %vm2249, 1, 0
        %v2266 = vsel %vm2250, 1, 0
        %v2267 = vsel %vm2251, 1, 0
        %v2268 = vsel %vm2252, 1, 0
        %v2269 = vsel %vm2253, 1, 0
        %v2270 = vsel %vm2254, 1, 0
        %vm2271 = vcmp.eq.s32.totalorder %v2255, 1
        %vm2272 = vcmp.eq.s32.totalorder %v2256, 1
        %vm2273 = vcmp.eq.s32.totalorder %v2257, 1
        %vm2274 = vcmp.eq.s32.totalorder %v2258, 1
        %vm2275 = vcmp.eq.s32.totalorder %v2259, 1
        %vm2276 = vcmp.eq.s32.totalorder %v2260, 1
        %vm2277 = vcmp.eq.s32.totalorder %v2261, 1
        %vm2278 = vcmp.eq.s32.totalorder %v2262, 1
        %vm2279 = vcmp.eq.s32.totalorder %v2263, 1
        %vm2280 = vcmp.eq.s32.totalorder %v2264, 1
        %vm2281 = vcmp.eq.s32.totalorder %v2265, 1
        %vm2282 = vcmp.eq.s32.totalorder %v2266, 1
        %vm2283 = vcmp.eq.s32.totalorder %v2267, 1
        %vm2284 = vcmp.eq.s32.totalorder %v2268, 1
        %vm2285 = vcmp.eq.s32.totalorder %v2269, 1
        %vm2286 = vcmp.eq.s32.totalorder %v2270, 1
        %v2287 = vsel %vm2271, %v2028, 0.0
        %v2288 = vsel %vm2271, %v2029, 0.0
        %v2289 = vsel %vm2271, %v2030, 0.0
        %v2290 = vsel %vm2271, %v2031, 0.0
        %v2291 = vsel %vm2271, %v2032, 0.0
        %v2292 = vsel %vm2271, %v2033, 0.0
        %v2293 = vsel %vm2271, %v2034, 0.0
        %v2294 = vsel %vm2271, %v2035, 0.0
        %v2295 = vsel %vm2271, %v2036, 0.0
        %v2296 = vsel %vm2271, %v2037, 0.0
        %v2297 = vsel %vm2271, %v2038, 0.0
        %v2298 = vsel %vm2272, %v2039, 0.0
        %v2299 = vsel %vm2272, %v2040, 0.0
        %v2300 = vsel %vm2272, %v2041, 0.0
        %v2301 = vsel %vm2272, %v2042, 0.0
        %v2302 = vsel %vm2272, %v2043, 0.0
        %v2303 = vsel %vm2272, %v2044, 0.0
        %v2304 = vsel %vm2272, %v2045, 0.0
        %v2305 = vsel %vm2272, %v2046, 0.0
        %v2306 = vsel %vm2272, %v2047, 0.0
        %v2307 = vsel %vm2272, %v2048, 0.0
        %v2308 = vsel %vm2272, %v2049, 0.0
        %v2309 = vsel %vm2273, %v2050, 0.0
        %v2310 = vsel %vm2273, %v2051, 0.0
        %v2311 = vsel %vm2273, %v2052, 0.0
        %v2312 = vsel %vm2273, %v2053, 0.0
        %v2313 = vsel %vm2273, %v2054, 0.0
        %v2314 = vsel %vm2273, %v2055, 0.0
        %v2315 = vsel %vm2273, %v2056, 0.0
        %v2316 = vsel %vm2273, %v2057, 0.0
        %v2317 = vsel %vm2273, %v2058, 0.0
        %v2318 = vsel %vm2273, %v2059, 0.0
        %v2319 = vsel %vm2273, %v2060, 0.0
        %v2320 = vsel %vm2274, %v2061, 0.0
        %v2321 = vsel %vm2274, %v2062, 0.0
        %v2322 = vsel %vm2274, %v2063, 0.0
        %v2323 = vsel %vm2274, %v2064, 0.0
        %v2324 = vsel %vm2274, %v2065, 0.0
        %v2325 = vsel %vm2274, %v2066, 0.0
        %v2326 = vsel %vm2274, %v2067, 0.0
        %v2327 = vsel %vm2274, %v2068, 0.0
        %v2328 = vsel %vm2274, %v2069, 0.0
        %v2329 = vsel %vm2274, %v2070, 0.0
        %v2330 = vsel %vm2274, %v2071, 0.0
        %v2331 = vsel %vm2275, %v2072, 0.0
        %v2332 = vsel %vm2275, %v2073, 0.0
        %v2333 = vsel %vm2275, %v2074, 0.0
        %v2334 = vsel %vm2275, %v2075, 0.0
        %v2335 = vsel %vm2275, %v2076, 0.0
        %v2336 = vsel %vm2275, %v2077, 0.0
        %v2337 = vsel %vm2275, %v2078, 0.0
        %v2338 = vsel %vm2275, %v2079, 0.0
        %v2339 = vsel %vm2275, %v2080, 0.0
        %v2340 = vsel %vm2275, %v2081, 0.0
        %v2341 = vsel %vm2275, %v2082, 0.0
        %v2342 = vsel %vm2276, %v2083, 0.0
        %v2343 = vsel %vm2276, %v2084, 0.0
        %v2344 = vsel %vm2276, %v2085, 0.0
        %v2345 = vsel %vm2276, %v2086, 0.0
        %v2346 = vsel %vm2276, %v2087, 0.0
        %v2347 = vsel %vm2276, %v2088, 0.0
        %v2348 = vsel %vm2276, %v2089, 0.0
        %v2349 = vsel %vm2276, %v2090, 0.0
        %v2350 = vsel %vm2276, %v2091, 0.0
        %v2351 = vsel %vm2276, %v2092, 0.0
        %v2352 = vsel %vm2276, %v2093, 0.0
        %v2353 = vsel %vm2277, %v2094, 0.0
        %v2354 = vsel %vm2277, %v2095, 0.0
        %v2355 = vsel %vm2277, %v2096, 0.0
        %v2356 = vsel %vm2277, %v2097, 0.0
        %v2357 = vsel %vm2277, %v2098, 0.0
        %v2358 = vsel %vm2277, %v2099, 0.0
        %v2359 = vsel %vm2277, %v2100, 0.0
        %v2360 = vsel %vm2277, %v2101, 0.0
        %v2361 = vsel %vm2277, %v2102, 0.0
        %v2362 = vsel %vm2277, %v2103, 0.0
        %v2363 = vsel %vm2277, %v2104, 0.0
        %v2364 = vsel %vm2278, %v2105, 0.0
        %v2365 = vsel %vm2278, %v2106, 0.0
        %v2366 = vsel %vm2278, %v2107, 0.0
        %v2367 = vsel %vm2278, %v2108, 0.0
        %v2368 = vsel %vm2278, %v2109, 0.0
        %v2369 = vsel %vm2278, %v2110, 0.0
        %v2370 = vsel %vm2278, %v2111, 0.0
        %v2371 = vsel %vm2278, %v2112, 0.0
        %v2372 = vsel %vm2278, %v2113, 0.0
        %v2373 = vsel %vm2278, %v2114, 0.0
        %v2374 = vsel %vm2278, %v2115, 0.0
        %v2375 = vsel %vm2279, %v2116, 0.0
        %v2376 = vsel %vm2279, %v2117, 0.0
        %v2377 = vsel %vm2279, %v2118, 0.0
        %v2378 = vsel %vm2279, %v2119, 0.0
        %v2379 = vsel %vm2279, %v2120, 0.0
        %v2380 = vsel %vm2279, %v2121, 0.0
        %v2381 = vsel %vm2279, %v2122, 0.0
        %v2382 = vsel %vm2279, %v2123, 0.0
        %v2383 = vsel %vm2279, %v2124, 0.0
        %v2384 = vsel %vm2279, %v2125, 0.0
        %v2385 = vsel %vm2279, %v2126, 0.0
        %v2386 = vsel %vm2280, %v2127, 0.0
        %v2387 = vsel %vm2280, %v2128, 0.0
        %v2388 = vsel %vm2280, %v2129, 0.0
        %v2389 = vsel %vm2280, %v2130, 0.0
        %v2390 = vsel %vm2280, %v2131, 0.0
        %v2391 = vsel %vm2280, %v2132, 0.0
        %v2392 = vsel %vm2280, %v2133, 0.0
        %v2393 = vsel %vm2280, %v2134, 0.0
        %v2394 = vsel %vm2280, %v2135, 0.0
        %v2395 = vsel %vm2280, %v2136, 0.0
        %v2396 = vsel %vm2280, %v2137, 0.0
        %v2397 = vsel %vm2281, %v2138, 0.0
        %v2398 = vsel %vm2281, %v2139, 0.0
        %v2399 = vsel %vm2281, %v2140, 0.0
        %v2400 = vsel %vm2281, %v2141, 0.0
        %v2401 = vsel %vm2281, %v2142, 0.0
        %v2402 = vsel %vm2281, %v2143, 0.0
        %v2403 = vsel %vm2281, %v2144, 0.0
        %v2404 = vsel %vm2281, %v2145, 0.0
        %v2405 = vsel %vm2281, %v2146, 0.0
        %v2406 = vsel %vm2281, %v2147, 0.0
        %v2407 = vsel %vm2281, %v2148, 0.0
        %v2408 = vsel %vm2282, %v2149, 0.0
        %v2409 = vsel %vm2282, %v2150, 0.0
        %v2410 = vsel %vm2282, %v2151, 0.0
        %v2411 = vsel %vm2282, %v2152, 0.0
        %v2412 = vsel %vm2282, %v2153, 0.0
        %v2413 = vsel %vm2282, %v2154, 0.0
        %v2414 = vsel %vm2282, %v2155, 0.0
        %v2415 = vsel %vm2282, %v2156, 0.0
        %v2416 = vsel %vm2282, %v2157, 0.0
        %v2417 = vsel %vm2282, %v2158, 0.0
        %v2418 = vsel %vm2282, %v2159, 0.0
        %v2419 = vsel %vm2283, %v2160, 0.0
        %v2420 = vsel %vm2283, %v2161, 0.0
        %v2421 = vsel %vm2283, %v2162, 0.0
        %v2422 = vsel %vm2283, %v2163, 0.0
        %v2423 = vsel %vm2283, %v2164, 0.0
        %v2424 = vsel %vm2283, %v2165, 0.0
        %v2425 = vsel %vm2283, %v2166, 0.0
        %v2426 = vsel %vm2283, %v2167, 0.0
        %v2427 = vsel %vm2283, %v2168, 0.0
        %v2428 = vsel %vm2283, %v2169, 0.0
        %v2429 = vsel %vm2283, %v2170, 0.0
        %v2430 = vsel %vm2284, %v2171, 0.0
        %v2431 = vsel %vm2284, %v2172, 0.0
        %v2432 = vsel %vm2284, %v2173, 0.0
        %v2433 = vsel %vm2284, %v2174, 0.0
        %v2434 = vsel %vm2284, %v2175, 0.0
        %v2435 = vsel %vm2284, %v2176, 0.0
        %v2436 = vsel %vm2284, %v2177, 0.0
        %v2437 = vsel %vm2284, %v2178, 0.0
        %v2438 = vsel %vm2284, %v2179, 0.0
        %v2439 = vsel %vm2284, %v2180, 0.0
        %v2440 = vsel %vm2284, %v2181, 0.0
        %v2441 = vsel %vm2285, %v2182, 0.0
        %v2442 = vsel %vm2285, %v2183, 0.0
        %v2443 = vsel %vm2285, %v2184, 0.0
        %v2444 = vsel %vm2285, %v2185, 0.0
        %v2445 = vsel %vm2285, %v2186, 0.0
        %v2446 = vsel %vm2285, %v2187, 0.0
        %v2447 = vsel %vm2285, %v2188, 0.0
        %v2448 = vsel %vm2285, %v2189, 0.0
        %v2449 = vsel %vm2285, %v2190, 0.0
        %v2450 = vsel %vm2285, %v2191, 0.0
        %v2451 = vsel %vm2285, %v2192, 0.0
        %v2452 = vsel %vm2286, %v2193, 0.0
        %v2453 = vsel %vm2286, %v2194, 0.0
        %v2454 = vsel %vm2286, %v2195, 0.0
        %v2455 = vsel %vm2286, %v2196, 0.0
        %v2456 = vsel %vm2286, %v2197, 0.0
        %v2457 = vsel %vm2286, %v2198, 0.0
        %v2458 = vsel %vm2286, %v2199, 0.0
        %v2459 = vsel %vm2286, %v2200, 0.0
        %v2460 = vsel %vm2286, %v2201, 0.0
        %v2461 = vsel %vm2286, %v2202, 0.0
        %v2462 = vsel %vm2286, %v2203, 0.0
        %v2463 = vld [vmem:[#allocation2] sm:$0xff]
        %v2464 = vld [vmem:[#allocation2 + $0x8] sm:$0x7]
        %v2465 = vadd.f32 %v2287, %v2298
        %v2466 = vadd.f32 %v2465, %v2309
        %v2467 = vadd.f32 %v2466, %v2320
        %v2468 = vadd.f32 %v2467, %v2331
        %v2469 = vadd.f32 %v2468, %v2342
        %v2470 = vadd.f32 %v2469, %v2353
        %v2471 = vadd.f32 %v2470, %v2364
        %v2472 = vadd.f32 %v2471, %v2375
        %v2473 = vadd.f32 %v2472, %v2386
        %v2474 = vadd.f32 %v2473, %v2397
        %v2475 = vadd.f32 %v2474, %v2408
        %v2476 = vadd.f32 %v2475, %v2419
        %v2477 = vadd.f32 %v2476, %v2430
        %v2478 = vadd.f32 %v2477, %v2441
        %v2479 = vadd.f32 %v2478, %v2452
        %v2480 = vrot.slane %v2479, 4
        %v2481 = vadd.f32 %v2479, %v2480
        %v2482 = vrot.slane %v2481, 2
        %v2483 = vadd.f32 %v2481, %v2482
        %v2484 = vrot.slane %v2483, 1
        %v2485 = vadd.f32 %v2483, %v2484
        %v2486 = vadd.f32 %v2288, %v2299
        %v2487 = vadd.f32 %v2486, %v2310
        %v2488 = vadd.f32 %v2487, %v2321
        %v2489 = vadd.f32 %v2488, %v2332
        %v2490 = vadd.f32 %v2489, %v2343
        %v2491 = vadd.f32 %v2490, %v2354
        %v2492 = vadd.f32 %v2491, %v2365
        %v2493 = vadd.f32 %v2492, %v2376
        %v2494 = vadd.f32 %v2493, %v2387
        %v2495 = vadd.f32 %v2494, %v2398
        %v2496 = vadd.f32 %v2495, %v2409
        %v2497 = vadd.f32 %v2496, %v2420
        %v2498 = vadd.f32 %v2497, %v2431
        %v2499 = vadd.f32 %v2498, %v2442
        %v2500 = vadd.f32 %v2499, %v2453
        %v2501 = vrot.slane %v2500, 4
        %v2502 = vadd.f32 %v2500, %v2501
        %v2503 = vrot.slane %v2502, 2
        %v2504 = vadd.f32 %v2502, %v2503
        %v2505 = vrot.slane %v2504, 1
        %v2506 = vadd.f32 %v2504, %v2505
        %v2507 = vadd.f32 %v2289, %v2300
        %v2508 = vadd.f32 %v2507, %v2311
        %v2509 = vadd.f32 %v2508, %v2322
        %v2510 = vadd.f32 %v2509, %v2333
        %v2511 = vadd.f32 %v2510, %v2344
        %v2512 = vadd.f32 %v2511, %v2355
        %v2513 = vadd.f32 %v2512, %v2366
        %v2514 = vadd.f32 %v2513, %v2377
        %v2515 = vadd.f32 %v2514, %v2388
        %v2516 = vadd.f32 %v2515, %v2399
        %v2517 = vadd.f32 %v2516, %v2410
        %v2518 = vadd.f32 %v2517, %v2421
        %v2519 = vadd.f32 %v2518, %v2432
        %v2520 = vadd.f32 %v2519, %v2443
        %v2521 = vadd.f32 %v2520, %v2454
        %v2522 = vrot.slane %v2521, 4
        %v2523 = vadd.f32 %v2521, %v2522
        %v2524 = vrot.slane %v2523, 2
        %v2525 = vadd.f32 %v2523, %v2524
        %v2526 = vrot.slane %v2525, 1
        %v2527 = vadd.f32 %v2525, %v2526
        %v2528 = vadd.f32 %v2290, %v2301
        %v2529 = vadd.f32 %v2528, %v2312
        %v2530 = vadd.f32 %v2529, %v2323
        %v2531 = vadd.f32 %v2530, %v2334
        %v2532 = vadd.f32 %v2531, %v2345
        %v2533 = vadd.f32 %v2532, %v2356
        %v2534 = vadd.f32 %v2533, %v2367
        %v2535 = vadd.f32 %v2534, %v2378
        %v2536 = vadd.f32 %v2535, %v2389
        %v2537 = vadd.f32 %v2536, %v2400
        %v2538 = vadd.f32 %v2537, %v2411
        %v2539 = vadd.f32 %v2538, %v2422
        %v2540 = vadd.f32 %v2539, %v2433
        %v2541 = vadd.f32 %v2540, %v2444
        %v2542 = vadd.f32 %v2541, %v2455
        %v2543 = vrot.slane %v2542, 4
        %v2544 = vadd.f32 %v2542, %v2543
        %v2545 = vrot.slane %v2544, 2
        %v2546 = vadd.f32 %v2544, %v2545
        %v2547 = vrot.slane %v2546, 1
        %v2548 = vadd.f32 %v2546, %v2547
        %v2549 = vadd.f32 %v2291, %v2302
        %v2550 = vadd.f32 %v2549, %v2313
        %v2551 = vadd.f32 %v2550, %v2324
        %v2552 = vadd.f32 %v2551, %v2335
        %v2553 = vadd.f32 %v2552, %v2346
        %v2554 = vadd.f32 %v2553, %v2357
        %v2555 = vadd.f32 %v2554, %v2368
        %v2556 = vadd.f32 %v2555, %v2379
        %v2557 = vadd.f32 %v2556, %v2390
        %v2558 = vadd.f32 %v2557, %v2401
        %v2559 = vadd.f32 %v2558, %v2412
        %v2560 = vadd.f32 %v2559, %v2423
        %v2561 = vadd.f32 %v2560, %v2434
        %v2562 = vadd.f32 %v2561, %v2445
        %v2563 = vadd.f32 %v2562, %v2456
        %v2564 = vrot.slane %v2563, 4
        %v2565 = vadd.f32 %v2563, %v2564
        %v2566 = vrot.slane %v2565, 2
        %v2567 = vadd.f32 %v2565, %v2566
        %v2568 = vrot.slane %v2567, 1
        %v2569 = vadd.f32 %v2567, %v2568
        %v2570 = vadd.f32 %v2292, %v2303
        %v2571 = vadd.f32 %v2570, %v2314
        %v2572 = vadd.f32 %v2571, %v2325
        %v2573 = vadd.f32 %v2572, %v2336
        %v2574 = vadd.f32 %v2573, %v2347
        %v2575 = vadd.f32 %v2574, %v2358
        %v2576 = vadd.f32 %v2575, %v2369
        %v2577 = vadd.f32 %v2576, %v2380
        %v2578 = vadd.f32 %v2577, %v2391
        %v2579 = vadd.f32 %v2578, %v2402
        %v2580 = vadd.f32 %v2579, %v2413
        %v2581 = vadd.f32 %v2580, %v2424
        %v2582 = vadd.f32 %v2581, %v2435
        %v2583 = vadd.f32 %v2582, %v2446
        %v2584 = vadd.f32 %v2583, %v2457
        %v2585 = vrot.slane %v2584, 4
        %v2586 = vadd.f32 %v2584, %v2585
        %v2587 = vrot.slane %v2586, 2
        %v2588 = vadd.f32 %v2586, %v2587
        %v2589 = vrot.slane %v2588, 1
        %v2590 = vadd.f32 %v2588, %v2589
        %v2591 = vadd.f32 %v2293, %v2304
        %v2592 = vadd.f32 %v2591, %v2315
        %v2593 = vadd.f32 %v2592, %v2326
        %v2594 = vadd.f32 %v2593, %v2337
        %v2595 = vadd.f32 %v2594, %v2348
        %v2596 = vadd.f32 %v2595, %v2359
        %v2597 = vadd.f32 %v2596, %v2370
        %v2598 = vadd.f32 %v2597, %v2381
        %v2599 = vadd.f32 %v2598, %v2392
        %v2600 = vadd.f32 %v2599, %v2403
        %v2601 = vadd.f32 %v2600, %v2414
        %v2602 = vadd.f32 %v2601, %v2425
        %v2603 = vadd.f32 %v2602, %v2436
        %v2604 = vadd.f32 %v2603, %v2447
        %v2605 = vadd.f32 %v2604, %v2458
        %v2606 = vrot.slane %v2605, 4
        %v2607 = vadd.f32 %v2605, %v2606
        %v2608 = vrot.slane %v2607, 2
        %v2609 = vadd.f32 %v2607, %v2608
        %v2610 = vrot.slane %v2609, 1
        %v2611 = vadd.f32 %v2609, %v2610
        %v2612 = vadd.f32 %v2294, %v2305
        %v2613 = vadd.f32 %v2612, %v2316
        %v2614 = vadd.f32 %v2613, %v2327
        %v2615 = vadd.f32 %v2614, %v2338
        %v2616 = vadd.f32 %v2615, %v2349
        %v2617 = vadd.f32 %v2616, %v2360
        %v2618 = vadd.f32 %v2617, %v2371
        %v2619 = vadd.f32 %v2618, %v2382
        %v2620 = vadd.f32 %v2619, %v2393
        %v2621 = vadd.f32 %v2620, %v2404
        %v2622 = vadd.f32 %v2621, %v2415
        %v2623 = vadd.f32 %v2622, %v2426
        %v2624 = vadd.f32 %v2623, %v2437
        %v2625 = vadd.f32 %v2624, %v2448
        %v2626 = vadd.f32 %v2625, %v2459
        %v2627 = vrot.slane %v2626, 4
        %v2628 = vadd.f32 %v2626, %v2627
        %v2629 = vrot.slane %v2628, 2
        %v2630 = vadd.f32 %v2628, %v2629
        %v2631 = vrot.slane %v2630, 1
        %v2632 = vadd.f32 %v2630, %v2631
        %v2633 = vadd.f32 %v2295, %v2306
        %v2634 = vadd.f32 %v2633, %v2317
        %v2635 = vadd.f32 %v2634, %v2328
        %v2636 = vadd.f32 %v2635, %v2339
        %v2637 = vadd.f32 %v2636, %v2350
        %v2638 = vadd.f32 %v2637, %v2361
        %v2639 = vadd.f32 %v2638, %v2372
        %v2640 = vadd.f32 %v2639, %v2383
        %v2641 = vadd.f32 %v2640, %v2394
        %v2642 = vadd.f32 %v2641, %v2405
        %v2643 = vadd.f32 %v2642, %v2416
        %v2644 = vadd.f32 %v2643, %v2427
        %v2645 = vadd.f32 %v2644, %v2438
        %v2646 = vadd.f32 %v2645, %v2449
        %v2647 = vadd.f32 %v2646, %v2460
        %v2648 = vrot.slane %v2647, 4
        %v2649 = vadd.f32 %v2647, %v2648
        %v2650 = vrot.slane %v2649, 2
        %v2651 = vadd.f32 %v2649, %v2650
        %v2652 = vrot.slane %v2651, 1
        %v2653 = vadd.f32 %v2651, %v2652
        %v2654 = vadd.f32 %v2296, %v2307
        %v2655 = vadd.f32 %v2654, %v2318
        %v2656 = vadd.f32 %v2655, %v2329
        %v2657 = vadd.f32 %v2656, %v2340
        %v2658 = vadd.f32 %v2657, %v2351
        %v2659 = vadd.f32 %v2658, %v2362
        %v2660 = vadd.f32 %v2659, %v2373
        %v2661 = vadd.f32 %v2660, %v2384
        %v2662 = vadd.f32 %v2661, %v2395
        %v2663 = vadd.f32 %v2662, %v2406
        %v2664 = vadd.f32 %v2663, %v2417
        %v2665 = vadd.f32 %v2664, %v2428
        %v2666 = vadd.f32 %v2665, %v2439
        %v2667 = vadd.f32 %v2666, %v2450
        %v2668 = vadd.f32 %v2667, %v2461
        %v2669 = vrot.slane %v2668, 4
        %v2670 = vadd.f32 %v2668, %v2669
        %v2671 = vrot.slane %v2670, 2
        %v2672 = vadd.f32 %v2670, %v2671
        %v2673 = vrot.slane %v2672, 1
        %v2674 = vadd.f32 %v2672, %v2673
        %v2675 = vadd.f32 %v2297, %v2308
        %v2676 = vadd.f32 %v2675, %v2319
        %v2677 = vadd.f32 %v2676, %v2330
        %v2678 = vadd.f32 %v2677, %v2341
        %v2679 = vadd.f32 %v2678, %v2352
        %v2680 = vadd.f32 %v2679, %v2363
        %v2681 = vadd.f32 %v2680, %v2374
        %v2682 = vadd.f32 %v2681, %v2385
        %v2683 = vadd.f32 %v2682, %v2396
        %v2684 = vadd.f32 %v2683, %v2407
        %v2685 = vadd.f32 %v2684, %v2418
        %v2686 = vadd.f32 %v2685, %v2429
        %v2687 = vadd.f32 %v2686, %v2440
        %v2688 = vadd.f32 %v2687, %v2451
        %v2689 = vadd.f32 %v2688, %v2462
        %v2690 = vrot.slane %v2689, 4
        %v2691 = vadd.f32 %v2689, %v2690
        %v2692 = vrot.slane %v2691, 2
        %v2693 = vadd.f32 %v2691, %v2692
        %v2694 = vrot.slane %v2693, 1
        %v2695 = vadd.f32 %v2693, %v2694
        %v2707 = vcombine.low %v2485, %v2506
        %v2708 = vcombine.low %v2527, %v2548
        %v2709 = vcombine.low %v2569, %v2590
        %v2710 = vcombine.low %v2611, %v2632
        %v2712 = vunpack.c.l.s4 1966171168
        %v2713 = vunpack.c.0.s8 %v2712
        %v2714 = vlaneseq
        %v2715 = vshrl.u32 %v2714, 7
        %v2716 = vsub.s32 %v2713, %v2715
        %v2717 = vrot.slane %v2707, %v2716
        %v2719 = vunpack.c.l.s4 1966171168
        %v2720 = vunpack.c.0.s8 %v2719
        %v2721 = vlaneseq
        %v2722 = vshrl.u32 %v2721, 7
        %v2723 = vsub.s32 %v2720, %v2722
        %v2724 = vrot.slane %v2708, %v2723
        %v2726 = vunpack.c.l.s4 1966171168
        %v2727 = vunpack.c.0.s8 %v2726
        %v2728 = vlaneseq
        %v2729 = vshrl.u32 %v2728, 7
        %v2730 = vsub.s32 %v2727, %v2729
        %v2731 = vrot.slane %v2709, %v2730
        %v2733 = vunpack.c.l.s4 1966171168
        %v2734 = vunpack.c.0.s8 %v2733
        %v2735 = vlaneseq
        %v2736 = vshrl.u32 %v2735, 7
        %v2737 = vsub.s32 %v2734, %v2736
        %v2738 = vrot.slane %v2710, %v2737
        %v2739 = vcombine.low %v2717, %v2724
        %v2740 = vcombine.low %v2731, %v2738
        %v2742 = vunpack.c.l.s4 1966171168
        %v2743 = vunpack.c.0.s8 %v2742
        %v2744 = vlaneseq
        %v2745 = vshrl.u32 %v2744, 7
        %v2746 = vsub.s32 %v2743, %v2745
        %v2747 = vrot.slane %v2739, %v2746
        %v2749 = vunpack.c.l.s4 1966171168
        %v2750 = vunpack.c.0.s8 %v2749
        %v2751 = vlaneseq
        %v2752 = vshrl.u32 %v2751, 7
        %v2753 = vsub.s32 %v2750, %v2752
        %v2754 = vrot.slane %v2740, %v2753
        %v2755 = vcombine.low %v2747, %v2754
        %v2756 = vcombine.low %v2653, %v2674
        %v2758 = vunpack.c.l.s4 1966171168
        %v2759 = vunpack.c.0.s8 %v2758
        %v2760 = vlaneseq
        %v2761 = vshrl.u32 %v2760, 7
        %v2762 = vsub.s32 %v2759, %v2761
        %v2763 = vrot.slane %v2756, %v2762
        %v2765 = vunpack.c.l.s4 1966171168
        %v2766 = vunpack.c.0.s8 %v2765
        %v2767 = vlaneseq
        %v2768 = vshrl.u32 %v2767, 7
        %v2769 = vsub.s32 %v2766, %v2768
        %v2770 = vrot.slane %v2695, %v2769
        %v2771 = vcombine.low %v2763, %v2770
        %v2773 = vunpack.c.l.s4 1966171168
        %v2774 = vunpack.c.0.s8 %v2773
        %v2775 = vlaneseq
        %v2776 = vshrl.u32 %v2775, 7
        %v2777 = vsub.s32 %v2774, %v2776
        %v2778 = vrot.slane %v2771, %v2777
        %v2781 = vadd.f32 %v2463, %v2755
        %v2782 = vadd.f32 %v2464, %v2778
        %2783 = vst [vmem:[#allocation2] sm:$0xff] %v2781
        %v2784 = vlaneseq
        %vm2785 = vcmp.ge.s32.totalorder %v2784, 0
        %vm2786 = vcmp.lt.s32.totalorder %v2784, 384
        %vm2787 = vmand %vm2785, %vm2786
        %2788 = vst.msk [vmem:[#allocation2 + $0x8] sm:$0x7] %vm2787, %v2782
        // Predicated region
        $region61: #{tpu_custom_call.1} parent=47 // pred_check
          %p2789 = pneg %p335
        $region62: #{tpu_custom_call.1} parent=47 // pred_check_branch
          %2791 = sbr.rel (%p2789) target = $region64
        $region63: #{tpu_custom_call.1} parent=47 // pred_region
          %v2792 = vld [vmem:[#allocation2] sm:$0xff]
          %v2793 = vld [vmem:[#allocation2 + $0x8] sm:$0x7]
          %v2794 = vmul.f32 %v2792, 0.015625
          %v2795 = vmul.f32 %v2793, 0.015625
          %v2798 = vlaneseq
          %v2799 = vshrl.u32 %v2798, 7
          %v2800 = vsub.s32 0, %v2799
          %v2801 = vrot.slane %v2794, %v2800
          %v2802 = vlaneseq
          %v2803 = vshrl.u32 %v2802, 7
          %v2804 = vsub.s32 1, %v2803
          %v2805 = vrot.slane %v2794, %v2804
          %v2806 = vlaneseq
          %v2807 = vshrl.u32 %v2806, 7
          %v2808 = vsub.s32 2, %v2807
          %v2809 = vrot.slane %v2794, %v2808
          %v2810 = vlaneseq
          %v2811 = vshrl.u32 %v2810, 7
          %v2812 = vsub.s32 3, %v2811
          %v2813 = vrot.slane %v2794, %v2812
          %v2814 = vlaneseq
          %v2815 = vshrl.u32 %v2814, 7
          %v2816 = vsub.s32 4, %v2815
          %v2817 = vrot.slane %v2794, %v2816
          %v2818 = vlaneseq
          %v2819 = vshrl.u32 %v2818, 7
          %v2820 = vsub.s32 5, %v2819
          %v2821 = vrot.slane %v2794, %v2820
          %v2822 = vlaneseq
          %v2823 = vshrl.u32 %v2822, 7
          %v2824 = vsub.s32 6, %v2823
          %v2825 = vrot.slane %v2794, %v2824
          %v2826 = vlaneseq
          %v2827 = vshrl.u32 %v2826, 7
          %v2828 = vsub.s32 7, %v2827
          %v2829 = vrot.slane %v2794, %v2828
          %v2830 = vlaneseq
          %v2831 = vshrl.u32 %v2830, 7
          %v2832 = vsub.s32 0, %v2831
          %v2833 = vrot.slane %v2795, %v2832
          %v2834 = vlaneseq
          %v2835 = vshrl.u32 %v2834, 7
          %v2836 = vsub.s32 1, %v2835
          %v2837 = vrot.slane %v2795, %v2836
          %v2838 = vlaneseq
          %v2839 = vshrl.u32 %v2838, 7
          %v2840 = vsub.s32 2, %v2839
          %v2841 = vrot.slane %v2795, %v2840
          %v2853 = vpack.c.bf16 %v2801, %v2801
          %v2854 = vpack.c.bf16 %v2805, %v2805
          %v2855 = vpack.c.bf16 %v2809, %v2809
          %v2856 = vpack.c.bf16 %v2813, %v2813
          %v2857 = vpack.c.bf16 %v2817, %v2817
          %v2858 = vpack.c.bf16 %v2821, %v2821
          %v2859 = vpack.c.bf16 %v2825, %v2825
          %v2860 = vpack.c.bf16 %v2829, %v2829
          %v2861 = vpack.c.bf16 %v2833, %v2833
          %v2862 = vpack.c.bf16 %v2837, %v2837
          %v2863 = vpack.c.bf16 %v2841, %v2841
          %v2864 = vld [vmem:[#allocation6] sm:$0xf]
          %v2865 = vld [vmem:[#allocation6 + $0x4] sm:$0xf]
          %v2866 = vld [vmem:[#allocation6 + $0x8] sm:$0xf]
          %v2867 = vld [vmem:[#allocation6 + $0xc] sm:$0xf]
          %v2868 = vld [vmem:[#allocation6 + $0x10] sm:$0xf]
          %v2869 = vld [vmem:[#allocation6 + $0x14] sm:$0xf]
          %v2870 = vld [vmem:[#allocation6 + $0x18] sm:$0xf]
          %v2871 = vld [vmem:[#allocation6 + $0x1c] sm:$0xf]
          %v2872 = vld [vmem:[#allocation6 + $0x20] sm:$0xf]
          %v2873 = vld [vmem:[#allocation6 + $0x24] sm:$0xf]
          %v2874 = vld [vmem:[#allocation6 + $0x28] sm:$0xf]
          %v2875 = vld [vmem:[#allocation6 + $0x2c] sm:$0xf]
          %v2876 = vld [vmem:[#allocation6 + $0x30] sm:$0xf]
          %v2877 = vld [vmem:[#allocation6 + $0x34] sm:$0xf]
          %v2878 = vld [vmem:[#allocation6 + $0x38] sm:$0xf]
          %v2879 = vld [vmem:[#allocation6 + $0x3c] sm:$0xf]
          %v2880 = vld [vmem:[#allocation6 + $0x40] sm:$0xf]
          %v2881 = vld [vmem:[#allocation6 + $0x44] sm:$0xf]
          %v2882 = vld [vmem:[#allocation6 + $0x48] sm:$0xf]
          %v2883 = vld [vmem:[#allocation6 + $0x4c] sm:$0xf]
          %v2884 = vld [vmem:[#allocation6 + $0x50] sm:$0xf]
          %v2885 = vld [vmem:[#allocation6 + $0x54] sm:$0xf]
          %v2886 = vld [vmem:[#allocation6 + $0x58] sm:$0xf]
          %v2887 = vld [vmem:[#allocation6 + $0x5c] sm:$0xf]
          %v2888 = vld [vmem:[#allocation6 + $0x60] sm:$0xf]
          %v2889 = vld [vmem:[#allocation6 + $0x64] sm:$0xf]
          %v2890 = vld [vmem:[#allocation6 + $0x68] sm:$0xf]
          %v2891 = vld [vmem:[#allocation6 + $0x6c] sm:$0xf]
          %v2892 = vld [vmem:[#allocation6 + $0x70] sm:$0xf]
          %v2893 = vld [vmem:[#allocation6 + $0x74] sm:$0xf]
          %v2894 = vld [vmem:[#allocation6 + $0x78] sm:$0xf]
          %v2895 = vld [vmem:[#allocation6 + $0x7c] sm:$0xf]
          %v2896 = vld [vmem:[#allocation6 + $0x80] sm:$0xf]
          %v2897 = vld [vmem:[#allocation6 + $0x84] sm:$0xf]
          %v2898 = vld [vmem:[#allocation6 + $0x88] sm:$0xf]
          %v2899 = vld [vmem:[#allocation6 + $0x8c] sm:$0xf]
          %v2900 = vld [vmem:[#allocation6 + $0x90] sm:$0xf]
          %v2901 = vld [vmem:[#allocation6 + $0x94] sm:$0xf]
          %v2902 = vld [vmem:[#allocation6 + $0x98] sm:$0xf]
          %v2903 = vld [vmem:[#allocation6 + $0x9c] sm:$0xf]
          %v2904 = vld [vmem:[#allocation6 + $0xa0] sm:$0xf]
          %v2905 = vld [vmem:[#allocation6 + $0xa4] sm:$0xf]
          %v2906 = vld [vmem:[#allocation6 + $0xa8] sm:$0xf]
          %v2907 = vld [vmem:[#allocation6 + $0xac] sm:$0xf]
          %v2908 = vld [vmem:[#allocation6 + $0xb0] sm:$0xf]
          %v2909 = vld [vmem:[#allocation6 + $0xb4] sm:$0xf]
          %v2910 = vld [vmem:[#allocation6 + $0xb8] sm:$0xf]
          %v2911 = vld [vmem:[#allocation6 + $0xbc] sm:$0xf]
          %v2912 = vld [vmem:[#allocation6 + $0xc0] sm:$0xf]
          %v2913 = vld [vmem:[#allocation6 + $0xc4] sm:$0xf]
          %v2914 = vld [vmem:[#allocation6 + $0xc8] sm:$0xf]
          %v2915 = vld [vmem:[#allocation6 + $0xcc] sm:$0xf]
          %v2916 = vld [vmem:[#allocation6 + $0xd0] sm:$0xf]
          %v2917 = vld [vmem:[#allocation6 + $0xd4] sm:$0xf]
          %v2918 = vld [vmem:[#allocation6 + $0xd8] sm:$0xf]
          %v2919 = vld [vmem:[#allocation6 + $0xdc] sm:$0xf]
          %v2920 = vld [vmem:[#allocation6 + $0xe0] sm:$0xf]
          %v2921 = vld [vmem:[#allocation6 + $0xe4] sm:$0xf]
          %v2922 = vld [vmem:[#allocation6 + $0xe8] sm:$0xf]
          %v2923 = vld [vmem:[#allocation6 + $0xec] sm:$0xf]
          %v2924 = vld [vmem:[#allocation6 + $0xf0] sm:$0xf]
          %v2925 = vld [vmem:[#allocation6 + $0xf4] sm:$0xf]
          %v2926 = vld [vmem:[#allocation6 + $0xf8] sm:$0xf]
          %v2927 = vld [vmem:[#allocation6 + $0xfc] sm:$0xf]
          %v2928 = vld [vmem:[#allocation6 + $0x100] sm:$0xf]
          %v2929 = vld [vmem:[#allocation6 + $0x104] sm:$0xf]
          %v2930 = vld [vmem:[#allocation6 + $0x108] sm:$0xf]
          %v2931 = vld [vmem:[#allocation6 + $0x10c] sm:$0xf]
          %v2932 = vld [vmem:[#allocation6 + $0x110] sm:$0xf]
          %v2933 = vld [vmem:[#allocation6 + $0x114] sm:$0xf]
          %v2934 = vld [vmem:[#allocation6 + $0x118] sm:$0xf]
          %v2935 = vld [vmem:[#allocation6 + $0x11c] sm:$0xf]
          %v2936 = vld [vmem:[#allocation6 + $0x120] sm:$0xf]
          %v2937 = vld [vmem:[#allocation6 + $0x124] sm:$0xf]
          %v2938 = vld [vmem:[#allocation6 + $0x128] sm:$0xf]
          %v2939 = vld [vmem:[#allocation6 + $0x12c] sm:$0xf]
          %v2940 = vld [vmem:[#allocation6 + $0x130] sm:$0xf]
          %v2941 = vld [vmem:[#allocation6 + $0x134] sm:$0xf]
          %v2942 = vld [vmem:[#allocation6 + $0x138] sm:$0xf]
          %v2943 = vld [vmem:[#allocation6 + $0x13c] sm:$0xf]
          %v2944 = vld [vmem:[#allocation6 + $0x140] sm:$0xf]
          %v2945 = vld [vmem:[#allocation6 + $0x144] sm:$0xf]
          %v2946 = vld [vmem:[#allocation6 + $0x148] sm:$0xf]
          %v2947 = vld [vmem:[#allocation6 + $0x14c] sm:$0xf]
          %v2948 = vld [vmem:[#allocation6 + $0x150] sm:$0xf]
          %v2949 = vld [vmem:[#allocation6 + $0x154] sm:$0xf]
          %v2950 = vld [vmem:[#allocation6 + $0x158] sm:$0xf]
          %v2951 = vld [vmem:[#allocation6 + $0x15c] sm:$0xf]
          %v2952 = vld [vmem:[#allocation6 + $0x160] sm:$0xf]
          %v2953 = vld [vmem:[#allocation6 + $0x164] sm:$0xf]
          %v2954 = vld [vmem:[#allocation6 + $0x168] sm:$0xf]
          %v2955 = vld [vmem:[#allocation6 + $0x16c] sm:$0xf]
          %v2956 = vld [vmem:[#allocation6 + $0x170] sm:$0xf]
          %v2957 = vld [vmem:[#allocation6 + $0x174] sm:$0xf]
          %v2958 = vld [vmem:[#allocation6 + $0x178] sm:$0xf]
          %v2959 = vld [vmem:[#allocation6 + $0x17c] sm:$0xf]
          %v2960 = vld [vmem:[#allocation6 + $0x180] sm:$0xf]
          %v2961 = vld [vmem:[#allocation6 + $0x184] sm:$0xf]
          %v2962 = vld [vmem:[#allocation6 + $0x188] sm:$0xf]
          %v2963 = vld [vmem:[#allocation6 + $0x18c] sm:$0xf]
          %v2964 = vld [vmem:[#allocation6 + $0x190] sm:$0xf]
          %v2965 = vld [vmem:[#allocation6 + $0x194] sm:$0xf]
          %v2966 = vld [vmem:[#allocation6 + $0x198] sm:$0xf]
          %v2967 = vld [vmem:[#allocation6 + $0x19c] sm:$0xf]
          %v2968 = vld [vmem:[#allocation6 + $0x1a0] sm:$0xf]
          %v2969 = vld [vmem:[#allocation6 + $0x1a4] sm:$0xf]
          %v2970 = vld [vmem:[#allocation6 + $0x1a8] sm:$0xf]
          %v2971 = vld [vmem:[#allocation6 + $0x1ac] sm:$0xf]
          %v2972 = vld [vmem:[#allocation6 + $0x1b0] sm:$0xf]
          %v2973 = vld [vmem:[#allocation6 + $0x1b4] sm:$0xf]
          %v2974 = vld [vmem:[#allocation6 + $0x1b8] sm:$0xf]
          %v2975 = vld [vmem:[#allocation6 + $0x1bc] sm:$0xf]
          %v2976 = vld [vmem:[#allocation6 + $0x1c0] sm:$0xf]
          %v2977 = vld [vmem:[#allocation6 + $0x1c4] sm:$0xf]
          %v2978 = vld [vmem:[#allocation6 + $0x1c8] sm:$0xf]
          %v2979 = vld [vmem:[#allocation6 + $0x1cc] sm:$0xf]
          %v2980 = vld [vmem:[#allocation6 + $0x1d0] sm:$0xf]
          %v2981 = vld [vmem:[#allocation6 + $0x1d4] sm:$0xf]
          %v2982 = vld [vmem:[#allocation6 + $0x1d8] sm:$0xf]
          %v2983 = vld [vmem:[#allocation6 + $0x1dc] sm:$0xf]
          %v2984 = vld [vmem:[#allocation6 + $0x1e0] sm:$0xf]
          %v2985 = vld [vmem:[#allocation6 + $0x1e4] sm:$0xf]
          %v2986 = vld [vmem:[#allocation6 + $0x1e8] sm:$0xf]
          %v2987 = vld [vmem:[#allocation6 + $0x1ec] sm:$0xf]
          %v2988 = vld [vmem:[#allocation6 + $0x1f0] sm:$0xf]
          %v2989 = vld [vmem:[#allocation6 + $0x1f4] sm:$0xf]
          %v2990 = vld [vmem:[#allocation6 + $0x1f8] sm:$0xf]
          %v2991 = vld [vmem:[#allocation6 + $0x1fc] sm:$0xf]
          %v2992 = vld [vmem:[#allocation6 + $0x200] sm:$0xf]
          %v2993 = vld [vmem:[#allocation6 + $0x204] sm:$0xf]
          %v2994 = vld [vmem:[#allocation6 + $0x208] sm:$0xf]
          %v2995 = vld [vmem:[#allocation6 + $0x20c] sm:$0xf]
          %v2996 = vld [vmem:[#allocation6 + $0x210] sm:$0xf]
          %v2997 = vld [vmem:[#allocation6 + $0x214] sm:$0xf]
          %v2998 = vld [vmem:[#allocation6 + $0x218] sm:$0xf]
          %v2999 = vld [vmem:[#allocation6 + $0x21c] sm:$0xf]
          %v3000 = vld [vmem:[#allocation6 + $0x220] sm:$0xf]
          %v3001 = vld [vmem:[#allocation6 + $0x224] sm:$0xf]
          %v3002 = vld [vmem:[#allocation6 + $0x228] sm:$0xf]
          %v3003 = vld [vmem:[#allocation6 + $0x22c] sm:$0xf]
          %v3004 = vld [vmem:[#allocation6 + $0x230] sm:$0xf]
          %v3005 = vld [vmem:[#allocation6 + $0x234] sm:$0xf]
          %v3006 = vld [vmem:[#allocation6 + $0x238] sm:$0xf]
          %v3007 = vld [vmem:[#allocation6 + $0x23c] sm:$0xf]
          %v3008 = vld [vmem:[#allocation6 + $0x240] sm:$0xf]
          %v3009 = vld [vmem:[#allocation6 + $0x244] sm:$0xf]
          %v3010 = vld [vmem:[#allocation6 + $0x248] sm:$0xf]
          %v3011 = vld [vmem:[#allocation6 + $0x24c] sm:$0xf]
          %v3012 = vld [vmem:[#allocation6 + $0x250] sm:$0xf]
          %v3013 = vld [vmem:[#allocation6 + $0x254] sm:$0xf]
          %v3014 = vld [vmem:[#allocation6 + $0x258] sm:$0xf]
          %v3015 = vld [vmem:[#allocation6 + $0x25c] sm:$0xf]
          %v3016 = vld [vmem:[#allocation6 + $0x260] sm:$0xf]
          %v3017 = vld [vmem:[#allocation6 + $0x264] sm:$0xf]
          %v3018 = vld [vmem:[#allocation6 + $0x268] sm:$0xf]
          %v3019 = vld [vmem:[#allocation6 + $0x26c] sm:$0xf]
          %v3020 = vld [vmem:[#allocation6 + $0x270] sm:$0xf]
          %v3021 = vld [vmem:[#allocation6 + $0x274] sm:$0xf]
          %v3022 = vld [vmem:[#allocation6 + $0x278] sm:$0xf]
          %v3023 = vld [vmem:[#allocation6 + $0x27c] sm:$0xf]
          %v3024 = vld [vmem:[#allocation6 + $0x280] sm:$0xf]
          %v3025 = vld [vmem:[#allocation6 + $0x284] sm:$0xf]
          %v3026 = vld [vmem:[#allocation6 + $0x288] sm:$0xf]
          %v3027 = vld [vmem:[#allocation6 + $0x28c] sm:$0xf]
          %v3028 = vld [vmem:[#allocation6 + $0x290] sm:$0xf]
          %v3029 = vld [vmem:[#allocation6 + $0x294] sm:$0xf]
          %v3030 = vld [vmem:[#allocation6 + $0x298] sm:$0xf]
          %v3031 = vld [vmem:[#allocation6 + $0x29c] sm:$0xf]
          %v3032 = vld [vmem:[#allocation6 + $0x2a0] sm:$0xf]
          %v3033 = vld [vmem:[#allocation6 + $0x2a4] sm:$0xf]
          %v3034 = vld [vmem:[#allocation6 + $0x2a8] sm:$0xf]
          %v3035 = vld [vmem:[#allocation6 + $0x2ac] sm:$0xf]
          %v3036 = vld [vmem:[#allocation6 + $0x2b0] sm:$0xf]
          %v3037 = vld [vmem:[#allocation6 + $0x2b4] sm:$0xf]
          %v3038 = vld [vmem:[#allocation6 + $0x2b8] sm:$0xf]
          %v3039 = vld [vmem:[#allocation6 + $0x2bc] sm:$0xf]
          %v3040 = vld [vmem:[%s6] sm:$0x1]
          %v3217 = vunpack.c.l.b16 %v2864
          %v3218 = vunpack.c.l.b16 %v2865
          %v3219 = vunpack.c.l.b16 %v2866
          %v3220 = vunpack.c.l.b16 %v2867
          %v3221 = vunpack.c.l.b16 %v2868
          %v3222 = vunpack.c.l.b16 %v2869
          %v3223 = vunpack.c.l.b16 %v2870
          %v3224 = vunpack.c.l.b16 %v2871
          %v3225 = vunpack.c.l.b16 %v2872
          %v3226 = vunpack.c.l.b16 %v2873
          %v3227 = vunpack.c.l.b16 %v2874
          %v3228 = vunpack.c.l.b16 %v2875
          %v3229 = vunpack.c.l.b16 %v2876
          %v3230 = vunpack.c.l.b16 %v2877
          %v3231 = vunpack.c.l.b16 %v2878
          %v3232 = vunpack.c.l.b16 %v2879
          %v3233 = vunpack.c.l.b16 %v2880
          %v3234 = vunpack.c.l.b16 %v2881
          %v3235 = vunpack.c.l.b16 %v2882
          %v3236 = vunpack.c.l.b16 %v2883
          %v3237 = vunpack.c.l.b16 %v2884
          %v3238 = vunpack.c.l.b16 %v2885
          %v3239 = vunpack.c.l.b16 %v2886
          %v3240 = vunpack.c.l.b16 %v2887
          %v3241 = vunpack.c.l.b16 %v2888
          %v3242 = vunpack.c.l.b16 %v2889
          %v3243 = vunpack.c.l.b16 %v2890
          %v3244 = vunpack.c.l.b16 %v2891
          %v3245 = vunpack.c.l.b16 %v2892
          %v3246 = vunpack.c.l.b16 %v2893
          %v3247 = vunpack.c.l.b16 %v2894
          %v3248 = vunpack.c.l.b16 %v2895
          %v3249 = vunpack.c.l.b16 %v2896
          %v3250 = vunpack.c.l.b16 %v2897
          %v3251 = vunpack.c.l.b16 %v2898
          %v3252 = vunpack.c.l.b16 %v2899
          %v3253 = vunpack.c.l.b16 %v2900
          %v3254 = vunpack.c.l.b16 %v2901
          %v3255 = vunpack.c.l.b16 %v2902
          %v3256 = vunpack.c.l.b16 %v2903
          %v3257 = vunpack.c.l.b16 %v2904
          %v3258 = vunpack.c.l.b16 %v2905
          %v3259 = vunpack.c.l.b16 %v2906
          %v3260 = vunpack.c.l.b16 %v2907
          %v3261 = vunpack.c.l.b16 %v2908
          %v3262 = vunpack.c.l.b16 %v2909
          %v3263 = vunpack.c.l.b16 %v2910
          %v3264 = vunpack.c.l.b16 %v2911
          %v3265 = vunpack.c.l.b16 %v2912
          %v3266 = vunpack.c.l.b16 %v2913
          %v3267 = vunpack.c.l.b16 %v2914
          %v3268 = vunpack.c.l.b16 %v2915
          %v3269 = vunpack.c.l.b16 %v2916
          %v3270 = vunpack.c.l.b16 %v2917
          %v3271 = vunpack.c.l.b16 %v2918
          %v3272 = vunpack.c.l.b16 %v2919
          %v3273 = vunpack.c.l.b16 %v2920
          %v3274 = vunpack.c.l.b16 %v2921
          %v3275 = vunpack.c.l.b16 %v2922
          %v3276 = vunpack.c.l.b16 %v2923
          %v3277 = vunpack.c.l.b16 %v2924
          %v3278 = vunpack.c.l.b16 %v2925
          %v3279 = vunpack.c.l.b16 %v2926
          %v3280 = vunpack.c.l.b16 %v2927
          %v3281 = vunpack.c.l.b16 %v2928
          %v3282 = vunpack.c.l.b16 %v2929
          %v3283 = vunpack.c.l.b16 %v2930
          %v3284 = vunpack.c.l.b16 %v2931
          %v3285 = vunpack.c.l.b16 %v2932
          %v3286 = vunpack.c.l.b16 %v2933
          %v3287 = vunpack.c.l.b16 %v2934
          %v3288 = vunpack.c.l.b16 %v2935
          %v3289 = vunpack.c.l.b16 %v2936
          %v3290 = vunpack.c.l.b16 %v2937
          %v3291 = vunpack.c.l.b16 %v2938
          %v3292 = vunpack.c.l.b16 %v2939
          %v3293 = vunpack.c.l.b16 %v2940
          %v3294 = vunpack.c.l.b16 %v2941
          %v3295 = vunpack.c.l.b16 %v2942
          %v3296 = vunpack.c.l.b16 %v2943
          %v3297 = vunpack.c.l.b16 %v2944
          %v3298 = vunpack.c.l.b16 %v2945
          %v3299 = vunpack.c.l.b16 %v2946
          %v3300 = vunpack.c.l.b16 %v2947
          %v3301 = vunpack.c.l.b16 %v2948
          %v3302 = vunpack.c.l.b16 %v2949
          %v3303 = vunpack.c.l.b16 %v2950
          %v3304 = vunpack.c.l.b16 %v2951
          %v3305 = vunpack.c.l.b16 %v2952
          %v3306 = vunpack.c.l.b16 %v2953
          %v3307 = vunpack.c.l.b16 %v2954
          %v3308 = vunpack.c.l.b16 %v2955
          %v3309 = vunpack.c.l.b16 %v2956
          %v3310 = vunpack.c.l.b16 %v2957
          %v3311 = vunpack.c.l.b16 %v2958
          %v3312 = vunpack.c.l.b16 %v2959
          %v3313 = vunpack.c.l.b16 %v2960
          %v3314 = vunpack.c.l.b16 %v2961
          %v3315 = vunpack.c.l.b16 %v2962
          %v3316 = vunpack.c.l.b16 %v2963
          %v3317 = vunpack.c.l.b16 %v2964
          %v3318 = vunpack.c.l.b16 %v2965
          %v3319 = vunpack.c.l.b16 %v2966
          %v3320 = vunpack.c.l.b16 %v2967
          %v3321 = vunpack.c.l.b16 %v2968
          %v3322 = vunpack.c.l.b16 %v2969
          %v3323 = vunpack.c.l.b16 %v2970
          %v3324 = vunpack.c.l.b16 %v2971
          %v3325 = vunpack.c.l.b16 %v2972
          %v3326 = vunpack.c.l.b16 %v2973
          %v3327 = vunpack.c.l.b16 %v2974
          %v3328 = vunpack.c.l.b16 %v2975
          %v3329 = vunpack.c.l.b16 %v2976
          %v3330 = vunpack.c.l.b16 %v2977
          %v3331 = vunpack.c.l.b16 %v2978
          %v3332 = vunpack.c.l.b16 %v2979
          %v3333 = vunpack.c.l.b16 %v2980
          %v3334 = vunpack.c.l.b16 %v2981
          %v3335 = vunpack.c.l.b16 %v2982
          %v3336 = vunpack.c.l.b16 %v2983
          %v3337 = vunpack.c.l.b16 %v2984
          %v3338 = vunpack.c.l.b16 %v2985
          %v3339 = vunpack.c.l.b16 %v2986
          %v3340 = vunpack.c.l.b16 %v2987
          %v3341 = vunpack.c.l.b16 %v2988
          %v3342 = vunpack.c.l.b16 %v2989
          %v3343 = vunpack.c.l.b16 %v2990
          %v3344 = vunpack.c.l.b16 %v2991
          %v3345 = vunpack.c.l.b16 %v2992
          %v3346 = vunpack.c.l.b16 %v2993
          %v3347 = vunpack.c.l.b16 %v2994
          %v3348 = vunpack.c.l.b16 %v2995
          %v3349 = vunpack.c.l.b16 %v2996
          %v3350 = vunpack.c.l.b16 %v2997
          %v3351 = vunpack.c.l.b16 %v2998
          %v3352 = vunpack.c.l.b16 %v2999
          %v3353 = vunpack.c.l.b16 %v3000
          %v3354 = vunpack.c.l.b16 %v3001
          %v3355 = vunpack.c.l.b16 %v3002
          %v3356 = vunpack.c.l.b16 %v3003
          %v3357 = vunpack.c.l.b16 %v3004
          %v3358 = vunpack.c.l.b16 %v3005
          %v3359 = vunpack.c.l.b16 %v3006
          %v3360 = vunpack.c.l.b16 %v3007
          %v3361 = vunpack.c.l.b16 %v3008
          %v3362 = vunpack.c.l.b16 %v3009
          %v3363 = vunpack.c.l.b16 %v3010
          %v3364 = vunpack.c.l.b16 %v3011
          %v3365 = vunpack.c.l.b16 %v3012
          %v3366 = vunpack.c.l.b16 %v3013
          %v3367 = vunpack.c.l.b16 %v3014
          %v3368 = vunpack.c.l.b16 %v3015
          %v3369 = vunpack.c.l.b16 %v3016
          %v3370 = vunpack.c.l.b16 %v3017
          %v3371 = vunpack.c.l.b16 %v3018
          %v3372 = vunpack.c.l.b16 %v3019
          %v3373 = vunpack.c.l.b16 %v3020
          %v3374 = vunpack.c.l.b16 %v3021
          %v3375 = vunpack.c.l.b16 %v3022
          %v3376 = vunpack.c.l.b16 %v3023
          %v3377 = vunpack.c.l.b16 %v3024
          %v3378 = vunpack.c.l.b16 %v3025
          %v3379 = vunpack.c.l.b16 %v3026
          %v3380 = vunpack.c.l.b16 %v3027
          %v3381 = vunpack.c.l.b16 %v3028
          %v3382 = vunpack.c.l.b16 %v3029
          %v3383 = vunpack.c.l.b16 %v3030
          %v3384 = vunpack.c.l.b16 %v3031
          %v3385 = vunpack.c.l.b16 %v3032
          %v3386 = vunpack.c.l.b16 %v3033
          %v3387 = vunpack.c.l.b16 %v3034
          %v3388 = vunpack.c.l.b16 %v3035
          %v3389 = vunpack.c.l.b16 %v3036
          %v3390 = vunpack.c.l.b16 %v3037
          %v3391 = vunpack.c.l.b16 %v3038
          %v3392 = vunpack.c.l.b16 %v3039
          %v3393 = vpack.c.b16 %v3218, %v3217
          %v3394 = vpack.c.b16 %v3220, %v3219
          %v3395 = vpack.c.b16 %v3222, %v3221
          %v3396 = vpack.c.b16 %v3224, %v3223
          %v3397 = vpack.c.b16 %v3226, %v3225
          %v3398 = vpack.c.b16 %v3228, %v3227
          %v3399 = vpack.c.b16 %v3230, %v3229
          %v3400 = vpack.c.b16 %v3232, %v3231
          %v3401 = vpack.c.b16 %v3234, %v3233
          %v3402 = vpack.c.b16 %v3236, %v3235
          %v3403 = vpack.c.b16 %v3238, %v3237
          %v3404 = vpack.c.b16 %v3240, %v3239
          %v3405 = vpack.c.b16 %v3242, %v3241
          %v3406 = vpack.c.b16 %v3244, %v3243
          %v3407 = vpack.c.b16 %v3246, %v3245
          %v3408 = vpack.c.b16 %v3248, %v3247
          %v3409 = vpack.c.b16 %v3250, %v3249
          %v3410 = vpack.c.b16 %v3252, %v3251
          %v3411 = vpack.c.b16 %v3254, %v3253
          %v3412 = vpack.c.b16 %v3256, %v3255
          %v3413 = vpack.c.b16 %v3258, %v3257
          %v3414 = vpack.c.b16 %v3260, %v3259
          %v3415 = vpack.c.b16 %v3262, %v3261
          %v3416 = vpack.c.b16 %v3264, %v3263
          %v3417 = vpack.c.b16 %v3266, %v3265
          %v3418 = vpack.c.b16 %v3268, %v3267
          %v3419 = vpack.c.b16 %v3270, %v3269
          %v3420 = vpack.c.b16 %v3272, %v3271
          %v3421 = vpack.c.b16 %v3274, %v3273
          %v3422 = vpack.c.b16 %v3276, %v3275
          %v3423 = vpack.c.b16 %v3278, %v3277
          %v3424 = vpack.c.b16 %v3280, %v3279
          %v3425 = vpack.c.b16 %v3282, %v3281
          %v3426 = vpack.c.b16 %v3284, %v3283
          %v3427 = vpack.c.b16 %v3286, %v3285
          %v3428 = vpack.c.b16 %v3288, %v3287
          %v3429 = vpack.c.b16 %v3290, %v3289
          %v3430 = vpack.c.b16 %v3292, %v3291
          %v3431 = vpack.c.b16 %v3294, %v3293
          %v3432 = vpack.c.b16 %v3296, %v3295
          %v3433 = vpack.c.b16 %v3298, %v3297
          %v3434 = vpack.c.b16 %v3300, %v3299
          %v3435 = vpack.c.b16 %v3302, %v3301
          %v3436 = vpack.c.b16 %v3304, %v3303
          %v3437 = vpack.c.b16 %v3306, %v3305
          %v3438 = vpack.c.b16 %v3308, %v3307
          %v3439 = vpack.c.b16 %v3310, %v3309
          %v3440 = vpack.c.b16 %v3312, %v3311
          %v3441 = vpack.c.b16 %v3314, %v3313
          %v3442 = vpack.c.b16 %v3316, %v3315
          %v3443 = vpack.c.b16 %v3318, %v3317
          %v3444 = vpack.c.b16 %v3320, %v3319
          %v3445 = vpack.c.b16 %v3322, %v3321
          %v3446 = vpack.c.b16 %v3324, %v3323
          %v3447 = vpack.c.b16 %v3326, %v3325
          %v3448 = vpack.c.b16 %v3328, %v3327
          %v3449 = vpack.c.b16 %v3330, %v3329
          %v3450 = vpack.c.b16 %v3332, %v3331
          %v3451 = vpack.c.b16 %v3334, %v3333
          %v3452 = vpack.c.b16 %v3336, %v3335
          %v3453 = vpack.c.b16 %v3338, %v3337
          %v3454 = vpack.c.b16 %v3340, %v3339
          %v3455 = vpack.c.b16 %v3342, %v3341
          %v3456 = vpack.c.b16 %v3344, %v3343
          %v3457 = vpack.c.b16 %v3346, %v3345
          %v3458 = vpack.c.b16 %v3348, %v3347
          %v3459 = vpack.c.b16 %v3350, %v3349
          %v3460 = vpack.c.b16 %v3352, %v3351
          %v3461 = vpack.c.b16 %v3354, %v3353
          %v3462 = vpack.c.b16 %v3356, %v3355
          %v3463 = vpack.c.b16 %v3358, %v3357
          %v3464 = vpack.c.b16 %v3360, %v3359
          %v3465 = vpack.c.b16 %v3362, %v3361
          %v3466 = vpack.c.b16 %v3364, %v3363
          %v3467 = vpack.c.b16 %v3366, %v3365
          %v3468 = vpack.c.b16 %v3368, %v3367
          %v3469 = vpack.c.b16 %v3370, %v3369
          %v3470 = vpack.c.b16 %v3372, %v3371
          %v3471 = vpack.c.b16 %v3374, %v3373
          %v3472 = vpack.c.b16 %v3376, %v3375
          %v3473 = vpack.c.b16 %v3378, %v3377
          %v3474 = vpack.c.b16 %v3380, %v3379
          %v3475 = vpack.c.b16 %v3382, %v3381
          %v3476 = vpack.c.b16 %v3384, %v3383
          %v3477 = vpack.c.b16 %v3386, %v3385
          %v3478 = vpack.c.b16 %v3388, %v3387
          %v3479 = vpack.c.b16 %v3390, %v3389
          %v3480 = vpack.c.b16 %v3392, %v3391
          %3569 = vmatprep.subr.bf16.mxu0 0
          %3570 = vmatpush1.bf16.msra.mxu0 %v3400
          %3571 = vmatprep.subr.bf16.mxu0 0
          %3572 = vmatpush1.bf16.msra.mxu0 %v3399
          %3573 = vmatprep.subr.bf16.mxu0 0
          %3574 = vmatpush1.bf16.msra.mxu0 %v3398
          %3575 = vmatprep.subr.bf16.mxu0 0
          %3576 = vmatpush1.bf16.msra.mxu0 %v3397
          %3577 = vmatprep.subr.bf16.mxu0 0
          %3578 = vmatpush1.bf16.msra.mxu0 %v3396
          %3579 = vmatprep.subr.bf16.mxu0 0
          %3580 = vmatpush1.bf16.msra.mxu0 %v3395
          %3581 = vmatprep.subr.bf16.mxu0 0
          %3582 = vmatpush1.bf16.msra.mxu0 %v3394
          %3583 = vmatprep.subr.bf16.mxu0 0
          %3584 = vmatpush1.bf16.msra.mxu0 %v3393
          %3585 = vmatprep.subr.bf16.mxu0 0
          %3586 = vmatpush2.bf16.msra.mxu0 %v3408
          %3587 = vmatprep.subr.bf16.mxu0 0
          %3588 = vmatpush2.bf16.msra.mxu0 %v3407
          %3589 = vmatprep.subr.bf16.mxu0 0
          %3590 = vmatpush2.bf16.msra.mxu0 %v3406
          %3591 = vmatprep.subr.bf16.mxu0 0
          %3592 = vmatpush2.bf16.msra.mxu0 %v3405
          %3593 = vmatprep.subr.bf16.mxu0 0
          %3594 = vmatpush2.bf16.msra.mxu0 %v3404
          %3595 = vmatprep.subr.bf16.mxu0 0
          %3596 = vmatpush2.bf16.msra.mxu0 %v3403
          %3597 = vmatprep.subr.bf16.mxu0 0
          %3598 = vmatpush2.bf16.msra.mxu0 %v3402
          %3599 = vmatprep.subr.bf16.mxu0 0
          %3600 = vmatpush2.bf16.msra.mxu0 %v3401
          %3601 = vmatprep.mubr.bf16.mxu0 %v2854
          %3602 = vmatmul.mubr.bf16.gmra.mxu0 %v2853
          %v3603 = vpop.f32.mrf.mxu0
          %v3604 = vadd.f32 %v3040, %v3603
          %v3605 = vpop.f32.mrf.mxu0
          %v3606 = vpop.f32.mrf.mxu0
          %v3607 = vpop.f32.mrf.mxu0
          %3608 = vdwg.mxu0
          %3609 = vmatprep.subr.bf16.mxu0 0
          %3610 = vmatpush1.bf16.msra.mxu0 %v3416
          %3611 = vmatprep.subr.bf16.mxu0 0
          %3612 = vmatpush1.bf16.msra.mxu0 %v3415
          %3613 = vmatprep.subr.bf16.mxu0 0
          %3614 = vmatpush1.bf16.msra.mxu0 %v3414
          %3615 = vmatprep.subr.bf16.mxu0 0
          %3616 = vmatpush1.bf16.msra.mxu0 %v3413
          %3617 = vmatprep.subr.bf16.mxu0 0
          %3618 = vmatpush1.bf16.msra.mxu0 %v3412
          %3619 = vmatprep.subr.bf16.mxu0 0
          %3620 = vmatpush1.bf16.msra.mxu0 %v3411
          %3621 = vmatprep.subr.bf16.mxu0 0
          %3622 = vmatpush1.bf16.msra.mxu0 %v3410
          %3623 = vmatprep.subr.bf16.mxu0 0
          %3624 = vmatpush1.bf16.msra.mxu0 %v3409
          %3625 = vmatprep.subr.bf16.mxu0 0
          %3626 = vmatpush2.bf16.msra.mxu0 %v3424
          %3627 = vmatprep.subr.bf16.mxu0 0
          %3628 = vmatpush2.bf16.msra.mxu0 %v3423
          %3629 = vmatprep.subr.bf16.mxu0 0
          %3630 = vmatpush2.bf16.msra.mxu0 %v3422
          %3631 = vmatprep.subr.bf16.mxu0 0
          %3632 = vmatpush2.bf16.msra.mxu0 %v3421
          %3633 = vmatprep.subr.bf16.mxu0 0
          %3634 = vmatpush2.bf16.msra.mxu0 %v3420
          %3635 = vmatprep.subr.bf16.mxu0 0
          %3636 = vmatpush2.bf16.msra.mxu0 %v3419
          %3637 = vmatprep.subr.bf16.mxu0 0
          %3638 = vmatpush2.bf16.msra.mxu0 %v3418
          %3639 = vmatprep.subr.bf16.mxu0 0
          %3640 = vmatpush2.bf16.msra.mxu0 %v3417
          %3641 = vmatprep.mubr.bf16.mxu0 %v2856
          %3642 = vmatmul.mubr.bf16.gmra.mxu0 %v2855
          %v3643 = vpop.f32.mrf.mxu0
          %v3644 = vadd.f32 %v3604, %v3643
          %v3645 = vpop.f32.mrf.mxu0
          %v3646 = vpop.f32.mrf.mxu0
          %v3647 = vpop.f32.mrf.mxu0
          %3648 = vdwg.mxu0
          %3649 = vmatprep.subr.bf16.mxu0 0
          %3650 = vmatpush1.bf16.msra.mxu0 %v3432
          %3651 = vmatprep.subr.bf16.mxu0 0
          %3652 = vmatpush1.bf16.msra.mxu0 %v3431
          %3653 = vmatprep.subr.bf16.mxu0 0
          %3654 = vmatpush1.bf16.msra.mxu0 %v3430
          %3655 = vmatprep.subr.bf16.mxu0 0
          %3656 = vmatpush1.bf16.msra.mxu0 %v3429
          %3657 = vmatprep.subr.bf16.mxu0 0
          %3658 = vmatpush1.bf16.msra.mxu0 %v3428
          %3659 = vmatprep.subr.bf16.mxu0 0
          %3660 = vmatpush1.bf16.msra.mxu0 %v3427
          %3661 = vmatprep.subr.bf16.mxu0 0
          %3662 = vmatpush1.bf16.msra.mxu0 %v3426
          %3663 = vmatprep.subr.bf16.mxu0 0
          %3664 = vmatpush1.bf16.msra.mxu0 %v3425
          %3665 = vmatprep.subr.bf16.mxu0 0
          %3666 = vmatpush2.bf16.msra.mxu0 %v3440
          %3667 = vmatprep.subr.bf16.mxu0 0
          %3668 = vmatpush2.bf16.msra.mxu0 %v3439
          %3669 = vmatprep.subr.bf16.mxu0 0
          %3670 = vmatpush2.bf16.msra.mxu0 %v3438
          %3671 = vmatprep.subr.bf16.mxu0 0
          %3672 = vmatpush2.bf16.msra.mxu0 %v3437
          %3673 = vmatprep.subr.bf16.mxu0 0
          %3674 = vmatpush2.bf16.msra.mxu0 %v3436
          %3675 = vmatprep.subr.bf16.mxu0 0
          %3676 = vmatpush2.bf16.msra.mxu0 %v3435
          %3677 = vmatprep.subr.bf16.mxu0 0
          %3678 = vmatpush2.bf16.msra.mxu0 %v3434
          %3679 = vmatprep.subr.bf16.mxu0 0
          %3680 = vmatpush2.bf16.msra.mxu0 %v3433
          %3681 = vmatprep.mubr.bf16.mxu0 %v2858
          %3682 = vmatmul.mubr.bf16.gmra.mxu0 %v2857
          %v3683 = vpop.f32.mrf.mxu0
          %v3684 = vadd.f32 %v3644, %v3683
          %v3685 = vpop.f32.mrf.mxu0
          %v3686 = vpop.f32.mrf.mxu0
          %v3687 = vpop.f32.mrf.mxu0
          %3688 = vdwg.mxu0
          %3689 = vmatprep.subr.bf16.mxu0 0
          %3690 = vmatpush1.bf16.msra.mxu0 %v3448
          %3691 = vmatprep.subr.bf16.mxu0 0
          %3692 = vmatpush1.bf16.msra.mxu0 %v3447
          %3693 = vmatprep.subr.bf16.mxu0 0
          %3694 = vmatpush1.bf16.msra.mxu0 %v3446
          %3695 = vmatprep.subr.bf16.mxu0 0
          %3696 = vmatpush1.bf16.msra.mxu0 %v3445
          %3697 = vmatprep.subr.bf16.mxu0 0
          %3698 = vmatpush1.bf16.msra.mxu0 %v3444
          %3699 = vmatprep.subr.bf16.mxu0 0
          %3700 = vmatpush1.bf16.msra.mxu0 %v3443
          %3701 = vmatprep.subr.bf16.mxu0 0
          %3702 = vmatpush1.bf16.msra.mxu0 %v3442
          %3703 = vmatprep.subr.bf16.mxu0 0
          %3704 = vmatpush1.bf16.msra.mxu0 %v3441
          %3705 = vmatprep.subr.bf16.mxu0 0
          %3706 = vmatpush2.bf16.msra.mxu0 %v3456
          %3707 = vmatprep.subr.bf16.mxu0 0
          %3708 = vmatpush2.bf16.msra.mxu0 %v3455
          %3709 = vmatprep.subr.bf16.mxu0 0
          %3710 = vmatpush2.bf16.msra.mxu0 %v3454
          %3711 = vmatprep.subr.bf16.mxu0 0
          %3712 = vmatpush2.bf16.msra.mxu0 %v3453
          %3713 = vmatprep.subr.bf16.mxu0 0
          %3714 = vmatpush2.bf16.msra.mxu0 %v3452
          %3715 = vmatprep.subr.bf16.mxu0 0
          %3716 = vmatpush2.bf16.msra.mxu0 %v3451
          %3717 = vmatprep.subr.bf16.mxu0 0
          %3718 = vmatpush2.bf16.msra.mxu0 %v3450
          %3719 = vmatprep.subr.bf16.mxu0 0
          %3720 = vmatpush2.bf16.msra.mxu0 %v3449
          %3721 = vmatprep.mubr.bf16.mxu0 %v2860
          %3722 = vmatmul.mubr.bf16.gmra.mxu0 %v2859
          %v3723 = vpop.f32.mrf.mxu0
          %v3724 = vadd.f32 %v3684, %v3723
          %v3725 = vpop.f32.mrf.mxu0
          %v3726 = vpop.f32.mrf.mxu0
          %v3727 = vpop.f32.mrf.mxu0
          %3728 = vdwg.mxu0
          %3729 = vmatprep.subr.bf16.mxu0 0
          %3730 = vmatpush1.bf16.msra.mxu0 %v3464
          %3731 = vmatprep.subr.bf16.mxu0 0
          %3732 = vmatpush1.bf16.msra.mxu0 %v3463
          %3733 = vmatprep.subr.bf16.mxu0 0
          %3734 = vmatpush1.bf16.msra.mxu0 %v3462
          %3735 = vmatprep.subr.bf16.mxu0 0
          %3736 = vmatpush1.bf16.msra.mxu0 %v3461
          %3737 = vmatprep.subr.bf16.mxu0 0
          %3738 = vmatpush1.bf16.msra.mxu0 %v3460
          %3739 = vmatprep.subr.bf16.mxu0 0
          %3740 = vmatpush1.bf16.msra.mxu0 %v3459
          %3741 = vmatprep.subr.bf16.mxu0 0
          %3742 = vmatpush1.bf16.msra.mxu0 %v3458
          %3743 = vmatprep.subr.bf16.mxu0 0
          %3744 = vmatpush1.bf16.msra.mxu0 %v3457
          %3745 = vmatprep.subr.bf16.mxu0 0
          %3746 = vmatpush2.bf16.msra.mxu0 %v3472
          %3747 = vmatprep.subr.bf16.mxu0 0
          %3748 = vmatpush2.bf16.msra.mxu0 %v3471
          %3749 = vmatprep.subr.bf16.mxu0 0
          %3750 = vmatpush2.bf16.msra.mxu0 %v3470
          %3751 = vmatprep.subr.bf16.mxu0 0
          %3752 = vmatpush2.bf16.msra.mxu0 %v3469
          %3753 = vmatprep.subr.bf16.mxu0 0
          %3754 = vmatpush2.bf16.msra.mxu0 %v3468
          %3755 = vmatprep.subr.bf16.mxu0 0
          %3756 = vmatpush2.bf16.msra.mxu0 %v3467
          %3757 = vmatprep.subr.bf16.mxu0 0
          %3758 = vmatpush2.bf16.msra.mxu0 %v3466
          %3759 = vmatprep.subr.bf16.mxu0 0
          %3760 = vmatpush2.bf16.msra.mxu0 %v3465
          %3761 = vmatprep.mubr.bf16.mxu0 %v2862
          %3762 = vmatmul.mubr.bf16.gmra.mxu0 %v2861
          %v3763 = vpop.f32.mrf.mxu0
          %v3764 = vadd.f32 %v3724, %v3763
          %v3765 = vpop.f32.mrf.mxu0
          %v3766 = vpop.f32.mrf.mxu0
          %v3767 = vpop.f32.mrf.mxu0
          %3768 = vdwg.mxu0
          %3769 = vmatprep.subr.bf16.mxu0 0
          %3770 = vmatpush1.bf16.msra.mxu0 %v3480
          %3771 = vmatprep.subr.bf16.mxu0 0
          %3772 = vmatpush1.bf16.msra.mxu0 %v3479
          %3773 = vmatprep.subr.bf16.mxu0 0
          %3774 = vmatpush1.bf16.msra.mxu0 %v3478
          %3775 = vmatprep.subr.bf16.mxu0 0
          %3776 = vmatpush1.bf16.msra.mxu0 %v3477
          %3777 = vmatprep.subr.bf16.mxu0 0
          %3778 = vmatpush1.bf16.msra.mxu0 %v3476
          %3779 = vmatprep.subr.bf16.mxu0 0
          %3780 = vmatpush1.bf16.msra.mxu0 %v3475
          %3781 = vmatprep.subr.bf16.mxu0 0
          %3782 = vmatpush1.bf16.msra.mxu0 %v3474
          %3783 = vmatprep.subr.bf16.mxu0 0
          %3784 = vmatpush1.bf16.msra.mxu0 %v3473
          %3785 = vmatprep.subr.bf16.mxu0 0
          %3786 = vmatpush2.bf16.msra.mxu0 0
          %3787 = vmatprep.subr.bf16.mxu0 0
          %3788 = vmatpush2.bf16.msra.mxu0 0
          %3789 = vmatprep.subr.bf16.mxu0 0
          %3790 = vmatpush2.bf16.msra.mxu0 0
          %3791 = vmatprep.subr.bf16.mxu0 0
          %3792 = vmatpush2.bf16.msra.mxu0 0
          %3793 = vmatprep.subr.bf16.mxu0 0
          %3794 = vmatpush2.bf16.msra.mxu0 0
          %3795 = vmatprep.subr.bf16.mxu0 0
          %3796 = vmatpush2.bf16.msra.mxu0 0
          %3797 = vmatprep.subr.bf16.mxu0 0
          %3798 = vmatpush2.bf16.msra.mxu0 0
          %3799 = vmatprep.subr.bf16.mxu0 0
          %3800 = vmatpush2.bf16.msra.mxu0 0
          %3801 = vmatprep.mubr.bf16.mxu0 0
          %3802 = vmatmul.mubr.bf16.gmra.mxu0 %v2863
          %v3803 = vpop.f32.mrf.mxu0
          %v3804 = vadd.f32 %v3764, %v3803
          %v3805 = vpop.f32.mrf.mxu0
          %v3806 = vpop.f32.mrf.mxu0
          %v3807 = vpop.f32.mrf.mxu0
          %3808 = vdwg.mxu0
          %3809 = vst [vmem:[%s323] sm:$0x1] %v3804
        $region64: #{tpu_custom_call.1} parent=47 // pred_fallthru
          _
        %s3810 = sand.u32 %s197, 1
        %s3811 = scalar_lea.sflag [#allocation5], %s3810
        %s3812 = sand.u32 %s197, 1
        %s3813 = scalar_lea.vmem [#allocation8], %s3812
        // Predicated region
        $region65: #{tpu_custom_call.1} parent=47 // pred_check
          %p3814 = pneg %p207
        $region66: #{tpu_custom_call.1} parent=47 // pred_check_branch
          %3816 = sbr.rel (%p3814) target = $region68
        $region67: #{tpu_custom_call.1} parent=47 // pred_region
          %s3818 = ssub.s32 16, 16
          %3819 = vsyncadd %s3811, %s3818
          %s3820 = smul.addr %s27, 16
          %s3821 = scalar_lea.hbm %s7, %s3820
          %s3823 = sshll.u32 %s3813, 4
          %s3824 = int_to_ptr.vmem [resolvable:$true] %s3823
          %3826 = dma.vmem_to_hbm [thread:$0]  %s3824, 16, %s3821, %s3811
        $region68: #{tpu_custom_call.1} parent=47 // pred_fallthru
          _
      $region48: #{tpu_custom_call.1} parent=5 // pred_fallthru
        _
      %p3827 = scmp.le.s32.totalorder 2, %s18
      // Predicated region
      $region69: #{tpu_custom_call.1} parent=5 // pred_check
        %p3828 = pneg %p3827
      $region70: #{tpu_custom_call.1} parent=5 // pred_check_branch
        %3830 = sbr.rel (%p3828) target = $region72
      $region71: #{tpu_custom_call.1} parent=5 // pred_region
        %s3831 = ssub.s32 %s18, 2
        // Predicated region
        $region73: #{tpu_custom_call.1} parent=71 // pred_check
          %p3832 = pneg %p213
        $region74: #{tpu_custom_call.1} parent=71 // pred_check_branch
          %3834 = sbr.rel (%p3832) target = $region76
        $region75: #{tpu_custom_call.1} parent=71 // pred_region
          %s3835 = sand.u32 %s198, 1
          %s3836 = scalar_lea.sflag [#allocation5], %s3835
          %s3837 = sand.u32 %s198, 1
          %s3838 = scalar_lea.vmem [#allocation8], %s3837
          %3839 = dma.done %s3836, 16
        $region76: #{tpu_custom_call.1} parent=71 // pred_fallthru
          _
      $region72: #{tpu_custom_call.1} parent=5 // pred_fallthru
        _
    $region6: #{tpu_custom_call.1} parent=1 // loop_footer
      %s22 = sadd.s32 1, %s18
    $region7: #{tpu_custom_call.1} parent=1 // loop_footer_branch
      %17 = sbr.rel target = $region3
    $region8: #{tpu_custom_call.1} parent=1 // loop_exit
      _
    %3840 = vsyncpa [#allocation4], 1
    %s3841 = scalar_lea.sflag [#allocation4], 1
    %3842 = vsyncpa %s3841, 1
    %3843 = vsyncpa [#allocation7], 1
    %3844 = vsyncpa [#allocation5], 1
    %s3845 = scalar_lea.sflag [#allocation5], 1
    %3846 = vsyncpa %s3845, 1

</llo_original>
